<compile_context>
chip_gen: v7x
topology: tpu7x:2x2x1
jax: 0.10.0
libtpu: 0.0.40
codegen_flags: <defaults>
</compile_context>

<pallas_src>
import math

import jax
import jax.numpy as jnp
from jax.experimental import pallas as pl
from jax.experimental.pallas import tpu as pltpu


# ----------------------------------------------------------------------------
# small helpers
# ----------------------------------------------------------------------------
def _round_up(v, m):
    return ((v + m - 1) // m) * m


def _vmem_cap_bytes():
    try:
        return int(pltpu.get_tpu_info().vmem_capacity_bytes)
    except Exception:                      # noqa: BLE001 - conservative fallback
        return 64 << 20                    # v7x physical VMEM


def _vmem_limit(est_bytes):
    """Explicit scoped-VMEM limit: estimated usage * 1.5, clamped to [32 MiB, 85% of HW]."""
    cap = int(_vmem_cap_bytes() * 0.85)
    return int(min(max(est_bytes * 3 // 2, 32 << 20), cap))


def pick_query_tile(S, target=256):
    """Largest multiple of 8 that divides S and is <= target (e.g. 216 for S=1296).

    target=256 suits v6e (256x256 MXU, large VMEM); it is also safe on v5e/v7x at the
    shapes used here. Falls back to S only if no multiple of 8 divides S."""
    best = 0
    t = 8
    while t <= min(target, S):
        if S % t == 0:
            best = t
        t += 8
    return best if best else S


# ----------------------------------------------------------------------------
# Kernel 1: fused bidirectional single-head cross attention
#   grid = (B, S // tq);  B "parallel" (megacore), query-tile axis "arbitrary"
#   (K/V/Q projections computed once per batch at t==0 into VMEM scratch).
# ----------------------------------------------------------------------------
def bidir_cross_attention_kernel(x_ref, y_ref, wx_ref, bx_ref, wy_ref, by_ref,
                                 woa_ref, boa_ref, wob_ref, bob_ref,
                                 ox_ref, oy_ref, xs_ref, ys_ref):
    # x_ref / y_ref : (1, S, D) bf16 full token blocks (resident across query tiles)
    # wx_ref        : (D, 3D) bf16 packed [Wq_a * 1/sqrt(D) | Wk_b | Wv_b]
    # wy_ref        : (D, 3D) bf16 packed [Wq_b * 1/sqrt(D) | Wk_a | Wv_a]
    # bx_ref/by_ref : (1, 3D) f32 packed biases (query bias also pre-scaled)
    # woa/wob       : (D, D) bf16 output projections; boa/bob: (1, D) f32
    # ox_ref/oy_ref : (1, tq, D) bf16 output tiles
    # xs_ref/ys_ref : (S, 3D) bf16 VMEM scratch, persists across the query-tile axis
    t = pl.program_id(1)
    D = ox_ref.shape[-1]
    tq = ox_ref.shape[1]

    @pl.when(t == 0)
    def _project():
        # Wide fused projections: one (S, D) @ (D, 3D) matmul per stream.
        x_full = x_ref[0].astype(jnp.bfloat16)
        y_full = y_ref[0].astype(jnp.bfloat16)
        xp = jnp.dot(x_full, wx_ref[...],
                     preferred_element_type=jnp.float32) + bx_ref[...]
        yp = jnp.dot(y_full, wy_ref[...],
                     preferred_element_type=jnp.float32) + by_ref[...]
        xs_ref[...] = xp.astype(jnp.bfloat16)
        ys_ref[...] = yp.astype(jnp.bfloat16)

    row = pl.multiple_of(t * tq, tq)

    # direction a: x-queries attend to y-keys/values
    q_x = xs_ref[pl.ds(row, tq), 0:D]          # (tq, D) bf16, 1/sqrt(D) already folded in
    k_y = ys_ref[:, D:2 * D]                   # (S, D) bf16
    v_y = ys_ref[:, 2 * D:3 * D]               # (S, D) bf16
    # direction b: y-queries attend to x-keys/values
    q_y = ys_ref[pl.ds(row, tq), 0:D]
    k_x = xs_ref[:, D:2 * D]
    v_x = xs_ref[:, 2 * D:3 * D]

    def attend(q, k, v, wo_ref, bo_ref, o_ref):
        # scores: contract the feature dim of q and k directly (no explicit transpose)
        s = jax.lax.dot_general(q, k, (((1,), (1,)), ((), ())),
                                preferred_element_type=jnp.float32)   # (tq, S) f32
        m = jnp.max(s, axis=-1, keepdims=True)
        p = jnp.exp(s - m)                                            # f32 softmax
        # exact normalization (trainable head; perf-review correctness note)
        inv = 1.0 / jnp.sum(p, axis=-1, keepdims=True)
        acc = jnp.dot(p.astype(jnp.bfloat16), v,
                      preferred_element_type=jnp.float32)             # (tq, D)
        acc = acc * inv                                               # normalize after p@v
        out = jnp.dot(acc.astype(jnp.bfloat16), wo_ref[...],
                      preferred_element_type=jnp.float32) + bo_ref[...]
        o_ref[0] = out.astype(o_ref.dtype)

    attend(q_x, k_y, v_y, woa_ref, boa_ref, ox_ref)
    attend(q_y, k_x, v_x, wob_ref, bob_ref, oy_ref)


def cross_attention_pair(x, y, packed, tq_target=256):
    """One TwoCrossAttention block: returns (x<-attend(y), y<-attend(x)) in bf16.

    x, y: [B, S, D] token tensors (f32 or bf16)."""
    B, S, D = x.shape
    assert D % 128 == 0, "feature dim must be a multiple of 128 (lane-aligned q/k/v slices)"
    tq = pick_query_tile(S, tq_target)
    T = S // tq
    wx, bx, wy, by, woa, boa, wob, bob = packed

    x_bf = x.astype(jnp.bfloat16)
    y_bf = y.astype(jnp.bfloat16)

    # constant-index weights are fetched once -> single-buffer them (saves VMEM)
    const = dict(pipeline_mode=pl.Buffered(1))
    tok_full = pl.BlockSpec((1, S, D), lambda b, t: (b, 0, 0))
    out_tile = pl.BlockSpec((1, tq, D), lambda b, t: (b, t, 0))
    w3_spec = pl.BlockSpec((D, 3 * D), lambda b, t: (0, 0), **const)
    b3_spec = pl.BlockSpec((1, 3 * D), lambda b, t: (0, 0), **const)
    w1_spec = pl.BlockSpec((D, D), lambda b, t: (0, 0), **const)
    b1_spec = pl.BlockSpec((1, D), lambda b, t: (0, 0), **const)

    # explicit VMEM budget (blocks + scratch + working set, with headroom)
    est = (2 * 2 * S * D * 2                                           # token blocks (x2 buf)
           + 2 * D * 3 * D * 2 + 2 * D * D * 2 + 2 * 3 * D * 4 + 2 * D * 4   # weights (x1 buf)
           + 2 * 2 * tq * D * 2                                        # output tiles (x2 buf)
           + 2 * S * 3 * D * 2                                         # persistent QKV scratch
           + 2 * S * 3 * D * 4                                         # f32 proj intermediates
           + 4 * tq * S * 4)                                           # scores / exp working set

    flops = B * (16 * S * D * D + 8 * S * S * D)
    transcendentals = B * 2 * S * S
    bytes_accessed = (4 * B * S * D * 2
                      + 2 * (D * 3 * D) * 2 + 2 * (D * D) * 2
                      + 2 * (3 * D) * 4 + 2 * D * 4)

    return pl.pallas_call(
        bidir_cross_attention_kernel,
        out_shape=(jax.ShapeDtypeStruct((B, S, D), jnp.bfloat16),
                   jax.ShapeDtypeStruct((B, S, D), jnp.bfloat16)),
        grid=(B, T),
        in_specs=[tok_full, tok_full, w3_spec, b3_spec, w3_spec, b3_spec,
                  w1_spec, b1_spec, w1_spec, b1_spec],
        out_specs=(out_tile, out_tile),
        scratch_shapes=[pltpu.VMEM((S, 3 * D), jnp.bfloat16),
                        pltpu.VMEM((S, 3 * D), jnp.bfloat16)],
        compiler_params=pltpu.CompilerParams(
            dimension_semantics=("parallel", "arbitrary"),
            vmem_limit_bytes=_vmem_limit(est)),
        cost_estimate=pl.CostEstimate(flops=flops, transcendentals=transcendentals,
                                      bytes_accessed=bytes_accessed),
    )(x_bf, y_bf, wx, bx, wy, by, woa, boa, wob, bob)


def pack_attention_params(blk, D):
    """Pack per-direction Q/K/V/O params into fused bf16 matrices.

    xs stream holds [q for dir a | k,v for dir b]; ys holds [q for dir b | k,v for dir a].
    The 1/sqrt(D) attention scale is folded into the query projection."""
    wq_a, wk_a, wv_a, wo_a, bq_a, bk_a, bv_a, bo_a = blk["a"]
    wq_b, wk_b, wv_b, wo_b, bq_b, bk_b, bv_b, bo_b = blk["b"]
    scale = 1.0 / math.sqrt(D)
    wx = jnp.concatenate([wq_a * scale, wk_b, wv_b], axis=1).astype(jnp.bfloat16)
    bx = jnp.concatenate([bq_a * scale, bk_b, bv_b], axis=1).astype(jnp.float32)
    wy = jnp.concatenate([wq_b * scale, wk_a, wv_a], axis=1).astype(jnp.bfloat16)
    by = jnp.concatenate([bq_b * scale, bk_a, bv_a], axis=1).astype(jnp.float32)
    return (wx, bx, wy, by,
            wo_a.astype(jnp.bfloat16), bo_a.astype(jnp.float32),
            wo_b.astype(jnp.bfloat16), bo_b.astype(jnp.float32))


# ----------------------------------------------------------------------------
# Kernel 2: decoder head  conv1(3x3)+ReLU + conv2(1x1)+ReLU + bilinear upsample
#   x/y streams kept separate (no channel-concat HBM round trip); 3x3 conv as
#   18 shifted flat matmuls; upsample epilogue width-first and lane-dense in Wo.
# ----------------------------------------------------------------------------
def decode_upsample_kernel(x_ref, y_ref, w1x_ref, w1y_ref, b1_ref, w2_ref, b2_ref,
                           ah_ref, awt_ref, o_ref, acc_ref):
    # x_ref/y_ref : (1, H+3, Wp, C) bf16 zero-padded streams (1 top, 2 bottom, 1 left,
    #               Wp-W-1 right; Wp % 8 == 0). The extra bottom row guards the dw shifts.
    # w1x/w1y     : (9, C, Cmid) bf16  — tap-packed 3x3 conv weights per stream,
    #               w1x[dh*3+dw][ci, co] == torch_conv1.weight[co, ci, dh, dw] (ci in x half)
    # b1          : (1, Cmid) f32 ; w2: (Cmid, 2) bf16 (1x1 conv) ; b2: (1, 2) f32
    # ah          : (Ho, H) bf16 ; awt: (Wp, Wo) bf16, rows >= W are zero (kills junk cols)
    # o_ref       : (1, 2, Ho, Wo) f32 ; acc_ref: (H*Wp, Cmid) f32 VMEM accumulator
    Hp, Wp, C = x_ref.shape[1], x_ref.shape[2], x_ref.shape[3]
    Ho, H = ah_ref.shape
    HW = acc_ref.shape[0]                                  # == H * Wp

    # aligned flat views (Wp % 8 == 0, C % 128 == 0 -> free reshape, no relayout)
    xf = x_ref[0].reshape(Hp * Wp, C)
    yf = y_ref[0].reshape(Hp * Wp, C)

    first = True
    for dw in range(3):
        # one sublane shift per dw (dw == 0 is free); reused for all three dh taps,
        # whose offsets dh*Wp are multiples of 8 (aligned slices).
        xw = xf[dw:dw + (H + 2) * Wp, :]
        yw = yf[dw:dw + (H + 2) * Wp, :]
        for dh in range(3):
            tap = dh * 3 + dw
            r0 = dh * Wp
            contrib = jnp.dot(xw[r0:r0 + HW, :], w1x_ref[tap],
                              preferred_element_type=jnp.float32)
            contrib = contrib + jnp.dot(yw[r0:r0 + HW, :], w1y_ref[tap],
                                        preferred_element_type=jnp.float32)
            if first:
                acc_ref[...] = contrib                     # no zero-init pass
                first = False
            else:
                acc_ref[...] += contrib

    h1 = jnp.maximum(acc_ref[...] + b1_ref[...], 0.0)      # (H*Wp, Cmid) f32, ReLU
    h2 = jnp.dot(h1.astype(jnp.bfloat16), w2_ref[...],
                 preferred_element_type=jnp.float32) + b2_ref[...]
    h2 = jnp.maximum(h2, 0.0).reshape(H, Wp, 2)            # aligned split (Wp % 8 == 0)

    # bilinear upsample, width contraction first so Wo stays the lane dim throughout;
    # bf16 operands with f32 accumulation; awt's zero rows drop the junk columns >= W.
    for c in range(2):
        hc = h2[:, :, c].astype(jnp.bfloat16)                               # (H, Wp)
        tw = jnp.dot(hc, awt_ref[...], preferred_element_type=jnp.float32)  # (H, Wo)
        o_ref[0, c] = jnp.dot(ah_ref[...], tw.astype(jnp.bfloat16),
                              preferred_element_type=jnp.float32).astype(o_ref.dtype)


def decode_upsample(x_img, y_img, w1x, w1y, b1, w2, b2, ah, awt):
    """x_img, y_img: [B, H, W, C] per-stream features. Returns [B, 2, Ho, Wo] f32."""
    B, H, W, C = x_img.shape
    Cmid = w1x.shape[-1]
    Ho = ah.shape[0]
    Wp, Wo = awt.shape
    Hp = H + 3
    HW = H * Wp

    # per-stream zero pad (conv pad=1 + 1 shift-guard row + width alignment to Wp).
    # TODO(synk): build the halo inside the kernel to also remove this HBM round trip.
    def pad_stream(z):
        return jnp.pad(z.astype(jnp.bfloat16),
                       ((0, 0), (1, 2), (1, Wp - W - 1), (0, 0)))

    xp = pad_stream(x_img)
    yp = pad_stream(y_img)

    const = dict(pipeline_mode=pl.Buffered(1))              # constant weights: single buffer
    in_specs = [
        pl.BlockSpec((1, Hp, Wp, C), lambda b: (b, 0, 0, 0)),
        pl.BlockSpec((1, Hp, Wp, C), lambda b: (b, 0, 0, 0)),
        pl.BlockSpec((9, C, Cmid), lambda b: (0, 0, 0), **const),
        pl.BlockSpec((9, C, Cmid), lambda b: (0, 0, 0), **const),
        pl.BlockSpec((1, Cmid), lambda b: (0, 0), **const),
        pl.BlockSpec((Cmid, 2), lambda b: (0, 0), **const),
        pl.BlockSpec((1, 2), lambda b: (0, 0), **const),
        pl.BlockSpec((Ho, H), lambda b: (0, 0), **const),
        pl.BlockSpec((Wp, Wo), lambda b: (0, 0), **const),
    ]

    est = (2 * 2 * Hp * Wp * C * 2                          # x/y blocks (x2 buf)
           + 2 * 9 * C * Cmid * 2                           # conv1 weights (x1 buf)
           + Cmid * 4 + Cmid * 2 * 2 + 2 * 4 + Ho * H * 2 + Wp * Wo * 2
           + 2 * 2 * Ho * Wo * 4                            # output (x2 buf)
           + HW * Cmid * 4                                  # accumulator scratch
           + 2 * 3 * (H + 2) * Wp * C * 2                   # shifted operand values
           + 2 * HW * Cmid * 4)                             # h1 / matmul temporaries

    flops = B * (2 * H * W * 9 * 2 * C * Cmid + 2 * H * W * Cmid * 2
                 + 2 * (2 * H * Wp * Wo + 2 * Ho * H * Wo))
    bytes_accessed = (B * (2 * Hp * Wp * C * 2 + 2 * Ho * Wo * 4)
                      + 2 * 9 * C * Cmid * 2 + Cmid * 4 + Cmid * 2 * 2 + 2 * 4
                      + Ho * H * 2 + Wp * Wo * 2)

    return pl.pallas_call(
        decode_upsample_kernel,
        out_shape=jax.ShapeDtypeStruct((B, 2, Ho, Wo), jnp.float32),
        grid=(B,),
        in_specs=in_specs,
        out_specs=pl.BlockSpec((1, 2, Ho, Wo), lambda b: (b, 0, 0, 0)),
        scratch_shapes=[pltpu.VMEM((HW, Cmid), jnp.float32)],
        compiler_params=pltpu.CompilerParams(
            dimension_semantics=("parallel",),
            vmem_limit_bytes=_vmem_limit(est)),
        cost_estimate=pl.CostEstimate(flops=flops, transcendentals=0,
                                      bytes_accessed=bytes_accessed),
    )(xp, yp, w1x, w1y, b1, w2, b2, ah, awt)


def bilinear_matrix(out_size, in_size):
    # PyTorch align_corners=False: src = (i + 0.5) * (in/out) - 0.5, clamped to [0, in-1]
    scale = in_size / out_size
    dst = jnp.arange(out_size, dtype=jnp.float32)
    src = jnp.clip((dst + 0.5) * scale - 0.5, 0.0, in_size - 1.0)
    lo = jnp.floor(src).astype(jnp.int32)
    hi = jnp.minimum(lo + 1, in_size - 1)
    w_hi = src - lo.astype(jnp.float32)
    w_lo = 1.0 - w_hi
    rows = jnp.arange(out_size)
    A = jnp.zeros((out_size, in_size), jnp.float32)
    A = A.at[rows, lo].add(w_lo)
    A = A.at[rows, hi].add(w_hi)
    return A


# ----------------------------------------------------------------------------
# Parameter init (deterministic, synthetic) and model forward
# ----------------------------------------------------------------------------
def init_params(key, C, num_blocks):
    keys = iter(jax.random.split(key, num_blocks * 16 + 8))

    def rnd(shape, scale):
        return jax.random.normal(next(keys), shape, jnp.float32) * scale

    s = 1.0 / math.sqrt(C)
    ca_blocks = []
    for _ in range(num_blocks):
        blk = {}
        for side in ("a", "b"):   # a: x attends to y, b: y attends to x
            ws = tuple(rnd((C, C), s) for _ in range(4))          # Wq, Wk, Wv, Wo
            bs = tuple(rnd((1, C), 0.01) for _ in range(4))       # bq, bk, bv, bo
            blk[side] = ws + bs
        ca_blocks.append(pack_attention_params(blk, C))

    cscale = 1.0 / math.sqrt(9 * 2 * C)
    params = {
        "ca_blocks": ca_blocks,
        # conv1: Conv2d(2C -> C, 3x3, pad=1), tap-packed per stream:
        #   conv1_wx[dh*3+dw][ci, co] == torch.weight[co, ci, dh, dw]      (ci in [0, C))
        #   conv1_wy[dh*3+dw][ci, co] == torch.weight[co, C + ci, dh, dw]
        "conv1_wx": rnd((9, C, C), cscale).astype(jnp.bfloat16),
        "conv1_wy": rnd((9, C, C), cscale).astype(jnp.bfloat16),
        "conv1_b": rnd((1, C), 0.01),
        # conv2: Conv2d(C -> 2, 1x1)
        "conv2_w": rnd((C, 2), 1.0 / math.sqrt(C)).astype(jnp.bfloat16),
        "conv2_b": rnd((1, 2), 0.01),
    }
    return params


def apply_cross_attention(feat1, feat2, params):
    """_reshape_before_CA + ca0s chain. Returns bf16 token tensors [B, S, C]."""
    B, C, H, W = feat1.shape
    x = jnp.transpose(feat1, (0, 2, 3, 1)).reshape(B, H * W, C)
    y = jnp.transpose(feat2, (0, 2, 3, 1)).reshape(B, H * W, C)
    for packed in params["ca_blocks"]:
        x, y = cross_attention_pair(x, y, packed)      # x, y = ca(x, y, y, y, x, x)
    return x, y


def decode_head(x_tok, y_tok, params, spatial, target_shp):
    """_reshape_after_CA + conv1/relu + conv2/relu + bilinear upsample + final permute."""
    B, S, C = x_tok.shape
    H, W = spatial
    assert S == H * W
    x_img = x_tok.reshape(B, H, W, C)
    y_img = y_tok.reshape(B, H, W, C)
    Ho, Wo = target_shp
    Wp = _round_up(W + 2, 8)
    ah = bilinear_matrix(Ho, H).astype(jnp.bfloat16)                       # (Ho, H)
    awt = jnp.pad(bilinear_matrix(Wo, W).T,
                  ((0, Wp - W), (0, 0))).astype(jnp.bfloat16)              # (Wp, Wo)
    up = decode_upsample(x_img, y_img, params["conv1_wx"], params["conv1_wy"],
                         params["conv1_b"], params["conv2_w"], params["conv2_b"],
                         ah, awt)                                          # (B, 2, Ho, Wo)
    return jnp.transpose(up, (0, 2, 3, 1))                                 # (B, Ho, Wo, 2)


def model_forward(feat1, feat2, params, target_shp):
    """feat1, feat2: registered DINO feature maps, NCHW [B, C, H, W]."""
    B, C, H, W = feat1.shape
    x, y = apply_cross_attention(feat1, feat2, params)
    return decode_head(x, y, params, (H, W), target_shp)


# ----------------------------------------------------------------------------
# Pure-JAX references (correctness checks)
# ----------------------------------------------------------------------------
def reference_attention(feat1, feat2, params):
    B, C, H, W = feat1.shape
    D = C

    def tok(f):
        return jnp.transpose(f, (0, 2, 3, 1)).reshape(B, H * W, C)

    x, y = tok(feat1), tok(feat2)
    for packed in params["ca_blocks"]:
        x = x.astype(jnp.bfloat16).astype(jnp.float32)    # mirror kernel input quantization
        y = y.astype(jnp.bfloat16).astype(jnp.float32)
        wx, bx, wy, by, woa, boa, wob, bob = [p.astype(jnp.float32) for p in packed]
        xs = x @ wx + bx
        ys = y @ wy + by

        def attend(q, k, v, wo, bo):
            s = jnp.einsum("bqd,bkd->bqk", q, k)
            p = jax.nn.softmax(s, axis=-1)
            return jnp.einsum("bqk,bkd->bqd", p, v) @ wo + bo

        x_new = attend(xs[..., :D], ys[..., D:2 * D], ys[..., 2 * D:], woa, boa)
        y_new = attend(ys[..., :D], xs[..., D:2 * D], xs[..., 2 * D:], wob, bob)
        x, y = x_new, y_new
    return x, y


def reference_decode(x_tok, y_tok, params, spatial, target_shp):
    B, S, C = x_tok.shape
    H, W = spatial
    x_img = x_tok.astype(jnp.float32).reshape(B, H, W, C)
    y_img = y_tok.astype(jnp.float32).reshape(B, H, W, C)
    xpad = jnp.pad(x_img, ((0, 0), (1, 1), (1, 1), (0, 0)))
    ypad = jnp.pad(y_img, ((0, 0), (1, 1), (1, 1), (0, 0)))
    Cmid = params["conv1_b"].shape[-1]
    w1x = params["conv1_wx"].astype(jnp.float32)
    w1y = params["conv1_wy"].astype(jnp.float32)
    acc = jnp.zeros((B, H, W, Cmid), jnp.float32)
    for dh in range(3):
        for dw in range(3):
            tap = dh * 3 + dw
            acc = acc + jnp.einsum("bhwc,cm->bhwm",
                                   xpad[:, dh:dh + H, dw:dw + W, :], w1x[tap])
            acc = acc + jnp.einsum("bhwc,cm->bhwm",
                                   ypad[:, dh:dh + H, dw:dw + W, :], w1y[tap])
    h1 = jax.nn.relu(acc + params["conv1_b"])
    h2 = jax.nn.relu(jnp.einsum("bhwm,mo->bhwo", h1,
                                params["conv2_w"].astype(jnp.float32)) + params["conv2_b"])
    Ho, Wo = target_shp
    Ah = bilinear_matrix(Ho, H).astype(jnp.bfloat16).astype(jnp.float32)
    Aw = bilinear_matrix(Wo, W).astype(jnp.bfloat16).astype(jnp.float32)
    return jnp.einsum("ih,bhwc,jw->bijc", Ah, h2, Aw)       # (B, Ho, Wo, 2)


if __name__ == "__main__":
    B, C, H, W = 2, 128, 16, 16        # small stand-in for DINO feature maps
    target_shp = (32, 32)              # small stand-in for (504, 504)
    num_blocks = 1

    key = jax.random.PRNGKey(0)
    k1, k2, kp = jax.random.split(key, 3)
    feat1 = jax.random.normal(k1, (B, C, H, W), jnp.float32)
    feat2 = jax.random.normal(k2, (B, C, H, W), jnp.float32)
    params = init_params(kp, C, num_blocks)

    out = jax.block_until_ready(model_forward(feat1, feat2, params, target_shp))
    assert out.shape == (B, target_shp[0], target_shp[1], 2), out.shape
    assert bool(jnp.all(jnp.isfinite(out)))

    # correctness checks against pure-JAX references (loose tolerances for bf16 drift)
    def max_rel(a, b):
        a = a.astype(jnp.float32)
        return float(jnp.max(jnp.abs(a - b)) / (jnp.max(jnp.abs(b)) + 1e-6))

    x_att, y_att = apply_cross_attention(feat1, feat2, params)
    x_att = jax.block_until_ready(x_att)
    ref_x, ref_y = reference_attention(feat1, feat2, params)
    ex, ey = max_rel(x_att, ref_x), max_rel(y_att, ref_y)
    assert ex < 0.12 and ey < 0.12, (ex, ey)

    ref_out = reference_decode(x_att, y_att, params, (H, W), target_shp)
    eo = max_rel(out, ref_out)
    assert eo < 0.06, eo

    print("KERNEL_OK")
</pallas_src>

<mosaic_0001>
module attributes {stable_mosaic.version = 11 : i64} {
  func.func @bidir_cross_attention_kernel(%arg0: i32, %arg1: i32, %arg2: memref<1x256x128xbf16, #tpu.memory_space<vmem>>, %arg3: memref<1x256x128xbf16, #tpu.memory_space<vmem>>, %arg4: memref<128x384xbf16, #tpu.memory_space<vmem>>, %arg5: memref<1x384xf32, #tpu.memory_space<vmem>>, %arg6: memref<128x384xbf16, #tpu.memory_space<vmem>>, %arg7: memref<1x384xf32, #tpu.memory_space<vmem>>, %arg8: memref<128x128xbf16, #tpu.memory_space<vmem>>, %arg9: memref<1x128xf32, #tpu.memory_space<vmem>>, %arg10: memref<128x128xbf16, #tpu.memory_space<vmem>>, %arg11: memref<1x128xf32, #tpu.memory_space<vmem>>, %arg12: memref<1x256x128xbf16, #tpu.memory_space<vmem>>, %arg13: memref<1x256x128xbf16, #tpu.memory_space<vmem>>, %arg14: memref<256x384xbf16, #tpu.memory_space<vmem>>, %arg15: memref<256x384xbf16, #tpu.memory_space<vmem>>) attributes {dimension_semantics = [#tpu.dimension_semantics<parallel>, #tpu.dimension_semantics<arbitrary>], iteration_bounds = array<i64: 2, 1>, scalar_prefetch = 0 : i64, scratch_operands = 2 : i64, tpu.core_type = #tpu.core_type<tc>, window_params = [{transform_indices = @transform_0, window_bounds = array<i64: 1, 256, 128>}, {transform_indices = @transform_1, window_bounds = array<i64: 1, 256, 128>}, {pipeline_mode = #tpu.pipeline_mode<synchronous>, transform_indices = @transform_2, window_bounds = array<i64: 128, 384>}, {pipeline_mode = #tpu.pipeline_mode<synchronous>, transform_indices = @transform_3, window_bounds = array<i64: 1, 384>}, {pipeline_mode = #tpu.pipeline_mode<synchronous>, transform_indices = @transform_4, window_bounds = array<i64: 128, 384>}, {pipeline_mode = #tpu.pipeline_mode<synchronous>, transform_indices = @transform_5, window_bounds = array<i64: 1, 384>}, {pipeline_mode = #tpu.pipeline_mode<synchronous>, transform_indices = @transform_6, window_bounds = array<i64: 128, 128>}, {pipeline_mode = #tpu.pipeline_mode<synchronous>, transform_indices = @transform_7, window_bounds = array<i64: 1, 128>}, {pipeline_mode = #tpu.pipeline_mode<synchronous>, transform_indices = @transform_8, window_bounds = array<i64: 128, 128>}, {pipeline_mode = #tpu.pipeline_mode<synchronous>, transform_indices = @transform_9, window_bounds = array<i64: 1, 128>}, {transform_indices = @transform_10, window_bounds = array<i64: 1, 256, 128>}, {transform_indices = @transform_11, window_bounds = array<i64: 1, 256, 128>}]} {
    %c0_i32 = arith.constant 0 : i32
    %0 = arith.cmpi eq, %arg1, %c0_i32 : i32
    %1 = arith.extui %0 : i1 to i32
    %c0_i32_0 = arith.constant 0 : i32
    %2 = arith.cmpi ne, %1, %c0_i32_0 : i32
    scf.if %2 {
      %c0_33 = arith.constant 0 : index
      %c0_34 = arith.constant 0 : index
      %c0_35 = arith.constant 0 : index
      %61 = vector.load %arg2[%c0_33, %c0_34, %c0_35] : memref<1x256x128xbf16, #tpu.memory_space<vmem>>, vector<1x256x128xbf16>
      %62 = vector.shape_cast %61 : vector<1x256x128xbf16> to vector<256x128xbf16>
      %c0_36 = arith.constant 0 : index
      %c0_37 = arith.constant 0 : index
      %c0_38 = arith.constant 0 : index
      %63 = vector.load %arg3[%c0_36, %c0_37, %c0_38] : memref<1x256x128xbf16, #tpu.memory_space<vmem>>, vector<1x256x128xbf16>
      %64 = vector.shape_cast %63 : vector<1x256x128xbf16> to vector<256x128xbf16>
      %c0_39 = arith.constant 0 : index
      %c0_40 = arith.constant 0 : index
      %65 = vector.load %arg4[%c0_39, %c0_40] : memref<128x384xbf16, #tpu.memory_space<vmem>>, vector<128x384xbf16>
      %cst_41 = arith.constant dense<0.000000e+00> : vector<256x384xf32>
      %66 = tpu.matmul %62, %65, %cst_41 {dimension_numbers = #tpu.dot_dimension_numbers<[1], [0], [0], [1], [0, 0, 1, 1], [], []>} : vector<256x128xbf16>, vector<128x384xbf16>, vector<256x384xf32> -> vector<256x384xf32>
      %c0_42 = arith.constant 0 : index
      %c0_43 = arith.constant 0 : index
      %67 = vector.load %arg5[%c0_42, %c0_43] : memref<1x384xf32, #tpu.memory_space<vmem>>, vector<1x384xf32>
      %68 = vector.broadcast %67 : vector<1x384xf32> to vector<256x384xf32>
      %69 = arith.addf %66, %68 : vector<256x384xf32>
      %c0_44 = arith.constant 0 : index
      %c0_45 = arith.constant 0 : index
      %70 = vector.load %arg6[%c0_44, %c0_45] : memref<128x384xbf16, #tpu.memory_space<vmem>>, vector<128x384xbf16>
      %cst_46 = arith.constant dense<0.000000e+00> : vector<256x384xf32>
      %71 = tpu.matmul %64, %70, %cst_46 {dimension_numbers = #tpu.dot_dimension_numbers<[1], [0], [0], [1], [0, 0, 1, 1], [], []>} : vector<256x128xbf16>, vector<128x384xbf16>, vector<256x384xf32> -> vector<256x384xf32>
      %c0_47 = arith.constant 0 : index
      %c0_48 = arith.constant 0 : index
      %72 = vector.load %arg7[%c0_47, %c0_48] : memref<1x384xf32, #tpu.memory_space<vmem>>, vector<1x384xf32>
      %73 = vector.broadcast %72 : vector<1x384xf32> to vector<256x384xf32>
      %74 = arith.addf %71, %73 : vector<256x384xf32>
      %75 = arith.truncf %69 : vector<256x384xf32> to vector<256x384xbf16>
      %c0_49 = arith.constant 0 : index
      %c0_50 = arith.constant 0 : index
      %76 = vector.load %arg14[%c0_49, %c0_50] : memref<256x384xbf16, #tpu.memory_space<vmem>>, vector<256x384xbf16>
      tpu.vector_store %arg14[%c0_49, %c0_50], %75 {strides = array<i32>} : memref<256x384xbf16, #tpu.memory_space<vmem>>, vector<256x384xbf16>,
      %77 = arith.truncf %74 : vector<256x384xf32> to vector<256x384xbf16>
      %c0_51 = arith.constant 0 : index
      %c0_52 = arith.constant 0 : index
      %78 = vector.load %arg15[%c0_51, %c0_52] : memref<256x384xbf16, #tpu.memory_space<vmem>>, vector<256x384xbf16>
      tpu.vector_store %arg15[%c0_51, %c0_52], %77 {strides = array<i32>} : memref<256x384xbf16, #tpu.memory_space<vmem>>, vector<256x384xbf16>,
    } else {
    }
    %c256_i32 = arith.constant 256 : i32
    %3 = arith.muli %arg1, %c256_i32 : i32
    %4 = tpu.assume_multiple %3, 256 : i32
    %5 = arith.index_cast %4 : i32 to index
    %c0 = arith.constant 0 : index
    %6 = vector.load %arg14[%5, %c0] : memref<256x384xbf16, #tpu.memory_space<vmem>>, vector<256x128xbf16>
    %c0_1 = arith.constant 0 : index
    %c128 = arith.constant 128 : index
    %7 = vector.load %arg15[%c0_1, %c128] : memref<256x384xbf16, #tpu.memory_space<vmem>>, vector<256x128xbf16>
    %c0_2 = arith.constant 0 : index
    %c256 = arith.constant 256 : index
    %8 = vector.load %arg15[%c0_2, %c256] : memref<256x384xbf16, #tpu.memory_space<vmem>>, vector<256x128xbf16>
    %9 = arith.index_cast %4 : i32 to index
    %c0_3 = arith.constant 0 : index
    %10 = vector.load %arg15[%9, %c0_3] : memref<256x384xbf16, #tpu.memory_space<vmem>>, vector<256x128xbf16>
    %c0_4 = arith.constant 0 : index
    %c128_5 = arith.constant 128 : index
    %11 = vector.load %arg14[%c0_4, %c128_5] : memref<256x384xbf16, #tpu.memory_space<vmem>>, vector<256x128xbf16>
    %c0_6 = arith.constant 0 : index
    %c256_7 = arith.constant 256 : index
    %12 = vector.load %arg14[%c0_6, %c256_7] : memref<256x384xbf16, #tpu.memory_space<vmem>>, vector<256x128xbf16>
    %cst = arith.constant dense<0.000000e+00> : vector<256x256xf32>
    %13 = tpu.matmul %6, %7, %cst {dimension_numbers = #tpu.dot_dimension_numbers<[1], [1], [0], [0], [0, 0, 1, 0], [], []>} : vector<256x128xbf16>, vector<256x128xbf16>, vector<256x256xf32> -> vector<256x256xf32>
    %cst_8 = arith.constant dense<0xFF800000> : vector<256xf32>
    %14 = vector.multi_reduction <maximumf>, %13, %cst_8 [1] : vector<256x256xf32> to vector<256xf32>
    %15 = vector.shape_cast %14 : vector<256xf32> to vector<256x1xf32>
    %16 = vector.broadcast %15 : vector<256x1xf32> to vector<256x256xf32>
    %17 = arith.subf %13, %16 : vector<256x256xf32>
    %18 = math.exp %17 : vector<256x256xf32>
    %cst_9 = arith.constant dense<0.000000e+00> : vector<256xf32>
    %19 = vector.multi_reduction <add>, %18, %cst_9 [1] : vector<256x256xf32> to vector<256xf32>
    %20 = vector.shape_cast %19 : vector<256xf32> to vector<256x1xf32>
    %cst_10 = arith.constant 1.000000e+00 : f32
    %21 = vector.broadcast %cst_10 : f32 to vector<256x1xf32>
    %22 = arith.divf %21, %20 : vector<256x1xf32>
    %23 = arith.truncf %18 : vector<256x256xf32> to vector<256x256xbf16>
    %cst_11 = arith.constant dense<0.000000e+00> : vector<256x128xf32>
    %24 = tpu.matmul %23, %8, %cst_11 {dimension_numbers = #tpu.dot_dimension_numbers<[1], [0], [0], [1], [0, 0, 1, 1], [], []>} : vector<256x256xbf16>, vector<256x128xbf16>, vector<256x128xf32> -> vector<256x128xf32>
    %25 = vector.broadcast %22 : vector<256x1xf32> to vector<256x128xf32>
    %26 = arith.mulf %24, %25 : vector<256x128xf32>
    %27 = arith.truncf %26 : vector<256x128xf32> to vector<256x128xbf16>
    %c0_12 = arith.constant 0 : index
    %c0_13 = arith.constant 0 : index
    %28 = vector.load %arg8[%c0_12, %c0_13] : memref<128x128xbf16, #tpu.memory_space<vmem>>, vector<128x128xbf16>
    %cst_14 = arith.constant dense<0.000000e+00> : vector<256x128xf32>
    %29 = tpu.matmul %27, %28, %cst_14 {dimension_numbers = #tpu.dot_dimension_numbers<[1], [0], [0], [1], [0, 0, 1, 1], [], []>} : vector<256x128xbf16>, vector<128x128xbf16>, vector<256x128xf32> -> vector<256x128xf32>
    %c0_15 = arith.constant 0 : index
    %c0_16 = arith.constant 0 : index
    %30 = vector.load %arg9[%c0_15, %c0_16] : memref<1x128xf32, #tpu.memory_space<vmem>>, vector<1x128xf32>
    %31 = vector.broadcast %30 : vector<1x128xf32> to vector<256x128xf32>
    %32 = arith.addf %29, %31 : vector<256x128xf32>
    %33 = arith.truncf %32 : vector<256x128xf32> to vector<256x128xbf16>
    %c0_17 = arith.constant 0 : index
    %c0_18 = arith.constant 0 : index
    %c0_19 = arith.constant 0 : index
    %34 = vector.load %arg12[%c0_17, %c0_18, %c0_19] : memref<1x256x128xbf16, #tpu.memory_space<vmem>>, vector<1x256x128xbf16>
    %35 = vector.shape_cast %34 : vector<1x256x128xbf16> to vector<256x128xbf16>
    %36 = vector.shape_cast %33 : vector<256x128xbf16> to vector<1x256x128xbf16>
    tpu.vector_store %arg12[%c0_17, %c0_18, %c0_19], %36 {strides = array<i32>} : memref<1x256x128xbf16, #tpu.memory_space<vmem>>, vector<1x256x128xbf16>,
    %cst_20 = arith.constant dense<0.000000e+00> : vector<256x256xf32>
    %37 = tpu.matmul %10, %11, %cst_20 {dimension_numbers = #tpu.dot_dimension_numbers<[1], [1], [0], [0], [0, 0, 1, 0], [], []>} : vector<256x128xbf16>, vector<256x128xbf16>, vector<256x256xf32> -> vector<256x256xf32>
    %cst_21 = arith.constant dense<0xFF800000> : vector<256xf32>
    %38 = vector.multi_reduction <maximumf>, %37, %cst_21 [1] : vector<256x256xf32> to vector<256xf32>
    %39 = vector.shape_cast %38 : vector<256xf32> to vector<256x1xf32>
    %40 = vector.broadcast %39 : vector<256x1xf32> to vector<256x256xf32>
    %41 = arith.subf %37, %40 : vector<256x256xf32>
    %42 = math.exp %41 : vector<256x256xf32>
    %cst_22 = arith.constant dense<0.000000e+00> : vector<256xf32>
    %43 = vector.multi_reduction <add>, %42, %cst_22 [1] : vector<256x256xf32> to vector<256xf32>
    %44 = vector.shape_cast %43 : vector<256xf32> to vector<256x1xf32>
    %cst_23 = arith.constant 1.000000e+00 : f32
    %45 = vector.broadcast %cst_23 : f32 to vector<256x1xf32>
    %46 = arith.divf %45, %44 : vector<256x1xf32>
    %47 = arith.truncf %42 : vector<256x256xf32> to vector<256x256xbf16>
    %cst_24 = arith.constant dense<0.000000e+00> : vector<256x128xf32>
    %48 = tpu.matmul %47, %12, %cst_24 {dimension_numbers = #tpu.dot_dimension_numbers<[1], [0], [0], [1], [0, 0, 1, 1], [], []>} : vector<256x256xbf16>, vector<256x128xbf16>, vector<256x128xf32> -> vector<256x128xf32>
    %49 = vector.broadcast %46 : vector<256x1xf32> to vector<256x128xf32>
    %50 = arith.mulf %48, %49 : vector<256x128xf32>
    %51 = arith.truncf %50 : vector<256x128xf32> to vector<256x128xbf16>
    %c0_25 = arith.constant 0 : index
    %c0_26 = arith.constant 0 : index
    %52 = vector.load %arg10[%c0_25, %c0_26] : memref<128x128xbf16, #tpu.memory_space<vmem>>, vector<128x128xbf16>
    %cst_27 = arith.constant dense<0.000000e+00> : vector<256x128xf32>
    %53 = tpu.matmul %51, %52, %cst_27 {dimension_numbers = #tpu.dot_dimension_numbers<[1], [0], [0], [1], [0, 0, 1, 1], [], []>} : vector<256x128xbf16>, vector<128x128xbf16>, vector<256x128xf32> -> vector<256x128xf32>
    %c0_28 = arith.constant 0 : index
    %c0_29 = arith.constant 0 : index
    %54 = vector.load %arg11[%c0_28, %c0_29] : memref<1x128xf32, #tpu.memory_space<vmem>>, vector<1x128xf32>
    %55 = vector.broadcast %54 : vector<1x128xf32> to vector<256x128xf32>
    %56 = arith.addf %53, %55 : vector<256x128xf32>
    %57 = arith.truncf %56 : vector<256x128xf32> to vector<256x128xbf16>
    %c0_30 = arith.constant 0 : index
    %c0_31 = arith.constant 0 : index
    %c0_32 = arith.constant 0 : index
    %58 = vector.load %arg13[%c0_30, %c0_31, %c0_32] : memref<1x256x128xbf16, #tpu.memory_space<vmem>>, vector<1x256x128xbf16>
    %59 = vector.shape_cast %58 : vector<1x256x128xbf16> to vector<256x128xbf16>
    %60 = vector.shape_cast %57 : vector<256x128xbf16> to vector<1x256x128xbf16>
    tpu.vector_store %arg13[%c0_30, %c0_31, %c0_32], %60 {strides = array<i32>} : memref<1x256x128xbf16, #tpu.memory_space<vmem>>, vector<1x256x128xbf16>,
    return
  }
  func.func @transform_0(%arg0: i32, %arg1: i32) -> (i32, i32, i32) {
    %c0_i32 = arith.constant 0 : i32
    %c0_i32_0 = arith.constant 0 : i32
    %c0_i32_1 = arith.constant 0 : i32
    return %arg0, %c0_i32, %c0_i32_0 : i32, i32, i32
  }
  func.func @transform_1(%arg0: i32, %arg1: i32) -> (i32, i32, i32) {
    %c0_i32 = arith.constant 0 : i32
    %c0_i32_0 = arith.constant 0 : i32
    %c0_i32_1 = arith.constant 0 : i32
    return %arg0, %c0_i32, %c0_i32_0 : i32, i32, i32
  }
  func.func @transform_2(%arg0: i32, %arg1: i32) -> (i32, i32) {
    %c0_i32 = arith.constant 0 : i32
    %c0_i32_0 = arith.constant 0 : i32
    %c0_i32_1 = arith.constant 0 : i32
    return %c0_i32, %c0_i32_0 : i32, i32
  }
  func.func @transform_3(%arg0: i32, %arg1: i32) -> (i32, i32) {
    %c0_i32 = arith.constant 0 : i32
    %c0_i32_0 = arith.constant 0 : i32
    %c0_i32_1 = arith.constant 0 : i32
    return %c0_i32, %c0_i32_0 : i32, i32
  }
  func.func @transform_4(%arg0: i32, %arg1: i32) -> (i32, i32) {
    %c0_i32 = arith.constant 0 : i32
    %c0_i32_0 = arith.constant 0 : i32
    %c0_i32_1 = arith.constant 0 : i32
    return %c0_i32, %c0_i32_0 : i32, i32
  }
  func.func @transform_5(%arg0: i32, %arg1: i32) -> (i32, i32) {
    %c0_i32 = arith.constant 0 : i32
    %c0_i32_0 = arith.constant 0 : i32
    %c0_i32_1 = arith.constant 0 : i32
    return %c0_i32, %c0_i32_0 : i32, i32
  }
  func.func @transform_6(%arg0: i32, %arg1: i32) -> (i32, i32) {
    %c0_i32 = arith.constant 0 : i32
    %c0_i32_0 = arith.constant 0 : i32
    %c0_i32_1 = arith.constant 0 : i32
    return %c0_i32, %c0_i32_0 : i32, i32
  }
  func.func @transform_7(%arg0: i32, %arg1: i32) -> (i32, i32) {
    %c0_i32 = arith.constant 0 : i32
    %c0_i32_0 = arith.constant 0 : i32
    %c0_i32_1 = arith.constant 0 : i32
    return %c0_i32, %c0_i32_0 : i32, i32
  }
  func.func @transform_8(%arg0: i32, %arg1: i32) -> (i32, i32) {
    %c0_i32 = arith.constant 0 : i32
    %c0_i32_0 = arith.constant 0 : i32
    %c0_i32_1 = arith.constant 0 : i32
    return %c0_i32, %c0_i32_0 : i32, i32
  }
  func.func @transform_9(%arg0: i32, %arg1: i32) -> (i32, i32) {
    %c0_i32 = arith.constant 0 : i32
    %c0_i32_0 = arith.constant 0 : i32
    %c0_i32_1 = arith.constant 0 : i32
    return %c0_i32, %c0_i32_0 : i32, i32
  }
  func.func @transform_10(%arg0: i32, %arg1: i32) -> (i32, i32, i32) {
    %c0_i32 = arith.constant 0 : i32
    %c0_i32_0 = arith.constant 0 : i32
    return %arg0, %arg1, %c0_i32 : i32, i32, i32
  }
  func.func @transform_11(%arg0: i32, %arg1: i32) -> (i32, i32, i32) {
    %c0_i32 = arith.constant 0 : i32
    %c0_i32_0 = arith.constant 0 : i32
    return %arg0, %arg1, %c0_i32 : i32, i32, i32
  }
}

</mosaic_0001>

<llo_original>
// kernel: tpu_custom_call.1
$region0: #{tpu_custom_call.1}
  #allocation0 [shape = 'u32[]', space=smem, size = 0x4, offset = 0x4, fixed_abs, tag = 'smem constant byte address 0x4 - core index']
  #allocation1 [shape = 'u32[144,128]{1,0:T(1,128)}', space=vmem, size = 0x12000, scoped, tag = 'internal scratch']
  #allocation2 [shape = 'bf16[256,384]{1,0:T(16,128)(2,1)}', space=vmem, size = 0x30000, scoped, tag = 'scratch operand']
  #allocation3 [shape = 'bf16[256,384]{1,0:T(16,128)(2,1)}', space=vmem, size = 0x30000, scoped, tag = 'scratch operand']
  %s0 = inlined_call_operand.hbm [shape: bf16[2,256,128], index: 0, kind: input, shape index: {}]
  %s1 = inlined_call_operand.hbm [shape: bf16[2,256,128], index: 1, kind: input, shape index: {}]
  %s2 = inlined_call_operand.hbm [shape: bf16[128,384], index: 2, kind: input, shape index: {}]
  %s3 = inlined_call_operand.vmem [shape: f32[1,384], index: 3, kind: input, shape index: {}]
  %s4 = inlined_call_operand.hbm [shape: bf16[128,384], index: 4, kind: input, shape index: {}]
  %s5 = inlined_call_operand.vmem [shape: f32[1,384], index: 5, kind: input, shape index: {}]
  %s6 = inlined_call_operand.hbm [shape: bf16[128,128], index: 6, kind: input, shape index: {}]
  %s7 = inlined_call_operand.vmem [shape: f32[1,128], index: 7, kind: input, shape index: {}]
  %s8 = inlined_call_operand.hbm [shape: bf16[128,128], index: 8, kind: input, shape index: {}]
  %s9 = inlined_call_operand.vmem [shape: f32[1,128], index: 9, kind: input, shape index: {}]
  %s10 = inlined_call_operand.hbm [shape: bf16[2,256,128], index: 10, kind: output, shape index: {0}]
  %s11 = inlined_call_operand.hbm [shape: bf16[2,256,128], index: 11, kind: output, shape index: {1}]
  %12 = xla_tuple %s10, %s11
  %s13 = sld [smem:[#allocation0]]
  $region109: #{tpu_custom_call.1} parent=0
    _
  %s15 = ssub.s32 1, %s13
  %s16 = scalar_select 0, %s15, %s13
  $region1: #{tpu_custom_call.1} parent=0
    #allocation4 [shape = 'u8[131072]{0}', space=vmem, size = 0x20000, scoped, tag = 'input window, operand 0']
    #allocation5 [shape = 's32[2]{0}', space=sflag, size = 0x8, scoped, tag = 'scoped memory for tpu_custom_call.1']
    #allocation6 [shape = 's32[2]{0}', space=sflag, size = 0x8, scoped, tag = 'scoped memory for tpu_custom_call.1']
    #allocation7 [shape = 'u8[131072]{0}', space=vmem, size = 0x20000, scoped, tag = 'input window, operand 1']
    #allocation8 [shape = 's32[2]{0}', space=sflag, size = 0x8, scoped, tag = 'scoped memory for tpu_custom_call.1']
    #allocation9 [shape = 'u8[98304]{0}', space=vmem, size = 0x18000, scoped, tag = 'input window, operand 2, single buffered']
    #allocation10 [shape = 'u8[98304]{0}', space=vmem, size = 0x18000, scoped, tag = 'input window, operand 4, single buffered']
    #allocation11 [shape = 's32[1]{0}', space=sflag, size = 0x4, scoped, tag = 'scoped memory for tpu_custom_call.1']
    #allocation12 [shape = 'u8[32768]{0}', space=vmem, size = 0x8000, scoped, tag = 'input window, operand 6, single buffered']
    #allocation13 [shape = 'u8[32768]{0}', space=vmem, size = 0x8000, scoped, tag = 'input window, operand 8, single buffered']
    #allocation14 [shape = 's32[1]{0}', space=sflag, size = 0x4, scoped, tag = 'scoped memory for tpu_custom_call.1']
    #allocation15 [shape = 'u8[131072]{0}', space=vmem, size = 0x20000, scoped, tag = 'output window, operand 0']
    #allocation16 [shape = 'u8[131072]{0}', space=vmem, size = 0x20000, scoped, tag = 'output window, operand 1']
    #allocation17 [shape = 's32[2]{0}', space=sflag, size = 0x8, scoped, tag = 'scoped memory for tpu_custom_call.1']
    %17 = vsyncpa [#allocation5], 0
    %s18 = scalar_lea.sflag [#allocation5], 1
    %19 = vsyncpa %s18, 0
    %20 = vsyncpa [#allocation8], 0
    %s21 = scalar_lea.sflag [#allocation8], 1
    %22 = vsyncpa %s21, 0
    %23 = vsyncpa [#allocation11], 0
    %24 = vsyncpa [#allocation14], 0
    %25 = vsyncpa [#allocation6], 0
    %s26 = scalar_lea.sflag [#allocation6], 1
    %27 = vsyncpa %s26, 0
    %28 = vsyncpa [#allocation17], 0
    %s29 = scalar_lea.sflag [#allocation17], 1
    %30 = vsyncpa %s29, 0
    loop: start=0, step=1, limit=4
    $region2: #{tpu_custom_call.1} parent=1 // loop_pre_header
      _
    $region3: #{tpu_custom_call.1} parent=1 // loop_header
      %s32 = sphi 0, %s36
      %p33 = scmp.ge.s32.totalorder %s32, 4
      %s39 = sphi 0, %s51
      %s40 = sphi 0, %s47
      %s41 = sphi 0, %s39
      %s42 = sphi 0, %s40
      %s43 = sphi 0, %s41
      %s44 = sphi 0, %s42
      %s54 = sphi 0, %s56
      %s57 = sphi 0, %s54
      %s58 = sphi 0, %s57
      %s74 = sphi 0, %s58
      %s80 = sphi 0, %s82
      %s83 = sphi 0, %s80
      %s84 = sphi 0, %s83
      %s100 = sphi 0, %s84
      %s104 = sphi 0, %s104
      %s106 = sphi 0, %s104
      %s107 = sphi 0, %s106
      %s121 = sphi 0, %s107
      %s125 = sphi 0, %s125
      %s127 = sphi 0, %s125
      %s128 = sphi 0, %s127
      %s142 = sphi 0, %s128
      %s146 = sphi 0, %s146
      %s148 = sphi 0, %s146
      %s149 = sphi 0, %s148
      %s163 = sphi 0, %s149
      %s167 = sphi 0, %s167
      %s169 = sphi 0, %s167
      %s170 = sphi 0, %s169
      %s184 = sphi 0, %s170
      %s188 = sphi 0, %s188
      %s190 = sphi 0, %s188
      %s191 = sphi 0, %s190
      %s205 = sphi 0, %s191
      %s209 = sphi 0, %s209
      %s211 = sphi 0, %s209
      %s212 = sphi 0, %s211
      %s226 = sphi 0, %s212
      %s230 = sphi 0, %s230
      %s232 = sphi 0, %s230
      %s233 = sphi 0, %s232
      %s247 = sphi 0, %s233
      %s251 = sphi 0, %s251
      %s253 = sphi 0, %s251
      %s254 = sphi 0, %s253
      %s268 = sphi 0, %s254
      %s276 = sphi 0, %s278
      %s279 = sphi 0, %s276
      %s280 = sphi 0, %s279
      %s296 = sphi 0, %s280
      %s304 = sphi 0, %s306
      %s307 = sphi 0, %s304
      %s308 = sphi 0, %s307
      %s324 = sphi 0, %s308
    $region4: #{tpu_custom_call.1} parent=1 // loop_header_branch
      %35 = sbr.rel (%p33) target = $region8
    $region5: #{tpu_custom_call.1} parent=1 // loop_body
      %s37 = ssub.s32 %s32, 1
      %s38 = ssub.s32 %s32, 2
      %s45 = sadd.s32 1, %s40
      %p46 = scmp.ge.s32.totalorder %s45, 1
      %s47 = scalar_select %p46, 0, %s45
      %s48 = sadd.s32 1, %s39
      %s49 = scalar_select %p46, %s48, %s39
      %p50 = scmp.ge.s32.totalorder %s49, 2
      %s51 = scalar_select %p50, 0, %s49
      %s52 = ssub.s32 %s39, %s51
      %p53 = scmp.eq.s32.totalorder %s52, 0
      %s55 = sadd.s32 %s54, 1
      %s56 = scalar_select %p53, %s54, %s55
      %p59 = pneg %p53
      %p60 = scmp.eq.s32.totalorder %s32, 1
      %p61 = por %p59, %p60
      %p62 = scmp.ne.s32.totalorder %s54, %s57
      %p63 = scmp.eq.s32.totalorder %s32, 0
      %p64 = por %p62, %p63
      %p65 = scmp.ne.s32.totalorder %s54, %s57
      %p66 = scmp.eq.s32.totalorder %s37, 1
      %p67 = por %p65, %p66
      %p68 = scmp.ne.s32.totalorder %s57, %s58
      %p69 = scmp.eq.s32.totalorder %s37, 0
      %p70 = por %p68, %p69
      %p71 = scmp.ne.s32.totalorder %s57, %s58
      %p72 = scmp.eq.s32.totalorder %s38, 1
      %p73 = por %p71, %p72
      %p75 = scmp.ne.s32.totalorder %s58, %s74
      %p76 = scmp.eq.s32.totalorder %s38, 0
      %p77 = por %p75, %p76
      %s78 = ssub.s32 %s39, %s51
      %p79 = scmp.eq.s32.totalorder %s78, 0
      %s81 = sadd.s32 %s80, 1
      %s82 = scalar_select %p79, %s80, %s81
      %p85 = pneg %p79
      %p86 = scmp.eq.s32.totalorder %s32, 1
      %p87 = por %p85, %p86
      %p88 = scmp.ne.s32.totalorder %s80, %s83
      %p89 = scmp.eq.s32.totalorder %s32, 0
      %p90 = por %p88, %p89
      %p91 = scmp.ne.s32.totalorder %s80, %s83
      %p92 = scmp.eq.s32.totalorder %s37, 1
      %p93 = por %p91, %p92
      %p94 = scmp.ne.s32.totalorder %s83, %s84
      %p95 = scmp.eq.s32.totalorder %s37, 0
      %p96 = por %p94, %p95
      %p97 = scmp.ne.s32.totalorder %s83, %s84
      %p98 = scmp.eq.s32.totalorder %s38, 1
      %p99 = por %p97, %p98
      %p101 = scmp.ne.s32.totalorder %s84, %s100
      %p102 = scmp.eq.s32.totalorder %s38, 0
      %p103 = por %p101, %p102
      %s105 = sadd.s32 %s104, 1
      %p108 = scmp.eq.s32.totalorder %s32, 1
      %p109 = scmp.ne.s32.totalorder %s104, %s106
      %p110 = scmp.eq.s32.totalorder %s32, 0
      %p111 = por %p109, %p110
      %p112 = scmp.ne.s32.totalorder %s104, %s106
      %p113 = scmp.eq.s32.totalorder %s37, 1
      %p114 = por %p112, %p113
      %p115 = scmp.ne.s32.totalorder %s106, %s107
      %p116 = scmp.eq.s32.totalorder %s37, 0
      %p117 = por %p115, %p116
      %p118 = scmp.ne.s32.totalorder %s106, %s107
      %p119 = scmp.eq.s32.totalorder %s38, 1
      %p120 = por %p118, %p119
      %p122 = scmp.ne.s32.totalorder %s107, %s121
      %p123 = scmp.eq.s32.totalorder %s38, 0
      %p124 = por %p122, %p123
      %s126 = sadd.s32 %s125, 1
      %p129 = scmp.eq.s32.totalorder %s32, 1
      %p130 = scmp.ne.s32.totalorder %s125, %s127
      %p131 = scmp.eq.s32.totalorder %s32, 0
      %p132 = por %p130, %p131
      %p133 = scmp.ne.s32.totalorder %s125, %s127
      %p134 = scmp.eq.s32.totalorder %s37, 1
      %p135 = por %p133, %p134
      %p136 = scmp.ne.s32.totalorder %s127, %s128
      %p137 = scmp.eq.s32.totalorder %s37, 0
      %p138 = por %p136, %p137
      %p139 = scmp.ne.s32.totalorder %s127, %s128
      %p140 = scmp.eq.s32.totalorder %s38, 1
      %p141 = por %p139, %p140
      %p143 = scmp.ne.s32.totalorder %s128, %s142
      %p144 = scmp.eq.s32.totalorder %s38, 0
      %p145 = por %p143, %p144
      %s147 = sadd.s32 %s146, 1
      %p150 = scmp.eq.s32.totalorder %s32, 1
      %p151 = scmp.ne.s32.totalorder %s146, %s148
      %p152 = scmp.eq.s32.totalorder %s32, 0
      %p153 = por %p151, %p152
      %p154 = scmp.ne.s32.totalorder %s146, %s148
      %p155 = scmp.eq.s32.totalorder %s37, 1
      %p156 = por %p154, %p155
      %p157 = scmp.ne.s32.totalorder %s148, %s149
      %p158 = scmp.eq.s32.totalorder %s37, 0
      %p159 = por %p157, %p158
      %p160 = scmp.ne.s32.totalorder %s148, %s149
      %p161 = scmp.eq.s32.totalorder %s38, 1
      %p162 = por %p160, %p161
      %p164 = scmp.ne.s32.totalorder %s149, %s163
      %p165 = scmp.eq.s32.totalorder %s38, 0
      %p166 = por %p164, %p165
      %s168 = sadd.s32 %s167, 1
      %p171 = scmp.eq.s32.totalorder %s32, 1
      %p172 = scmp.ne.s32.totalorder %s167, %s169
      %p173 = scmp.eq.s32.totalorder %s32, 0
      %p174 = por %p172, %p173
      %p175 = scmp.ne.s32.totalorder %s167, %s169
      %p176 = scmp.eq.s32.totalorder %s37, 1
      %p177 = por %p175, %p176
      %p178 = scmp.ne.s32.totalorder %s169, %s170
      %p179 = scmp.eq.s32.totalorder %s37, 0
      %p180 = por %p178, %p179
      %p181 = scmp.ne.s32.totalorder %s169, %s170
      %p182 = scmp.eq.s32.totalorder %s38, 1
      %p183 = por %p181, %p182
      %p185 = scmp.ne.s32.totalorder %s170, %s184
      %p186 = scmp.eq.s32.totalorder %s38, 0
      %p187 = por %p185, %p186
      %s189 = sadd.s32 %s188, 1
      %p192 = scmp.eq.s32.totalorder %s32, 1
      %p193 = scmp.ne.s32.totalorder %s188, %s190
      %p194 = scmp.eq.s32.totalorder %s32, 0
      %p195 = por %p193, %p194
      %p196 = scmp.ne.s32.totalorder %s188, %s190
      %p197 = scmp.eq.s32.totalorder %s37, 1
      %p198 = por %p196, %p197
      %p199 = scmp.ne.s32.totalorder %s190, %s191
      %p200 = scmp.eq.s32.totalorder %s37, 0
      %p201 = por %p199, %p200
      %p202 = scmp.ne.s32.totalorder %s190, %s191
      %p203 = scmp.eq.s32.totalorder %s38, 1
      %p204 = por %p202, %p203
      %p206 = scmp.ne.s32.totalorder %s191, %s205
      %p207 = scmp.eq.s32.totalorder %s38, 0
      %p208 = por %p206, %p207
      %s210 = sadd.s32 %s209, 1
      %p213 = scmp.eq.s32.totalorder %s32, 1
      %p214 = scmp.ne.s32.totalorder %s209, %s211
      %p215 = scmp.eq.s32.totalorder %s32, 0
      %p216 = por %p214, %p215
      %p217 = scmp.ne.s32.totalorder %s209, %s211
      %p218 = scmp.eq.s32.totalorder %s37, 1
      %p219 = por %p217, %p218
      %p220 = scmp.ne.s32.totalorder %s211, %s212
      %p221 = scmp.eq.s32.totalorder %s37, 0
      %p222 = por %p220, %p221
      %p223 = scmp.ne.s32.totalorder %s211, %s212
      %p224 = scmp.eq.s32.totalorder %s38, 1
      %p225 = por %p223, %p224
      %p227 = scmp.ne.s32.totalorder %s212, %s226
      %p228 = scmp.eq.s32.totalorder %s38, 0
      %p229 = por %p227, %p228
      %s231 = sadd.s32 %s230, 1
      %p234 = scmp.eq.s32.totalorder %s32, 1
      %p235 = scmp.ne.s32.totalorder %s230, %s232
      %p236 = scmp.eq.s32.totalorder %s32, 0
      %p237 = por %p235, %p236
      %p238 = scmp.ne.s32.totalorder %s230, %s232
      %p239 = scmp.eq.s32.totalorder %s37, 1
      %p240 = por %p238, %p239
      %p241 = scmp.ne.s32.totalorder %s232, %s233
      %p242 = scmp.eq.s32.totalorder %s37, 0
      %p243 = por %p241, %p242
      %p244 = scmp.ne.s32.totalorder %s232, %s233
      %p245 = scmp.eq.s32.totalorder %s38, 1
      %p246 = por %p244, %p245
      %p248 = scmp.ne.s32.totalorder %s233, %s247
      %p249 = scmp.eq.s32.totalorder %s38, 0
      %p250 = por %p248, %p249
      %s252 = sadd.s32 %s251, 1
      %p255 = scmp.eq.s32.totalorder %s32, 1
      %p256 = scmp.ne.s32.totalorder %s251, %s253
      %p257 = scmp.eq.s32.totalorder %s32, 0
      %p258 = por %p256, %p257
      %p259 = scmp.ne.s32.totalorder %s251, %s253
      %p260 = scmp.eq.s32.totalorder %s37, 1
      %p261 = por %p259, %p260
      %p262 = scmp.ne.s32.totalorder %s253, %s254
      %p263 = scmp.eq.s32.totalorder %s37, 0
      %p264 = por %p262, %p263
      %p265 = scmp.ne.s32.totalorder %s253, %s254
      %p266 = scmp.eq.s32.totalorder %s38, 1
      %p267 = por %p265, %p266
      %p269 = scmp.ne.s32.totalorder %s254, %s268
      %p270 = scmp.eq.s32.totalorder %s38, 0
      %p271 = por %p269, %p270
      %s272 = ssub.s32 %s39, %s51
      %s273 = ssub.s32 %s40, %s47
      %s274 = sor.u32 %s272, %s273
      %p275 = scmp.eq.s32.totalorder %s274, 0
      %s277 = sadd.s32 %s276, 1
      %s278 = scalar_select %p275, %s276, %s277
      %p281 = pneg %p275
      %p282 = scmp.eq.s32.totalorder %s32, 1
      %p283 = por %p281, %p282
      %p284 = scmp.ne.s32.totalorder %s276, %s279
      %p285 = scmp.eq.s32.totalorder %s32, 0
      %p286 = por %p284, %p285
      %p287 = scmp.ne.s32.totalorder %s276, %s279
      %p288 = scmp.eq.s32.totalorder %s37, 1
      %p289 = por %p287, %p288
      %p290 = scmp.ne.s32.totalorder %s279, %s280
      %p291 = scmp.eq.s32.totalorder %s37, 0
      %p292 = por %p290, %p291
      %p293 = scmp.ne.s32.totalorder %s279, %s280
      %p294 = scmp.eq.s32.totalorder %s38, 1
      %p295 = por %p293, %p294
      %p297 = scmp.ne.s32.totalorder %s280, %s296
      %p298 = scmp.eq.s32.totalorder %s38, 0
      %p299 = por %p297, %p298
      %s300 = ssub.s32 %s39, %s51
      %s301 = ssub.s32 %s40, %s47
      %s302 = sor.u32 %s300, %s301
      %p303 = scmp.eq.s32.totalorder %s302, 0
      %s305 = sadd.s32 %s304, 1
      %s306 = scalar_select %p303, %s304, %s305
      %p309 = pneg %p303
      %p310 = scmp.eq.s32.totalorder %s32, 1
      %p311 = por %p309, %p310
      %p312 = scmp.ne.s32.totalorder %s304, %s307
      %p313 = scmp.eq.s32.totalorder %s32, 0
      %p314 = por %p312, %p313
      %p315 = scmp.ne.s32.totalorder %s304, %s307
      %p316 = scmp.eq.s32.totalorder %s37, 1
      %p317 = por %p315, %p316
      %p318 = scmp.ne.s32.totalorder %s307, %s308
      %p319 = scmp.eq.s32.totalorder %s37, 0
      %p320 = por %p318, %p319
      %p321 = scmp.ne.s32.totalorder %s307, %s308
      %p322 = scmp.eq.s32.totalorder %s38, 1
      %p323 = por %p321, %p322
      %p325 = scmp.ne.s32.totalorder %s308, %s324
      %p326 = scmp.eq.s32.totalorder %s38, 0
      %p327 = por %p325, %p326
      %p328 = scmp.le.s32.totalorder 1, %s32
      %p329 = scmp.lt.s32.totalorder %s32, 3
      %p330 = pnand %p328, %p329
      %p331 = pneg %p330
      // Predicated region
      $region9: #{tpu_custom_call.1} parent=5 // pred_check
        _
      $region10: #{tpu_custom_call.1} parent=5 // pred_check_branch
        %333 = sbr.rel (%p330) target = $region12
      $region11: #{tpu_custom_call.1} parent=5 // pred_region
        %s334 = ssub.s32 %s32, 1
        // Predicated region
        $region13: #{tpu_custom_call.1} parent=11 // pred_check
          %p335 = pneg %p117
        $region14: #{tpu_custom_call.1} parent=11 // pred_check_branch
          %337 = sbr.rel (%p335) target = $region16
        $region15: #{tpu_custom_call.1} parent=11 // pred_region
          %s339 = ssub.s32 3072, 3072
          %340 = vsyncadd [#allocation8], %s339
          %s341 = sshll.u32 [#allocation9], 4
          %s342 = int_to_ptr.vmem [resolvable:$true] %s341
          %347 = dma.hbm_to_vmem [thread:$0]  %s2, 3072, %s342, [#allocation8], 192, 192, 12
        $region16: #{tpu_custom_call.1} parent=11 // pred_fallthru
          _
        // Predicated region
        $region17: #{tpu_custom_call.1} parent=11 // pred_check
          %p348 = pneg %p138
        $region18: #{tpu_custom_call.1} parent=11 // pred_check_branch
          %350 = sbr.rel (%p348) target = $region20
        $region19: #{tpu_custom_call.1} parent=11 // pred_region
          _
        $region20: #{tpu_custom_call.1} parent=11 // pred_fallthru
          _
        // Predicated region
        $region21: #{tpu_custom_call.1} parent=11 // pred_check
          %p351 = pneg %p159
        $region22: #{tpu_custom_call.1} parent=11 // pred_check_branch
          %353 = sbr.rel (%p351) target = $region24
        $region23: #{tpu_custom_call.1} parent=11 // pred_region
          %s355 = ssub.s32 3072, 3072
          %356 = vsyncadd [#allocation11], %s355
          %s357 = sshll.u32 [#allocation10], 4
          %s358 = int_to_ptr.vmem [resolvable:$true] %s357
          %363 = dma.hbm_to_vmem [thread:$0]  %s4, 3072, %s358, [#allocation11], 192, 192, 12
        $region24: #{tpu_custom_call.1} parent=11 // pred_fallthru
          _
        // Predicated region
        $region25: #{tpu_custom_call.1} parent=11 // pred_check
          %p364 = pneg %p180
        $region26: #{tpu_custom_call.1} parent=11 // pred_check_branch
          %366 = sbr.rel (%p364) target = $region28
        $region27: #{tpu_custom_call.1} parent=11 // pred_region
          _
        $region28: #{tpu_custom_call.1} parent=11 // pred_fallthru
          _
        // Predicated region
        $region29: #{tpu_custom_call.1} parent=11 // pred_check
          %p367 = pneg %p201
        $region30: #{tpu_custom_call.1} parent=11 // pred_check_branch
          %369 = sbr.rel (%p367) target = $region32
        $region31: #{tpu_custom_call.1} parent=11 // pred_region
          %s371 = ssub.s32 1024, 1024
          %372 = vsyncadd [#allocation11], %s371
          %s373 = sshll.u32 [#allocation12], 4
          %s374 = int_to_ptr.vmem [resolvable:$true] %s373
          %379 = dma.hbm_to_vmem [thread:$0]  %s6, 1024, %s374, [#allocation11], 64, 64, 4
        $region32: #{tpu_custom_call.1} parent=11 // pred_fallthru
          _
        // Predicated region
        $region33: #{tpu_custom_call.1} parent=11 // pred_check
          %p380 = pneg %p222
        $region34: #{tpu_custom_call.1} parent=11 // pred_check_branch
          %382 = sbr.rel (%p380) target = $region36
        $region35: #{tpu_custom_call.1} parent=11 // pred_region
          _
        $region36: #{tpu_custom_call.1} parent=11 // pred_fallthru
          _
        // Predicated region
        $region37: #{tpu_custom_call.1} parent=11 // pred_check
          %p383 = pneg %p243
        $region38: #{tpu_custom_call.1} parent=11 // pred_check_branch
          %385 = sbr.rel (%p383) target = $region40
        $region39: #{tpu_custom_call.1} parent=11 // pred_region
          %s387 = ssub.s32 1024, 1024
          %388 = vsyncadd [#allocation14], %s387
          %s389 = sshll.u32 [#allocation13], 4
          %s390 = int_to_ptr.vmem [resolvable:$true] %s389
          %395 = dma.hbm_to_vmem [thread:$0]  %s8, 1024, %s390, [#allocation14], 64, 64, 4
        $region40: #{tpu_custom_call.1} parent=11 // pred_fallthru
          _
        // Predicated region
        $region41: #{tpu_custom_call.1} parent=11 // pred_check
          %p396 = pneg %p264
        $region42: #{tpu_custom_call.1} parent=11 // pred_check_branch
          %398 = sbr.rel (%p396) target = $region44
        $region43: #{tpu_custom_call.1} parent=11 // pred_region
          _
        $region44: #{tpu_custom_call.1} parent=11 // pred_fallthru
          _
      $region12: #{tpu_custom_call.1} parent=5 // pred_fallthru
        _
      %p399 = scmp.lt.s32.totalorder %s32, 2
      // Predicated region
      $region45: #{tpu_custom_call.1} parent=5 // pred_check
        %p400 = pneg %p399
      $region46: #{tpu_custom_call.1} parent=5 // pred_check_branch
        %402 = sbr.rel (%p400) target = $region48
      $region47: #{tpu_custom_call.1} parent=5 // pred_region
        // Predicated region
        $region49: #{tpu_custom_call.1} parent=47 // pred_check
          %p403 = pneg %p64
        $region50: #{tpu_custom_call.1} parent=47 // pred_check_branch
          %405 = sbr.rel (%p403) target = $region52
        $region51: #{tpu_custom_call.1} parent=47 // pred_region
          %s406 = sand.u32 %s54, 1
          %s407 = scalar_lea.sflag [#allocation5], %s406
          %s408 = sand.u32 %s54, 1
          %s409 = smul.addr %s408, 128
          %s410 = scalar_lea.vmem [#allocation4], %s409
          %s412 = ssub.s32 2048, 2048
          %413 = vsyncadd %s407, %s412
          %s414 = smul.addr %s39, 32
          %s415 = smul.addr %s414, 64
          %s416 = scalar_lea.hbm %s0, %s415
          %s417 = sshll.u32 %s410, 4
          %s418 = int_to_ptr.vmem [resolvable:$true] %s417
          %423 = dma.hbm_to_vmem [thread:$0]  %s416, 2048, %s418, %s407, 64, 64, 4
        $region52: #{tpu_custom_call.1} parent=47 // pred_fallthru
          _
        // Predicated region
        $region53: #{tpu_custom_call.1} parent=47 // pred_check
          %p424 = pneg %p90
        $region54: #{tpu_custom_call.1} parent=47 // pred_check_branch
          %426 = sbr.rel (%p424) target = $region56
        $region55: #{tpu_custom_call.1} parent=47 // pred_region
          %s427 = sand.u32 %s32, 1
          %s428 = scalar_lea.sflag [#allocation8], %s427
          %s429 = sand.u32 %s80, 1
          %s430 = smul.addr %s429, 128
          %s431 = scalar_lea.vmem [#allocation7], %s430
          %s433 = ssub.s32 2048, 2048
          %434 = vsyncadd %s428, %s433
          %s435 = smul.addr %s39, 32
          %s436 = smul.addr %s435, 64
          %s437 = scalar_lea.hbm %s1, %s436
          %s438 = sshll.u32 %s431, 4
          %s439 = int_to_ptr.vmem [resolvable:$true] %s438
          %444 = dma.hbm_to_vmem [thread:$0]  %s437, 2048, %s439, %s428, 64, 64, 4
        $region56: #{tpu_custom_call.1} parent=47 // pred_fallthru
          _
      $region48: #{tpu_custom_call.1} parent=5 // pred_fallthru
        _
      %p445 = scmp.le.s32.totalorder 1, %s32
      %p446 = scmp.lt.s32.totalorder %s32, 3
      %p447 = pnand %p445, %p446
      %p448 = pneg %p447
      // Predicated region
      $region57: #{tpu_custom_call.1} parent=5 // pred_check
        _
      $region58: #{tpu_custom_call.1} parent=5 // pred_check_branch
        %450 = sbr.rel (%p447) target = $region60
      $region59: #{tpu_custom_call.1} parent=5 // pred_region
        %s451 = ssub.s32 %s32, 1
        %s452 = sand.u32 %s57, 1
        %s453 = scalar_lea.sflag [#allocation5], %s452
        %s454 = sand.u32 %s57, 1
        %s455 = smul.addr %s454, 128
        %s456 = scalar_lea.vmem [#allocation4], %s455
        // Predicated region
        $region61: #{tpu_custom_call.1} parent=59 // pred_check
          %p457 = pneg %p70
        $region62: #{tpu_custom_call.1} parent=59 // pred_check_branch
          %459 = sbr.rel (%p457) target = $region64
        $region63: #{tpu_custom_call.1} parent=59 // pred_region
          %460 = dma.done %s453, 2048
        $region64: #{tpu_custom_call.1} parent=59 // pred_fallthru
          _
        %s461 = sand.u32 %s37, 1
        %s462 = scalar_lea.sflag [#allocation8], %s461
        %s463 = sand.u32 %s83, 1
        %s464 = smul.addr %s463, 128
        %s465 = scalar_lea.vmem [#allocation7], %s464
        // Predicated region
        $region65: #{tpu_custom_call.1} parent=59 // pred_check
          %p466 = pneg %p96
        $region66: #{tpu_custom_call.1} parent=59 // pred_check_branch
          %468 = sbr.rel (%p466) target = $region68
        $region67: #{tpu_custom_call.1} parent=59 // pred_region
          %469 = dma.done %s462, 2048
        $region68: #{tpu_custom_call.1} parent=59 // pred_fallthru
          _
        // Predicated region
        $region69: #{tpu_custom_call.1} parent=59 // pred_check
          %p470 = pneg %p117
        $region70: #{tpu_custom_call.1} parent=59 // pred_check_branch
          %472 = sbr.rel (%p470) target = $region72
        $region71: #{tpu_custom_call.1} parent=59 // pred_region
          %473 = dma.done [#allocation8], 3072
        $region72: #{tpu_custom_call.1} parent=59 // pred_fallthru
          _
        // Predicated region
        $region73: #{tpu_custom_call.1} parent=59 // pred_check
          %p474 = pneg %p159
        $region74: #{tpu_custom_call.1} parent=59 // pred_check_branch
          %476 = sbr.rel (%p474) target = $region76
        $region75: #{tpu_custom_call.1} parent=59 // pred_region
          %477 = dma.done [#allocation11], 3072
        $region76: #{tpu_custom_call.1} parent=59 // pred_fallthru
          _
        // Predicated region
        $region77: #{tpu_custom_call.1} parent=59 // pred_check
          %p478 = pneg %p201
        $region78: #{tpu_custom_call.1} parent=59 // pred_check_branch
          %480 = sbr.rel (%p478) target = $region80
        $region79: #{tpu_custom_call.1} parent=59 // pred_region
          %481 = dma.done [#allocation11], 1024
        $region80: #{tpu_custom_call.1} parent=59 // pred_fallthru
          _
        // Predicated region
        $region81: #{tpu_custom_call.1} parent=59 // pred_check
          %p482 = pneg %p243
        $region82: #{tpu_custom_call.1} parent=59 // pred_check_branch
          %484 = sbr.rel (%p482) target = $region84
        $region83: #{tpu_custom_call.1} parent=59 // pred_region
          %485 = dma.done [#allocation14], 1024
        $region84: #{tpu_custom_call.1} parent=59 // pred_fallthru
          _
        %s486 = sand.u32 %s57, 1
        %s487 = scalar_lea.sflag [#allocation5], %s486
        %s488 = sand.u32 %s57, 1
        %s489 = smul.addr %s488, 128
        %s490 = scalar_lea.vmem [#allocation4], %s489
        %p491 = pneg %p70
        %p492 = pneg %p67
        %s493 = sand.u32 %s37, 1
        %s494 = scalar_lea.sflag [#allocation8], %s493
        %s495 = sand.u32 %s83, 1
        %s496 = smul.addr %s495, 128
        %s497 = scalar_lea.vmem [#allocation7], %s496
        %p498 = pneg %p96
        %p499 = pneg %p93
        %p500 = pneg %p117
        %p501 = pneg %p114
        %p502 = pneg %p138
        %p503 = pneg %p135
        %p504 = pneg %p159
        %p505 = pneg %p156
        %p506 = pneg %p180
        %p507 = pneg %p177
        %p508 = pneg %p201
        %p509 = pneg %p198
        %p510 = pneg %p222
        %p511 = pneg %p219
        %p512 = pneg %p243
        %p513 = pneg %p240
        %p514 = pneg %p264
        %p515 = pneg %p261
        %p516 = pneg %p292
        %p517 = pneg %p289
        %s518 = sand.u32 %s279, 1
        %s519 = scalar_lea.sflag [#allocation6], %s518
        %s520 = sand.u32 %s279, 1
        %s521 = smul.addr %s520, 128
        %s522 = scalar_lea.vmem [#allocation15], %s521
        %p523 = pneg %p320
        %p524 = pneg %p317
        %s525 = sand.u32 %s307, 1
        %s526 = scalar_lea.sflag [#allocation17], %s525
        %s527 = sand.u32 %s307, 1
        %s528 = smul.addr %s527, 128
        %s529 = scalar_lea.vmem [#allocation16], %s528
        %s530 = smul.u32 32, %s42
        %s531 = smul.u32 32, %s42
        %p533 = scmp.eq.s32.totalorder %s42, 0
        // Predicated region
        $region85: #{tpu_custom_call.1} parent=59 // pred_check
          %p534 = pneg %p533
        $region86: #{tpu_custom_call.1} parent=59 // pred_check_branch
          %536 = sbr.rel (%p534) target = $region88
        $region87: #{tpu_custom_call.1} parent=59 // pred_region
          %v537 = vld [vmem:[%s456] sm:$0xf]
          %v538 = vld [vmem:[%s456 + $0x4] sm:$0xf]
          %v539 = vld [vmem:[%s456 + $0x8] sm:$0xf]
          %v540 = vld [vmem:[%s456 + $0xc] sm:$0xf]
          %v541 = vld [vmem:[%s456 + $0x10] sm:$0xf]
          %v542 = vld [vmem:[%s456 + $0x14] sm:$0xf]
          %v543 = vld [vmem:[%s456 + $0x18] sm:$0xf]
          %v544 = vld [vmem:[%s456 + $0x1c] sm:$0xf]
          %v545 = vld [vmem:[%s456 + $0x20] sm:$0xf]
          %v546 = vld [vmem:[%s456 + $0x24] sm:$0xf]
          %v547 = vld [vmem:[%s456 + $0x28] sm:$0xf]
          %v548 = vld [vmem:[%s456 + $0x2c] sm:$0xf]
          %v549 = vld [vmem:[%s456 + $0x30] sm:$0xf]
          %v550 = vld [vmem:[%s456 + $0x34] sm:$0xf]
          %v551 = vld [vmem:[%s456 + $0x38] sm:$0xf]
          %v552 = vld [vmem:[%s456 + $0x3c] sm:$0xf]
          %v553 = vld [vmem:[%s456 + $0x40] sm:$0xf]
          %v554 = vld [vmem:[%s456 + $0x44] sm:$0xf]
          %v555 = vld [vmem:[%s456 + $0x48] sm:$0xf]
          %v556 = vld [vmem:[%s456 + $0x4c] sm:$0xf]
          %v557 = vld [vmem:[%s456 + $0x50] sm:$0xf]
          %v558 = vld [vmem:[%s456 + $0x54] sm:$0xf]
          %v559 = vld [vmem:[%s456 + $0x58] sm:$0xf]
          %v560 = vld [vmem:[%s456 + $0x5c] sm:$0xf]
          %v561 = vld [vmem:[%s456 + $0x60] sm:$0xf]
          %v562 = vld [vmem:[%s456 + $0x64] sm:$0xf]
          %v563 = vld [vmem:[%s456 + $0x68] sm:$0xf]
          %v564 = vld [vmem:[%s456 + $0x6c] sm:$0xf]
          %v565 = vld [vmem:[%s456 + $0x70] sm:$0xf]
          %v566 = vld [vmem:[%s456 + $0x74] sm:$0xf]
          %v567 = vld [vmem:[%s456 + $0x78] sm:$0xf]
          %v568 = vld [vmem:[%s456 + $0x7c] sm:$0xf]
          %v569 = vld [vmem:[%s465] sm:$0xf]
          %v570 = vld [vmem:[%s465 + $0x4] sm:$0xf]
          %v571 = vld [vmem:[%s465 + $0x8] sm:$0xf]
          %v572 = vld [vmem:[%s465 + $0xc] sm:$0xf]
          %v573 = vld [vmem:[%s465 + $0x10] sm:$0xf]
          %v574 = vld [vmem:[%s465 + $0x14] sm:$0xf]
          %v575 = vld [vmem:[%s465 + $0x18] sm:$0xf]
          %v576 = vld [vmem:[%s465 + $0x1c] sm:$0xf]
          %v577 = vld [vmem:[%s465 + $0x20] sm:$0xf]
          %v578 = vld [vmem:[%s465 + $0x24] sm:$0xf]
          %v579 = vld [vmem:[%s465 + $0x28] sm:$0xf]
          %v580 = vld [vmem:[%s465 + $0x2c] sm:$0xf]
          %v581 = vld [vmem:[%s465 + $0x30] sm:$0xf]
          %v582 = vld [vmem:[%s465 + $0x34] sm:$0xf]
          %v583 = vld [vmem:[%s465 + $0x38] sm:$0xf]
          %v584 = vld [vmem:[%s465 + $0x3c] sm:$0xf]
          %v585 = vld [vmem:[%s465 + $0x40] sm:$0xf]
          %v586 = vld [vmem:[%s465 + $0x44] sm:$0xf]
          %v587 = vld [vmem:[%s465 + $0x48] sm:$0xf]
          %v588 = vld [vmem:[%s465 + $0x4c] sm:$0xf]
          %v589 = vld [vmem:[%s465 + $0x50] sm:$0xf]
          %v590 = vld [vmem:[%s465 + $0x54] sm:$0xf]
          %v591 = vld [vmem:[%s465 + $0x58] sm:$0xf]
          %v592 = vld [vmem:[%s465 + $0x5c] sm:$0xf]
          %v593 = vld [vmem:[%s465 + $0x60] sm:$0xf]
          %v594 = vld [vmem:[%s465 + $0x64] sm:$0xf]
          %v595 = vld [vmem:[%s465 + $0x68] sm:$0xf]
          %v596 = vld [vmem:[%s465 + $0x6c] sm:$0xf]
          %v597 = vld [vmem:[%s465 + $0x70] sm:$0xf]
          %v598 = vld [vmem:[%s465 + $0x74] sm:$0xf]
          %v599 = vld [vmem:[%s465 + $0x78] sm:$0xf]
          %v600 = vld [vmem:[%s465 + $0x7c] sm:$0xf]
          %v601 = vld [vmem:[#allocation9] sm:$0xff]
          %v602 = vld [vmem:[#allocation9 + $0x8] sm:$0xf]
          %v603 = vld [vmem:[#allocation9 + $0xc] sm:$0xff]
          %v604 = vld [vmem:[#allocation9 + $0x14] sm:$0xf]
          %v605 = vld [vmem:[#allocation9 + $0x18] sm:$0xff]
          %v606 = vld [vmem:[#allocation9 + $0x20] sm:$0xf]
          %v607 = vld [vmem:[#allocation9 + $0x24] sm:$0xff]
          %v608 = vld [vmem:[#allocation9 + $0x2c] sm:$0xf]
          %v609 = vld [vmem:[#allocation9 + $0x30] sm:$0xff]
          %v610 = vld [vmem:[#allocation9 + $0x38] sm:$0xf]
          %v611 = vld [vmem:[#allocation9 + $0x3c] sm:$0xff]
          %v612 = vld [vmem:[#allocation9 + $0x44] sm:$0xf]
          %v613 = vld [vmem:[#allocation9 + $0x48] sm:$0xff]
          %v614 = vld [vmem:[#allocation9 + $0x50] sm:$0xf]
          %v615 = vld [vmem:[#allocation9 + $0x54] sm:$0xff]
          %v616 = vld [vmem:[#allocation9 + $0x5c] sm:$0xf]
          %v617 = vld [vmem:[#allocation9 + $0x60] sm:$0xff]
          %v618 = vld [vmem:[#allocation9 + $0x68] sm:$0xf]
          %v619 = vld [vmem:[#allocation9 + $0x6c] sm:$0xff]
          %v620 = vld [vmem:[#allocation9 + $0x74] sm:$0xf]
          %v621 = vld [vmem:[#allocation9 + $0x78] sm:$0xff]
          %v622 = vld [vmem:[#allocation9 + $0x80] sm:$0xf]
          %v623 = vld [vmem:[#allocation9 + $0x84] sm:$0xff]
          %v624 = vld [vmem:[#allocation9 + $0x8c] sm:$0xf]
          %v625 = vld [vmem:[#allocation9 + $0x90] sm:$0xff]
          %v626 = vld [vmem:[#allocation9 + $0x98] sm:$0xf]
          %v627 = vld [vmem:[#allocation9 + $0x9c] sm:$0xff]
          %v628 = vld [vmem:[#allocation9 + $0xa4] sm:$0xf]
          %v629 = vld [vmem:[#allocation9 + $0xa8] sm:$0xff]
          %v630 = vld [vmem:[#allocation9 + $0xb0] sm:$0xf]
          %v631 = vld [vmem:[#allocation9 + $0xb4] sm:$0xff]
          %v632 = vld [vmem:[#allocation9 + $0xbc] sm:$0xf]
          %v633 = vld [vmem:[%s3] sm:$0x7]
          %v635 = vlaneseq
          %v636 = vshrl.u32 %v635, 7
          %v637 = vsub.s32 0, %v636
          %v638 = vrot.slane %v633, %v637
          %v639 = vlaneseq
          %v640 = vshrl.u32 %v639, 7
          %v641 = vsub.s32 1, %v640
          %v642 = vrot.slane %v633, %v641
          %v643 = vlaneseq
          %v644 = vshrl.u32 %v643, 7
          %v645 = vsub.s32 2, %v644
          %v646 = vrot.slane %v633, %v645
          %v682 = vunpack.c.l.b16 %v537
          %v683 = vunpack.c.l.b16 %v538
          %v684 = vunpack.c.l.b16 %v539
          %v685 = vunpack.c.l.b16 %v540
          %v686 = vunpack.c.l.b16 %v541
          %v687 = vunpack.c.l.b16 %v542
          %v688 = vunpack.c.l.b16 %v543
          %v689 = vunpack.c.l.b16 %v544
          %v690 = vunpack.c.l.b16 %v545
          %v691 = vunpack.c.l.b16 %v546
          %v692 = vunpack.c.l.b16 %v547
          %v693 = vunpack.c.l.b16 %v548
          %v694 = vunpack.c.l.b16 %v549
          %v695 = vunpack.c.l.b16 %v550
          %v696 = vunpack.c.l.b16 %v551
          %v697 = vunpack.c.l.b16 %v552
          %v698 = vunpack.c.l.b16 %v553
          %v699 = vunpack.c.l.b16 %v554
          %v700 = vunpack.c.l.b16 %v555
          %v701 = vunpack.c.l.b16 %v556
          %v702 = vunpack.c.l.b16 %v557
          %v703 = vunpack.c.l.b16 %v558
          %v704 = vunpack.c.l.b16 %v559
          %v705 = vunpack.c.l.b16 %v560
          %v706 = vunpack.c.l.b16 %v561
          %v707 = vunpack.c.l.b16 %v562
          %v708 = vunpack.c.l.b16 %v563
          %v709 = vunpack.c.l.b16 %v564
          %v710 = vunpack.c.l.b16 %v565
          %v711 = vunpack.c.l.b16 %v566
          %v712 = vunpack.c.l.b16 %v567
          %v713 = vunpack.c.l.b16 %v568
          %v714 = vpack.c.b16 %v683, %v682
          %v715 = vpack.c.b16 %v685, %v684
          %v716 = vpack.c.b16 %v687, %v686
          %v717 = vpack.c.b16 %v689, %v688
          %v718 = vpack.c.b16 %v691, %v690
          %v719 = vpack.c.b16 %v693, %v692
          %v720 = vpack.c.b16 %v695, %v694
          %v721 = vpack.c.b16 %v697, %v696
          %v722 = vpack.c.b16 %v699, %v698
          %v723 = vpack.c.b16 %v701, %v700
          %v724 = vpack.c.b16 %v703, %v702
          %v725 = vpack.c.b16 %v705, %v704
          %v726 = vpack.c.b16 %v707, %v706
          %v727 = vpack.c.b16 %v709, %v708
          %v728 = vpack.c.b16 %v711, %v710
          %v729 = vpack.c.b16 %v713, %v712
          %v778 = vunpack.c.l.b16 %v601
          %v779 = vunpack.c.h.b16 %v601
          %v780 = vunpack.c.l.b16 %v602
          %v781 = vunpack.c.l.b16 %v603
          %v782 = vunpack.c.h.b16 %v603
          %v783 = vunpack.c.l.b16 %v604
          %v784 = vunpack.c.l.b16 %v605
          %v785 = vunpack.c.h.b16 %v605
          %v786 = vunpack.c.l.b16 %v606
          %v787 = vunpack.c.l.b16 %v607
          %v788 = vunpack.c.h.b16 %v607
          %v789 = vunpack.c.l.b16 %v608
          %v790 = vunpack.c.l.b16 %v609
          %v791 = vunpack.c.h.b16 %v609
          %v792 = vunpack.c.l.b16 %v610
          %v793 = vunpack.c.l.b16 %v611
          %v794 = vunpack.c.h.b16 %v611
          %v795 = vunpack.c.l.b16 %v612
          %v796 = vunpack.c.l.b16 %v613
          %v797 = vunpack.c.h.b16 %v613
          %v798 = vunpack.c.l.b16 %v614
          %v799 = vunpack.c.l.b16 %v615
          %v800 = vunpack.c.h.b16 %v615
          %v801 = vunpack.c.l.b16 %v616
          %v802 = vunpack.c.l.b16 %v617
          %v803 = vunpack.c.h.b16 %v617
          %v804 = vunpack.c.l.b16 %v618
          %v805 = vunpack.c.l.b16 %v619
          %v806 = vunpack.c.h.b16 %v619
          %v807 = vunpack.c.l.b16 %v620
          %v808 = vunpack.c.l.b16 %v621
          %v809 = vunpack.c.h.b16 %v621
          %v810 = vunpack.c.l.b16 %v622
          %v811 = vunpack.c.l.b16 %v623
          %v812 = vunpack.c.h.b16 %v623
          %v813 = vunpack.c.l.b16 %v624
          %v814 = vunpack.c.l.b16 %v625
          %v815 = vunpack.c.h.b16 %v625
          %v816 = vunpack.c.l.b16 %v626
          %v817 = vunpack.c.l.b16 %v627
          %v818 = vunpack.c.h.b16 %v627
          %v819 = vunpack.c.l.b16 %v628
          %v820 = vunpack.c.l.b16 %v629
          %v821 = vunpack.c.h.b16 %v629
          %v822 = vunpack.c.l.b16 %v630
          %v823 = vunpack.c.l.b16 %v631
          %v824 = vunpack.c.h.b16 %v631
          %v825 = vunpack.c.l.b16 %v632
          %v826 = vpack.c.b16 %v781, %v778
          %v827 = vpack.c.b16 %v782, %v779
          %v828 = vpack.c.b16 %v783, %v780
          %v829 = vpack.c.b16 %v787, %v784
          %v830 = vpack.c.b16 %v788, %v785
          %v831 = vpack.c.b16 %v789, %v786
          %v832 = vpack.c.b16 %v793, %v790
          %v833 = vpack.c.b16 %v794, %v791
          %v834 = vpack.c.b16 %v795, %v792
          %v835 = vpack.c.b16 %v799, %v796
          %v836 = vpack.c.b16 %v800, %v797
          %v837 = vpack.c.b16 %v801, %v798
          %v838 = vpack.c.b16 %v805, %v802
          %v839 = vpack.c.b16 %v806, %v803
          %v840 = vpack.c.b16 %v807, %v804
          %v841 = vpack.c.b16 %v811, %v808
          %v842 = vpack.c.b16 %v812, %v809
          %v843 = vpack.c.b16 %v813, %v810
          %v844 = vpack.c.b16 %v817, %v814
          %v845 = vpack.c.b16 %v818, %v815
          %v846 = vpack.c.b16 %v819, %v816
          %v847 = vpack.c.b16 %v823, %v820
          %v848 = vpack.c.b16 %v824, %v821
          %v849 = vpack.c.b16 %v825, %v822
          %874 = vmatprep.subr.bf16.mxu0 %v827
          %875 = vmatpush1.bf16.msra.mxu0 %v826
          %876 = vmatprep.subr.bf16.mxu0 %v830
          %877 = vmatpush1.bf16.msra.mxu0 %v829
          %878 = vmatprep.subr.bf16.mxu0 %v833
          %879 = vmatpush1.bf16.msra.mxu0 %v832
          %880 = vmatprep.subr.bf16.mxu0 %v836
          %881 = vmatpush1.bf16.msra.mxu0 %v835
          %882 = vmatprep.subr.bf16.mxu0 %v839
          %883 = vmatpush1.bf16.msra.mxu0 %v838
          %884 = vmatprep.subr.bf16.mxu0 %v842
          %885 = vmatpush1.bf16.msra.mxu0 %v841
          %886 = vmatprep.subr.bf16.mxu0 %v845
          %887 = vmatpush1.bf16.msra.mxu0 %v844
          %888 = vmatprep.subr.bf16.mxu0 %v848
          %889 = vmatpush1.bf16.msra.mxu0 %v847
          %890 = vmatprep.subr.bf16.mxu0 0
          %891 = vmatpush1.bf16.msra.mxu0 0
          %892 = vmatprep.subr.bf16.mxu0 0
          %893 = vmatpush1.bf16.msra.mxu0 0
          %894 = vmatprep.subr.bf16.mxu0 0
          %895 = vmatpush1.bf16.msra.mxu0 0
          %896 = vmatprep.subr.bf16.mxu0 0
          %897 = vmatpush1.bf16.msra.mxu0 0
          %898 = vmatprep.subr.bf16.mxu0 0
          %899 = vmatpush1.bf16.msra.mxu0 0
          %900 = vmatprep.subr.bf16.mxu0 0
          %901 = vmatpush1.bf16.msra.mxu0 0
          %902 = vmatprep.subr.bf16.mxu0 0
          %903 = vmatpush1.bf16.msra.mxu0 0
          %904 = vmatprep.subr.bf16.mxu0 0
          %905 = vmatpush1.bf16.msra.mxu0 0
          %906 = vmatprep.mubr.bf16.mxu0 0
          %907 = vmatmul.mubr.bf16.gmra.mrb[0].mxu0 %v714
          %v908 = vpop.f32.mrb[0].mxu0
          %v909 = vadd.f32 %v638, %v908
          %v910 = vpop.f32.mrb[0].mxu0
          %v911 = vadd.f32 %v642, %v910
          %v912 = vpop.f32.mrb[0].mxu0
          %v913 = vadd.f32 %v638, %v912
          %v914 = vpop.f32.mrb[0].mxu0
          %v915 = vadd.f32 %v642, %v914
          %916 = vmatprep.mubr.bf16.mxu0 0
          %917 = vmatmul.mubr.bf16.gmra.mrb[0].mxu0 %v715
          %v918 = vpop.f32.mrb[0].mxu0
          %v919 = vadd.f32 %v638, %v918
          %v920 = vpop.f32.mrb[0].mxu0
          %v921 = vadd.f32 %v642, %v920
          %v922 = vpop.f32.mrb[0].mxu0
          %v923 = vadd.f32 %v638, %v922
          %v924 = vpop.f32.mrb[0].mxu0
          %v925 = vadd.f32 %v642, %v924
          %926 = vmatprep.mubr.bf16.mxu0 0
          %927 = vmatmul.mubr.bf16.gmra.mrb[0].mxu0 %v716
          %v928 = vpop.f32.mrb[0].mxu0
          %v929 = vadd.f32 %v638, %v928
          %v930 = vpop.f32.mrb[0].mxu0
          %v931 = vadd.f32 %v642, %v930
          %v932 = vpop.f32.mrb[0].mxu0
          %v933 = vadd.f32 %v638, %v932
          %v934 = vpop.f32.mrb[0].mxu0
          %v935 = vadd.f32 %v642, %v934
          %936 = vmatprep.mubr.bf16.mxu0 0
          %937 = vmatmul.mubr.bf16.gmra.mrb[0].mxu0 %v717
          %v938 = vpop.f32.mrb[0].mxu0
          %v939 = vadd.f32 %v638, %v938
          %v940 = vpop.f32.mrb[0].mxu0
          %v941 = vadd.f32 %v642, %v940
          %v942 = vpop.f32.mrb[0].mxu0
          %v943 = vadd.f32 %v638, %v942
          %v944 = vpop.f32.mrb[0].mxu0
          %v945 = vadd.f32 %v642, %v944
          %946 = vmatprep.mubr.bf16.mxu0 0
          %947 = vmatmul.mubr.bf16.gmra.mrb[0].mxu0 %v718
          %v948 = vpop.f32.mrb[0].mxu0
          %v949 = vadd.f32 %v638, %v948
          %v950 = vpop.f32.mrb[0].mxu0
          %v951 = vadd.f32 %v642, %v950
          %v952 = vpop.f32.mrb[0].mxu0
          %v953 = vadd.f32 %v638, %v952
          %v954 = vpop.f32.mrb[0].mxu0
          %v955 = vadd.f32 %v642, %v954
          %956 = vmatprep.mubr.bf16.mxu0 0
          %957 = vmatmul.mubr.bf16.gmra.mrb[0].mxu0 %v719
          %v958 = vpop.f32.mrb[0].mxu0
          %v959 = vadd.f32 %v638, %v958
          %v960 = vpop.f32.mrb[0].mxu0
          %v961 = vadd.f32 %v642, %v960
          %v962 = vpop.f32.mrb[0].mxu0
          %v963 = vadd.f32 %v638, %v962
          %v964 = vpop.f32.mrb[0].mxu0
          %v965 = vadd.f32 %v642, %v964
          %966 = vmatprep.mubr.bf16.mxu0 0
          %967 = vmatmul.mubr.bf16.gmra.mrb[0].mxu0 %v720
          %v968 = vpop.f32.mrb[0].mxu0
          %v969 = vadd.f32 %v638, %v968
          %v970 = vpop.f32.mrb[0].mxu0
          %v971 = vadd.f32 %v642, %v970
          %v972 = vpop.f32.mrb[0].mxu0
          %v973 = vadd.f32 %v638, %v972
          %v974 = vpop.f32.mrb[0].mxu0
          %v975 = vadd.f32 %v642, %v974
          %976 = vmatprep.mubr.bf16.mxu0 0
          %977 = vmatmul.mubr.bf16.gmra.mrb[0].mxu0 %v721
          %v978 = vpop.f32.mrb[0].mxu0
          %v979 = vadd.f32 %v638, %v978
          %v980 = vpop.f32.mrb[0].mxu0
          %v981 = vadd.f32 %v642, %v980
          %v982 = vpop.f32.mrb[0].mxu0
          %v983 = vadd.f32 %v638, %v982
          %v984 = vpop.f32.mrb[0].mxu0
          %v985 = vadd.f32 %v642, %v984
          %986 = vmatprep.mubr.bf16.mxu0 0
          %987 = vmatmul.mubr.bf16.gmra.mrb[0].mxu0 %v722
          %v988 = vpop.f32.mrb[0].mxu0
          %v989 = vadd.f32 %v638, %v988
          %v990 = vpop.f32.mrb[0].mxu0
          %v991 = vadd.f32 %v642, %v990
          %v992 = vpop.f32.mrb[0].mxu0
          %v993 = vadd.f32 %v638, %v992
          %v994 = vpop.f32.mrb[0].mxu0
          %v995 = vadd.f32 %v642, %v994
          %996 = vmatprep.mubr.bf16.mxu0 0
          %997 = vmatmul.mubr.bf16.gmra.mrb[0].mxu0 %v723
          %v998 = vpop.f32.mrb[0].mxu0
          %v999 = vadd.f32 %v638, %v998
          %v1000 = vpop.f32.mrb[0].mxu0
          %v1001 = vadd.f32 %v642, %v1000
          %v1002 = vpop.f32.mrb[0].mxu0
          %v1003 = vadd.f32 %v638, %v1002
          %v1004 = vpop.f32.mrb[0].mxu0
          %v1005 = vadd.f32 %v642, %v1004
          %1006 = vmatprep.mubr.bf16.mxu0 0
          %1007 = vmatmul.mubr.bf16.gmra.mrb[0].mxu0 %v724
          %v1008 = vpop.f32.mrb[0].mxu0
          %v1009 = vadd.f32 %v638, %v1008
          %v1010 = vpop.f32.mrb[0].mxu0
          %v1011 = vadd.f32 %v642, %v1010
          %v1012 = vpop.f32.mrb[0].mxu0
          %v1013 = vadd.f32 %v638, %v1012
          %v1014 = vpop.f32.mrb[0].mxu0
          %v1015 = vadd.f32 %v642, %v1014
          %1016 = vmatprep.mubr.bf16.mxu0 0
          %1017 = vmatmul.mubr.bf16.gmra.mrb[0].mxu0 %v725
          %v1018 = vpop.f32.mrb[0].mxu0
          %v1019 = vadd.f32 %v638, %v1018
          %v1020 = vpop.f32.mrb[0].mxu0
          %v1021 = vadd.f32 %v642, %v1020
          %v1022 = vpop.f32.mrb[0].mxu0
          %v1023 = vadd.f32 %v638, %v1022
          %v1024 = vpop.f32.mrb[0].mxu0
          %v1025 = vadd.f32 %v642, %v1024
          %1026 = vmatprep.mubr.bf16.mxu0 0
          %1027 = vmatmul.mubr.bf16.gmra.mrb[0].mxu0 %v726
          %v1028 = vpop.f32.mrb[0].mxu0
          %v1029 = vadd.f32 %v638, %v1028
          %v1030 = vpop.f32.mrb[0].mxu0
          %v1031 = vadd.f32 %v642, %v1030
          %v1032 = vpop.f32.mrb[0].mxu0
          %v1033 = vadd.f32 %v638, %v1032
          %v1034 = vpop.f32.mrb[0].mxu0
          %v1035 = vadd.f32 %v642, %v1034
          %1036 = vmatprep.mubr.bf16.mxu0 0
          %1037 = vmatmul.mubr.bf16.gmra.mrb[0].mxu0 %v727
          %v1038 = vpop.f32.mrb[0].mxu0
          %v1039 = vadd.f32 %v638, %v1038
          %v1040 = vpop.f32.mrb[0].mxu0
          %v1041 = vadd.f32 %v642, %v1040
          %v1042 = vpop.f32.mrb[0].mxu0
          %v1043 = vadd.f32 %v638, %v1042
          %v1044 = vpop.f32.mrb[0].mxu0
          %v1045 = vadd.f32 %v642, %v1044
          %1046 = vmatprep.mubr.bf16.mxu0 0
          %1047 = vmatmul.mubr.bf16.gmra.mrb[0].mxu0 %v728
          %v1048 = vpop.f32.mrb[0].mxu0
          %v1049 = vadd.f32 %v638, %v1048
          %v1050 = vpop.f32.mrb[0].mxu0
          %v1051 = vadd.f32 %v642, %v1050
          %v1052 = vpop.f32.mrb[0].mxu0
          %v1053 = vadd.f32 %v638, %v1052
          %v1054 = vpop.f32.mrb[0].mxu0
          %v1055 = vadd.f32 %v642, %v1054
          %1056 = vmatprep.mubr.bf16.mxu0 0
          %1057 = vmatmul.mubr.bf16.gmra.mrb[0].mxu0 %v729
          %v1058 = vpop.f32.mrb[0].mxu0
          %v1059 = vadd.f32 %v638, %v1058
          %v1060 = vpop.f32.mrb[0].mxu0
          %v1061 = vadd.f32 %v642, %v1060
          %v1062 = vpop.f32.mrb[0].mxu0
          %v1063 = vadd.f32 %v638, %v1062
          %v1064 = vpop.f32.mrb[0].mxu0
          %v1065 = vadd.f32 %v642, %v1064
          %1066 = vdwg.mxu0
          %1067 = vmatprep.subr.bf16.mxu0 0
          %1068 = vmatpush1.bf16.msra.mxu0 %v828
          %1069 = vmatprep.subr.bf16.mxu0 0
          %1070 = vmatpush1.bf16.msra.mxu0 %v831
          %1071 = vmatprep.subr.bf16.mxu0 0
          %1072 = vmatpush1.bf16.msra.mxu0 %v834
          %1073 = vmatprep.subr.bf16.mxu0 0
          %1074 = vmatpush1.bf16.msra.mxu0 %v837
          %1075 = vmatprep.subr.bf16.mxu0 0
          %1076 = vmatpush1.bf16.msra.mxu0 %v840
          %1077 = vmatprep.subr.bf16.mxu0 0
          %1078 = vmatpush1.bf16.msra.mxu0 %v843
          %1079 = vmatprep.subr.bf16.mxu0 0
          %1080 = vmatpush1.bf16.msra.mxu0 %v846
          %1081 = vmatprep.subr.bf16.mxu0 0
          %1082 = vmatpush1.bf16.msra.mxu0 %v849
          %1083 = vmatprep.subr.bf16.mxu0 0
          %1084 = vmatpush1.bf16.msra.mxu0 0
          %1085 = vmatprep.subr.bf16.mxu0 0
          %1086 = vmatpush1.bf16.msra.mxu0 0
          %1087 = vmatprep.subr.bf16.mxu0 0
          %1088 = vmatpush1.bf16.msra.mxu0 0
          %1089 = vmatprep.subr.bf16.mxu0 0
          %1090 = vmatpush1.bf16.msra.mxu0 0
          %1091 = vmatprep.subr.bf16.mxu0 0
          %1092 = vmatpush1.bf16.msra.mxu0 0
          %1093 = vmatprep.subr.bf16.mxu0 0
          %1094 = vmatpush1.bf16.msra.mxu0 0
          %1095 = vmatprep.subr.bf16.mxu0 0
          %1096 = vmatpush1.bf16.msra.mxu0 0
          %1097 = vmatprep.subr.bf16.mxu0 0
          %1098 = vmatpush1.bf16.msra.mxu0 0
          %1099 = vmatprep.mubr.bf16.mxu0 0
          %1100 = vmatmul.mubr.bf16.gmra.mrb[0].mxu0 %v714
          %v1101 = vpop.f32.mrb[0].mxu0
          %v1102 = vadd.f32 %v646, %v1101
          %v1103 = vpop.f32.mrb[0].mxu0
          %v1104 = vpop.f32.mrb[0].mxu0
          %v1105 = vadd.f32 %v646, %v1104
          %v1106 = vpop.f32.mrb[0].mxu0
          %1107 = vmatprep.mubr.bf16.mxu0 0
          %1108 = vmatmul.mubr.bf16.gmra.mrb[0].mxu0 %v715
          %v1109 = vpop.f32.mrb[0].mxu0
          %v1110 = vadd.f32 %v646, %v1109
          %v1111 = vpop.f32.mrb[0].mxu0
          %v1112 = vpop.f32.mrb[0].mxu0
          %v1113 = vadd.f32 %v646, %v1112
          %v1114 = vpop.f32.mrb[0].mxu0
          %1115 = vmatprep.mubr.bf16.mxu0 0
          %1116 = vmatmul.mubr.bf16.gmra.mrb[0].mxu0 %v716
          %v1117 = vpop.f32.mrb[0].mxu0
          %v1118 = vadd.f32 %v646, %v1117
          %v1119 = vpop.f32.mrb[0].mxu0
          %v1120 = vpop.f32.mrb[0].mxu0
          %v1121 = vadd.f32 %v646, %v1120
          %v1122 = vpop.f32.mrb[0].mxu0
          %1123 = vmatprep.mubr.bf16.mxu0 0
          %1124 = vmatmul.mubr.bf16.gmra.mrb[0].mxu0 %v717
          %v1125 = vpop.f32.mrb[0].mxu0
          %v1126 = vadd.f32 %v646, %v1125
          %v1127 = vpop.f32.mrb[0].mxu0
          %v1128 = vpop.f32.mrb[0].mxu0
          %v1129 = vadd.f32 %v646, %v1128
          %v1130 = vpop.f32.mrb[0].mxu0
          %1131 = vmatprep.mubr.bf16.mxu0 0
          %1132 = vmatmul.mubr.bf16.gmra.mrb[0].mxu0 %v718
          %v1133 = vpop.f32.mrb[0].mxu0
          %v1134 = vadd.f32 %v646, %v1133
          %v1135 = vpop.f32.mrb[0].mxu0
          %v1136 = vpop.f32.mrb[0].mxu0
          %v1137 = vadd.f32 %v646, %v1136
          %v1138 = vpop.f32.mrb[0].mxu0
          %1139 = vmatprep.mubr.bf16.mxu0 0
          %1140 = vmatmul.mubr.bf16.gmra.mrb[0].mxu0 %v719
          %v1141 = vpop.f32.mrb[0].mxu0
          %v1142 = vadd.f32 %v646, %v1141
          %v1143 = vpop.f32.mrb[0].mxu0
          %v1144 = vpop.f32.mrb[0].mxu0
          %v1145 = vadd.f32 %v646, %v1144
          %v1146 = vpop.f32.mrb[0].mxu0
          %1147 = vmatprep.mubr.bf16.mxu0 0
          %1148 = vmatmul.mubr.bf16.gmra.mrb[0].mxu0 %v720
          %v1149 = vpop.f32.mrb[0].mxu0
          %v1150 = vadd.f32 %v646, %v1149
          %v1151 = vpop.f32.mrb[0].mxu0
          %v1152 = vpop.f32.mrb[0].mxu0
          %v1153 = vadd.f32 %v646, %v1152
          %v1154 = vpop.f32.mrb[0].mxu0
          %1155 = vmatprep.mubr.bf16.mxu0 0
          %1156 = vmatmul.mubr.bf16.gmra.mrb[0].mxu0 %v721
          %v1157 = vpop.f32.mrb[0].mxu0
          %v1158 = vadd.f32 %v646, %v1157
          %v1159 = vpop.f32.mrb[0].mxu0
          %v1160 = vpop.f32.mrb[0].mxu0
          %v1161 = vadd.f32 %v646, %v1160
          %v1162 = vpop.f32.mrb[0].mxu0
          %1163 = vmatprep.mubr.bf16.mxu0 0
          %1164 = vmatmul.mubr.bf16.gmra.mrb[0].mxu0 %v722
          %v1165 = vpop.f32.mrb[0].mxu0
          %v1166 = vadd.f32 %v646, %v1165
          %v1167 = vpop.f32.mrb[0].mxu0
          %v1168 = vpop.f32.mrb[0].mxu0
          %v1169 = vadd.f32 %v646, %v1168
          %v1170 = vpop.f32.mrb[0].mxu0
          %1171 = vmatprep.mubr.bf16.mxu0 0
          %1172 = vmatmul.mubr.bf16.gmra.mrb[0].mxu0 %v723
          %v1173 = vpop.f32.mrb[0].mxu0
          %v1174 = vadd.f32 %v646, %v1173
          %v1175 = vpop.f32.mrb[0].mxu0
          %v1176 = vpop.f32.mrb[0].mxu0
          %v1177 = vadd.f32 %v646, %v1176
          %v1178 = vpop.f32.mrb[0].mxu0
          %1179 = vmatprep.mubr.bf16.mxu0 0
          %1180 = vmatmul.mubr.bf16.gmra.mrb[0].mxu0 %v724
          %v1181 = vpop.f32.mrb[0].mxu0
          %v1182 = vadd.f32 %v646, %v1181
          %v1183 = vpop.f32.mrb[0].mxu0
          %v1184 = vpop.f32.mrb[0].mxu0
          %v1185 = vadd.f32 %v646, %v1184
          %v1186 = vpop.f32.mrb[0].mxu0
          %1187 = vmatprep.mubr.bf16.mxu0 0
          %1188 = vmatmul.mubr.bf16.gmra.mrb[0].mxu0 %v725
          %v1189 = vpop.f32.mrb[0].mxu0
          %v1190 = vadd.f32 %v646, %v1189
          %v1191 = vpop.f32.mrb[0].mxu0
          %v1192 = vpop.f32.mrb[0].mxu0
          %v1193 = vadd.f32 %v646, %v1192
          %v1194 = vpop.f32.mrb[0].mxu0
          %1195 = vmatprep.mubr.bf16.mxu0 0
          %1196 = vmatmul.mubr.bf16.gmra.mrb[0].mxu0 %v726
          %v1197 = vpop.f32.mrb[0].mxu0
          %v1198 = vadd.f32 %v646, %v1197
          %v1199 = vpop.f32.mrb[0].mxu0
          %v1200 = vpop.f32.mrb[0].mxu0
          %v1201 = vadd.f32 %v646, %v1200
          %v1202 = vpop.f32.mrb[0].mxu0
          %1203 = vmatprep.mubr.bf16.mxu0 0
          %1204 = vmatmul.mubr.bf16.gmra.mrb[0].mxu0 %v727
          %v1205 = vpop.f32.mrb[0].mxu0
          %v1206 = vadd.f32 %v646, %v1205
          %v1207 = vpop.f32.mrb[0].mxu0
          %v1208 = vpop.f32.mrb[0].mxu0
          %v1209 = vadd.f32 %v646, %v1208
          %v1210 = vpop.f32.mrb[0].mxu0
          %1211 = vmatprep.mubr.bf16.mxu0 0
          %1212 = vmatmul.mubr.bf16.gmra.mrb[0].mxu0 %v728
          %v1213 = vpop.f32.mrb[0].mxu0
          %v1214 = vadd.f32 %v646, %v1213
          %v1215 = vpop.f32.mrb[0].mxu0
          %v1216 = vpop.f32.mrb[0].mxu0
          %v1217 = vadd.f32 %v646, %v1216
          %v1218 = vpop.f32.mrb[0].mxu0
          %1219 = vmatprep.mubr.bf16.mxu0 0
          %1220 = vmatmul.mubr.bf16.gmra.mrb[0].mxu0 %v729
          %v1221 = vpop.f32.mrb[0].mxu0
          %v1222 = vadd.f32 %v646, %v1221
          %v1223 = vpop.f32.mrb[0].mxu0
          %v1224 = vpop.f32.mrb[0].mxu0
          %v1225 = vadd.f32 %v646, %v1224
          %v1226 = vpop.f32.mrb[0].mxu0
          %1227 = vdwg.mxu0
          %v1228 = vld [vmem:[#allocation10] sm:$0xff]
          %v1229 = vld [vmem:[#allocation10 + $0x8] sm:$0xf]
          %v1230 = vld [vmem:[#allocation10 + $0xc] sm:$0xff]
          %v1231 = vld [vmem:[#allocation10 + $0x14] sm:$0xf]
          %v1232 = vld [vmem:[#allocation10 + $0x18] sm:$0xff]
          %v1233 = vld [vmem:[#allocation10 + $0x20] sm:$0xf]
          %v1234 = vld [vmem:[#allocation10 + $0x24] sm:$0xff]
          %v1235 = vld [vmem:[#allocation10 + $0x2c] sm:$0xf]
          %v1236 = vld [vmem:[#allocation10 + $0x30] sm:$0xff]
          %v1237 = vld [vmem:[#allocation10 + $0x38] sm:$0xf]
          %v1238 = vld [vmem:[#allocation10 + $0x3c] sm:$0xff]
          %v1239 = vld [vmem:[#allocation10 + $0x44] sm:$0xf]
          %v1240 = vld [vmem:[#allocation10 + $0x48] sm:$0xff]
          %v1241 = vld [vmem:[#allocation10 + $0x50] sm:$0xf]
          %v1242 = vld [vmem:[#allocation10 + $0x54] sm:$0xff]
          %v1243 = vld [vmem:[#allocation10 + $0x5c] sm:$0xf]
          %v1244 = vld [vmem:[#allocation10 + $0x60] sm:$0xff]
          %v1245 = vld [vmem:[#allocation10 + $0x68] sm:$0xf]
          %v1246 = vld [vmem:[#allocation10 + $0x6c] sm:$0xff]
          %v1247 = vld [vmem:[#allocation10 + $0x74] sm:$0xf]
          %v1248 = vld [vmem:[#allocation10 + $0x78] sm:$0xff]
          %v1249 = vld [vmem:[#allocation10 + $0x80] sm:$0xf]
          %v1250 = vld [vmem:[#allocation10 + $0x84] sm:$0xff]
          %v1251 = vld [vmem:[#allocation10 + $0x8c] sm:$0xf]
          %v1252 = vld [vmem:[#allocation10 + $0x90] sm:$0xff]
          %v1253 = vld [vmem:[#allocation10 + $0x98] sm:$0xf]
          %v1254 = vld [vmem:[#allocation10 + $0x9c] sm:$0xff]
          %v1255 = vld [vmem:[#allocation10 + $0xa4] sm:$0xf]
          %v1256 = vld [vmem:[#allocation10 + $0xa8] sm:$0xff]
          %v1257 = vld [vmem:[#allocation10 + $0xb0] sm:$0xf]
          %v1258 = vld [vmem:[#allocation10 + $0xb4] sm:$0xff]
          %v1259 = vld [vmem:[#allocation10 + $0xbc] sm:$0xf]
          %v1260 = vld [vmem:[%s5] sm:$0x7]
          %v1262 = vlaneseq
          %v1263 = vshrl.u32 %v1262, 7
          %v1264 = vsub.s32 0, %v1263
          %v1265 = vrot.slane %v1260, %v1264
          %v1266 = vlaneseq
          %v1267 = vshrl.u32 %v1266, 7
          %v1268 = vsub.s32 1, %v1267
          %v1269 = vrot.slane %v1260, %v1268
          %v1270 = vlaneseq
          %v1271 = vshrl.u32 %v1270, 7
          %v1272 = vsub.s32 2, %v1271
          %v1273 = vrot.slane %v1260, %v1272
          %v1309 = vunpack.c.l.b16 %v569
          %v1310 = vunpack.c.l.b16 %v570
          %v1311 = vunpack.c.l.b16 %v571
          %v1312 = vunpack.c.l.b16 %v572
          %v1313 = vunpack.c.l.b16 %v573
          %v1314 = vunpack.c.l.b16 %v574
          %v1315 = vunpack.c.l.b16 %v575
          %v1316 = vunpack.c.l.b16 %v576
          %v1317 = vunpack.c.l.b16 %v577
          %v1318 = vunpack.c.l.b16 %v578
          %v1319 = vunpack.c.l.b16 %v579
          %v1320 = vunpack.c.l.b16 %v580
          %v1321 = vunpack.c.l.b16 %v581
          %v1322 = vunpack.c.l.b16 %v582
          %v1323 = vunpack.c.l.b16 %v583
          %v1324 = vunpack.c.l.b16 %v584
          %v1325 = vunpack.c.l.b16 %v585
          %v1326 = vunpack.c.l.b16 %v586
          %v1327 = vunpack.c.l.b16 %v587
          %v1328 = vunpack.c.l.b16 %v588
          %v1329 = vunpack.c.l.b16 %v589
          %v1330 = vunpack.c.l.b16 %v590
          %v1331 = vunpack.c.l.b16 %v591
          %v1332 = vunpack.c.l.b16 %v592
          %v1333 = vunpack.c.l.b16 %v593
          %v1334 = vunpack.c.l.b16 %v594
          %v1335 = vunpack.c.l.b16 %v595
          %v1336 = vunpack.c.l.b16 %v596
          %v1337 = vunpack.c.l.b16 %v597
          %v1338 = vunpack.c.l.b16 %v598
          %v1339 = vunpack.c.l.b16 %v599
          %v1340 = vunpack.c.l.b16 %v600
          %v1341 = vpack.c.b16 %v1310, %v1309
          %v1342 = vpack.c.b16 %v1312, %v1311
          %v1343 = vpack.c.b16 %v1314, %v1313
          %v1344 = vpack.c.b16 %v1316, %v1315
          %v1345 = vpack.c.b16 %v1318, %v1317
          %v1346 = vpack.c.b16 %v1320, %v1319
          %v1347 = vpack.c.b16 %v1322, %v1321
          %v1348 = vpack.c.b16 %v1324, %v1323
          %v1349 = vpack.c.b16 %v1326, %v1325
          %v1350 = vpack.c.b16 %v1328, %v1327
          %v1351 = vpack.c.b16 %v1330, %v1329
          %v1352 = vpack.c.b16 %v1332, %v1331
          %v1353 = vpack.c.b16 %v1334, %v1333
          %v1354 = vpack.c.b16 %v1336, %v1335
          %v1355 = vpack.c.b16 %v1338, %v1337
          %v1356 = vpack.c.b16 %v1340, %v1339
          %v1405 = vunpack.c.l.b16 %v1228
          %v1406 = vunpack.c.h.b16 %v1228
          %v1407 = vunpack.c.l.b16 %v1229
          %v1408 = vunpack.c.l.b16 %v1230
          %v1409 = vunpack.c.h.b16 %v1230
          %v1410 = vunpack.c.l.b16 %v1231
          %v1411 = vunpack.c.l.b16 %v1232
          %v1412 = vunpack.c.h.b16 %v1232
          %v1413 = vunpack.c.l.b16 %v1233
          %v1414 = vunpack.c.l.b16 %v1234
          %v1415 = vunpack.c.h.b16 %v1234
          %v1416 = vunpack.c.l.b16 %v1235
          %v1417 = vunpack.c.l.b16 %v1236
          %v1418 = vunpack.c.h.b16 %v1236
          %v1419 = vunpack.c.l.b16 %v1237
          %v1420 = vunpack.c.l.b16 %v1238
          %v1421 = vunpack.c.h.b16 %v1238
          %v1422 = vunpack.c.l.b16 %v1239
          %v1423 = vunpack.c.l.b16 %v1240
          %v1424 = vunpack.c.h.b16 %v1240
          %v1425 = vunpack.c.l.b16 %v1241
          %v1426 = vunpack.c.l.b16 %v1242
          %v1427 = vunpack.c.h.b16 %v1242
          %v1428 = vunpack.c.l.b16 %v1243
          %v1429 = vunpack.c.l.b16 %v1244
          %v1430 = vunpack.c.h.b16 %v1244
          %v1431 = vunpack.c.l.b16 %v1245
          %v1432 = vunpack.c.l.b16 %v1246
          %v1433 = vunpack.c.h.b16 %v1246
          %v1434 = vunpack.c.l.b16 %v1247
          %v1435 = vunpack.c.l.b16 %v1248
          %v1436 = vunpack.c.h.b16 %v1248
          %v1437 = vunpack.c.l.b16 %v1249
          %v1438 = vunpack.c.l.b16 %v1250
          %v1439 = vunpack.c.h.b16 %v1250
          %v1440 = vunpack.c.l.b16 %v1251
          %v1441 = vunpack.c.l.b16 %v1252
          %v1442 = vunpack.c.h.b16 %v1252
          %v1443 = vunpack.c.l.b16 %v1253
          %v1444 = vunpack.c.l.b16 %v1254
          %v1445 = vunpack.c.h.b16 %v1254
          %v1446 = vunpack.c.l.b16 %v1255
          %v1447 = vunpack.c.l.b16 %v1256
          %v1448 = vunpack.c.h.b16 %v1256
          %v1449 = vunpack.c.l.b16 %v1257
          %v1450 = vunpack.c.l.b16 %v1258
          %v1451 = vunpack.c.h.b16 %v1258
          %v1452 = vunpack.c.l.b16 %v1259
          %v1453 = vpack.c.b16 %v1408, %v1405
          %v1454 = vpack.c.b16 %v1409, %v1406
          %v1455 = vpack.c.b16 %v1410, %v1407
          %v1456 = vpack.c.b16 %v1414, %v1411
          %v1457 = vpack.c.b16 %v1415, %v1412
          %v1458 = vpack.c.b16 %v1416, %v1413
          %v1459 = vpack.c.b16 %v1420, %v1417
          %v1460 = vpack.c.b16 %v1421, %v1418
          %v1461 = vpack.c.b16 %v1422, %v1419
          %v1462 = vpack.c.b16 %v1426, %v1423
          %v1463 = vpack.c.b16 %v1427, %v1424
          %v1464 = vpack.c.b16 %v1428, %v1425
          %v1465 = vpack.c.b16 %v1432, %v1429
          %v1466 = vpack.c.b16 %v1433, %v1430
          %v1467 = vpack.c.b16 %v1434, %v1431
          %v1468 = vpack.c.b16 %v1438, %v1435
          %v1469 = vpack.c.b16 %v1439, %v1436
          %v1470 = vpack.c.b16 %v1440, %v1437
          %v1471 = vpack.c.b16 %v1444, %v1441
          %v1472 = vpack.c.b16 %v1445, %v1442
          %v1473 = vpack.c.b16 %v1446, %v1443
          %v1474 = vpack.c.b16 %v1450, %v1447
          %v1475 = vpack.c.b16 %v1451, %v1448
          %v1476 = vpack.c.b16 %v1452, %v1449
          %1501 = vmatprep.subr.bf16.mxu0 %v1454
          %1502 = vmatpush1.bf16.msra.mxu0 %v1453
          %1503 = vmatprep.subr.bf16.mxu0 %v1457
          %1504 = vmatpush1.bf16.msra.mxu0 %v1456
          %1505 = vmatprep.subr.bf16.mxu0 %v1460
          %1506 = vmatpush1.bf16.msra.mxu0 %v1459
          %1507 = vmatprep.subr.bf16.mxu0 %v1463
          %1508 = vmatpush1.bf16.msra.mxu0 %v1462
          %1509 = vmatprep.subr.bf16.mxu0 %v1466
          %1510 = vmatpush1.bf16.msra.mxu0 %v1465
          %1511 = vmatprep.subr.bf16.mxu0 %v1469
          %1512 = vmatpush1.bf16.msra.mxu0 %v1468
          %1513 = vmatprep.subr.bf16.mxu0 %v1472
          %1514 = vmatpush1.bf16.msra.mxu0 %v1471
          %1515 = vmatprep.subr.bf16.mxu0 %v1475
          %1516 = vmatpush1.bf16.msra.mxu0 %v1474
          %1517 = vmatprep.subr.bf16.mxu0 0
          %1518 = vmatpush1.bf16.msra.mxu0 0
          %1519 = vmatprep.subr.bf16.mxu0 0
          %1520 = vmatpush1.bf16.msra.mxu0 0
          %1521 = vmatprep.subr.bf16.mxu0 0
          %1522 = vmatpush1.bf16.msra.mxu0 0
          %1523 = vmatprep.subr.bf16.mxu0 0
          %1524 = vmatpush1.bf16.msra.mxu0 0
          %1525 = vmatprep.subr.bf16.mxu0 0
          %1526 = vmatpush1.bf16.msra.mxu0 0
          %1527 = vmatprep.subr.bf16.mxu0 0
          %1528 = vmatpush1.bf16.msra.mxu0 0
          %1529 = vmatprep.subr.bf16.mxu0 0
          %1530 = vmatpush1.bf16.msra.mxu0 0
          %1531 = vmatprep.subr.bf16.mxu0 0
          %1532 = vmatpush1.bf16.msra.mxu0 0
          %1533 = vmatprep.mubr.bf16.mxu0 0
          %1534 = vmatmul.mubr.bf16.gmra.mrb[0].mxu0 %v1341
          %v1535 = vpop.f32.mrb[0].mxu0
          %v1536 = vadd.f32 %v1265, %v1535
          %v1537 = vpop.f32.mrb[0].mxu0
          %v1538 = vadd.f32 %v1269, %v1537
          %v1539 = vpop.f32.mrb[0].mxu0
          %v1540 = vadd.f32 %v1265, %v1539
          %v1541 = vpop.f32.mrb[0].mxu0
          %v1542 = vadd.f32 %v1269, %v1541
          %1543 = vmatprep.mubr.bf16.mxu0 0
          %1544 = vmatmul.mubr.bf16.gmra.mrb[0].mxu0 %v1342
          %v1545 = vpop.f32.mrb[0].mxu0
          %v1546 = vadd.f32 %v1265, %v1545
          %v1547 = vpop.f32.mrb[0].mxu0
          %v1548 = vadd.f32 %v1269, %v1547
          %v1549 = vpop.f32.mrb[0].mxu0
          %v1550 = vadd.f32 %v1265, %v1549
          %v1551 = vpop.f32.mrb[0].mxu0
          %v1552 = vadd.f32 %v1269, %v1551
          %1553 = vmatprep.mubr.bf16.mxu0 0
          %1554 = vmatmul.mubr.bf16.gmra.mrb[0].mxu0 %v1343
          %v1555 = vpop.f32.mrb[0].mxu0
          %v1556 = vadd.f32 %v1265, %v1555
          %v1557 = vpop.f32.mrb[0].mxu0
          %v1558 = vadd.f32 %v1269, %v1557
          %v1559 = vpop.f32.mrb[0].mxu0
          %v1560 = vadd.f32 %v1265, %v1559
          %v1561 = vpop.f32.mrb[0].mxu0
          %v1562 = vadd.f32 %v1269, %v1561
          %1563 = vmatprep.mubr.bf16.mxu0 0
          %1564 = vmatmul.mubr.bf16.gmra.mrb[0].mxu0 %v1344
          %v1565 = vpop.f32.mrb[0].mxu0
          %v1566 = vadd.f32 %v1265, %v1565
          %v1567 = vpop.f32.mrb[0].mxu0
          %v1568 = vadd.f32 %v1269, %v1567
          %v1569 = vpop.f32.mrb[0].mxu0
          %v1570 = vadd.f32 %v1265, %v1569
          %v1571 = vpop.f32.mrb[0].mxu0
          %v1572 = vadd.f32 %v1269, %v1571
          %1573 = vmatprep.mubr.bf16.mxu0 0
          %1574 = vmatmul.mubr.bf16.gmra.mrb[0].mxu0 %v1345
          %v1575 = vpop.f32.mrb[0].mxu0
          %v1576 = vadd.f32 %v1265, %v1575
          %v1577 = vpop.f32.mrb[0].mxu0
          %v1578 = vadd.f32 %v1269, %v1577
          %v1579 = vpop.f32.mrb[0].mxu0
          %v1580 = vadd.f32 %v1265, %v1579
          %v1581 = vpop.f32.mrb[0].mxu0
          %v1582 = vadd.f32 %v1269, %v1581
          %1583 = vmatprep.mubr.bf16.mxu0 0
          %1584 = vmatmul.mubr.bf16.gmra.mrb[0].mxu0 %v1346
          %v1585 = vpop.f32.mrb[0].mxu0
          %v1586 = vadd.f32 %v1265, %v1585
          %v1587 = vpop.f32.mrb[0].mxu0
          %v1588 = vadd.f32 %v1269, %v1587
          %v1589 = vpop.f32.mrb[0].mxu0
          %v1590 = vadd.f32 %v1265, %v1589
          %v1591 = vpop.f32.mrb[0].mxu0
          %v1592 = vadd.f32 %v1269, %v1591
          %1593 = vmatprep.mubr.bf16.mxu0 0
          %1594 = vmatmul.mubr.bf16.gmra.mrb[0].mxu0 %v1347
          %v1595 = vpop.f32.mrb[0].mxu0
          %v1596 = vadd.f32 %v1265, %v1595
          %v1597 = vpop.f32.mrb[0].mxu0
          %v1598 = vadd.f32 %v1269, %v1597
          %v1599 = vpop.f32.mrb[0].mxu0
          %v1600 = vadd.f32 %v1265, %v1599
          %v1601 = vpop.f32.mrb[0].mxu0
          %v1602 = vadd.f32 %v1269, %v1601
          %1603 = vmatprep.mubr.bf16.mxu0 0
          %1604 = vmatmul.mubr.bf16.gmra.mrb[0].mxu0 %v1348
          %v1605 = vpop.f32.mrb[0].mxu0
          %v1606 = vadd.f32 %v1265, %v1605
          %v1607 = vpop.f32.mrb[0].mxu0
          %v1608 = vadd.f32 %v1269, %v1607
          %v1609 = vpop.f32.mrb[0].mxu0
          %v1610 = vadd.f32 %v1265, %v1609
          %v1611 = vpop.f32.mrb[0].mxu0
          %v1612 = vadd.f32 %v1269, %v1611
          %1613 = vmatprep.mubr.bf16.mxu0 0
          %1614 = vmatmul.mubr.bf16.gmra.mrb[0].mxu0 %v1349
          %v1615 = vpop.f32.mrb[0].mxu0
          %v1616 = vadd.f32 %v1265, %v1615
          %v1617 = vpop.f32.mrb[0].mxu0
          %v1618 = vadd.f32 %v1269, %v1617
          %v1619 = vpop.f32.mrb[0].mxu0
          %v1620 = vadd.f32 %v1265, %v1619
          %v1621 = vpop.f32.mrb[0].mxu0
          %v1622 = vadd.f32 %v1269, %v1621
          %1623 = vmatprep.mubr.bf16.mxu0 0
          %1624 = vmatmul.mubr.bf16.gmra.mrb[0].mxu0 %v1350
          %v1625 = vpop.f32.mrb[0].mxu0
          %v1626 = vadd.f32 %v1265, %v1625
          %v1627 = vpop.f32.mrb[0].mxu0
          %v1628 = vadd.f32 %v1269, %v1627
          %v1629 = vpop.f32.mrb[0].mxu0
          %v1630 = vadd.f32 %v1265, %v1629
          %v1631 = vpop.f32.mrb[0].mxu0
          %v1632 = vadd.f32 %v1269, %v1631
          %1633 = vmatprep.mubr.bf16.mxu0 0
          %1634 = vmatmul.mubr.bf16.gmra.mrb[0].mxu0 %v1351
          %v1635 = vpop.f32.mrb[0].mxu0
          %v1636 = vadd.f32 %v1265, %v1635
          %v1637 = vpop.f32.mrb[0].mxu0
          %v1638 = vadd.f32 %v1269, %v1637
          %v1639 = vpop.f32.mrb[0].mxu0
          %v1640 = vadd.f32 %v1265, %v1639
          %v1641 = vpop.f32.mrb[0].mxu0
          %v1642 = vadd.f32 %v1269, %v1641
          %1643 = vmatprep.mubr.bf16.mxu0 0
          %1644 = vmatmul.mubr.bf16.gmra.mrb[0].mxu0 %v1352
          %v1645 = vpop.f32.mrb[0].mxu0
          %v1646 = vadd.f32 %v1265, %v1645
          %v1647 = vpop.f32.mrb[0].mxu0
          %v1648 = vadd.f32 %v1269, %v1647
          %v1649 = vpop.f32.mrb[0].mxu0
          %v1650 = vadd.f32 %v1265, %v1649
          %v1651 = vpop.f32.mrb[0].mxu0
          %v1652 = vadd.f32 %v1269, %v1651
          %1653 = vmatprep.mubr.bf16.mxu0 0
          %1654 = vmatmul.mubr.bf16.gmra.mrb[0].mxu0 %v1353
          %v1655 = vpop.f32.mrb[0].mxu0
          %v1656 = vadd.f32 %v1265, %v1655
          %v1657 = vpop.f32.mrb[0].mxu0
          %v1658 = vadd.f32 %v1269, %v1657
          %v1659 = vpop.f32.mrb[0].mxu0
          %v1660 = vadd.f32 %v1265, %v1659
          %v1661 = vpop.f32.mrb[0].mxu0
          %v1662 = vadd.f32 %v1269, %v1661
          %1663 = vmatprep.mubr.bf16.mxu0 0
          %1664 = vmatmul.mubr.bf16.gmra.mrb[0].mxu0 %v1354
          %v1665 = vpop.f32.mrb[0].mxu0
          %v1666 = vadd.f32 %v1265, %v1665
          %v1667 = vpop.f32.mrb[0].mxu0
          %v1668 = vadd.f32 %v1269, %v1667
          %v1669 = vpop.f32.mrb[0].mxu0
          %v1670 = vadd.f32 %v1265, %v1669
          %v1671 = vpop.f32.mrb[0].mxu0
          %v1672 = vadd.f32 %v1269, %v1671
          %1673 = vmatprep.mubr.bf16.mxu0 0
          %1674 = vmatmul.mubr.bf16.gmra.mrb[0].mxu0 %v1355
          %v1675 = vpop.f32.mrb[0].mxu0
          %v1676 = vadd.f32 %v1265, %v1675
          %v1677 = vpop.f32.mrb[0].mxu0
          %v1678 = vadd.f32 %v1269, %v1677
          %v1679 = vpop.f32.mrb[0].mxu0
          %v1680 = vadd.f32 %v1265, %v1679
          %v1681 = vpop.f32.mrb[0].mxu0
          %v1682 = vadd.f32 %v1269, %v1681
          %1683 = vmatprep.mubr.bf16.mxu0 0
          %1684 = vmatmul.mubr.bf16.gmra.mrb[0].mxu0 %v1356
          %v1685 = vpop.f32.mrb[0].mxu0
          %v1686 = vadd.f32 %v1265, %v1685
          %v1687 = vpop.f32.mrb[0].mxu0
          %v1688 = vadd.f32 %v1269, %v1687
          %v1689 = vpop.f32.mrb[0].mxu0
          %v1690 = vadd.f32 %v1265, %v1689
          %v1691 = vpop.f32.mrb[0].mxu0
          %v1692 = vadd.f32 %v1269, %v1691
          %1693 = vdwg.mxu0
          %1694 = vmatprep.subr.bf16.mxu0 0
          %1695 = vmatpush1.bf16.msra.mxu0 %v1455
          %1696 = vmatprep.subr.bf16.mxu0 0
          %1697 = vmatpush1.bf16.msra.mxu0 %v1458
          %1698 = vmatprep.subr.bf16.mxu0 0
          %1699 = vmatpush1.bf16.msra.mxu0 %v1461
          %1700 = vmatprep.subr.bf16.mxu0 0
          %1701 = vmatpush1.bf16.msra.mxu0 %v1464
          %1702 = vmatprep.subr.bf16.mxu0 0
          %1703 = vmatpush1.bf16.msra.mxu0 %v1467
          %1704 = vmatprep.subr.bf16.mxu0 0
          %1705 = vmatpush1.bf16.msra.mxu0 %v1470
          %1706 = vmatprep.subr.bf16.mxu0 0
          %1707 = vmatpush1.bf16.msra.mxu0 %v1473
          %1708 = vmatprep.subr.bf16.mxu0 0
          %1709 = vmatpush1.bf16.msra.mxu0 %v1476
          %1710 = vmatprep.subr.bf16.mxu0 0
          %1711 = vmatpush1.bf16.msra.mxu0 0
          %1712 = vmatprep.subr.bf16.mxu0 0
          %1713 = vmatpush1.bf16.msra.mxu0 0
          %1714 = vmatprep.subr.bf16.mxu0 0
          %1715 = vmatpush1.bf16.msra.mxu0 0
          %1716 = vmatprep.subr.bf16.mxu0 0
          %1717 = vmatpush1.bf16.msra.mxu0 0
          %1718 = vmatprep.subr.bf16.mxu0 0
          %1719 = vmatpush1.bf16.msra.mxu0 0
          %1720 = vmatprep.subr.bf16.mxu0 0
          %1721 = vmatpush1.bf16.msra.mxu0 0
          %1722 = vmatprep.subr.bf16.mxu0 0
          %1723 = vmatpush1.bf16.msra.mxu0 0
          %1724 = vmatprep.subr.bf16.mxu0 0
          %1725 = vmatpush1.bf16.msra.mxu0 0
          %1726 = vmatprep.mubr.bf16.mxu0 0
          %1727 = vmatmul.mubr.bf16.gmra.mrb[0].mxu0 %v1341
          %v1728 = vpop.f32.mrb[0].mxu0
          %v1729 = vadd.f32 %v1273, %v1728
          %v1730 = vpop.f32.mrb[0].mxu0
          %v1731 = vpop.f32.mrb[0].mxu0
          %v1732 = vadd.f32 %v1273, %v1731
          %v1733 = vpop.f32.mrb[0].mxu0
          %1734 = vmatprep.mubr.bf16.mxu0 0
          %1735 = vmatmul.mubr.bf16.gmra.mrb[0].mxu0 %v1342
          %v1736 = vpop.f32.mrb[0].mxu0
          %v1737 = vadd.f32 %v1273, %v1736
          %v1738 = vpop.f32.mrb[0].mxu0
          %v1739 = vpop.f32.mrb[0].mxu0
          %v1740 = vadd.f32 %v1273, %v1739
          %v1741 = vpop.f32.mrb[0].mxu0
          %1742 = vmatprep.mubr.bf16.mxu0 0
          %1743 = vmatmul.mubr.bf16.gmra.mrb[0].mxu0 %v1343
          %v1744 = vpop.f32.mrb[0].mxu0
          %v1745 = vadd.f32 %v1273, %v1744
          %v1746 = vpop.f32.mrb[0].mxu0
          %v1747 = vpop.f32.mrb[0].mxu0
          %v1748 = vadd.f32 %v1273, %v1747
          %v1749 = vpop.f32.mrb[0].mxu0
          %1750 = vmatprep.mubr.bf16.mxu0 0
          %1751 = vmatmul.mubr.bf16.gmra.mrb[0].mxu0 %v1344
          %v1752 = vpop.f32.mrb[0].mxu0
          %v1753 = vadd.f32 %v1273, %v1752
          %v1754 = vpop.f32.mrb[0].mxu0
          %v1755 = vpop.f32.mrb[0].mxu0
          %v1756 = vadd.f32 %v1273, %v1755
          %v1757 = vpop.f32.mrb[0].mxu0
          %1758 = vmatprep.mubr.bf16.mxu0 0
          %1759 = vmatmul.mubr.bf16.gmra.mrb[0].mxu0 %v1345
          %v1760 = vpop.f32.mrb[0].mxu0
          %v1761 = vadd.f32 %v1273, %v1760
          %v1762 = vpop.f32.mrb[0].mxu0
          %v1763 = vpop.f32.mrb[0].mxu0
          %v1764 = vadd.f32 %v1273, %v1763
          %v1765 = vpop.f32.mrb[0].mxu0
          %1766 = vmatprep.mubr.bf16.mxu0 0
          %1767 = vmatmul.mubr.bf16.gmra.mrb[0].mxu0 %v1346
          %v1768 = vpop.f32.mrb[0].mxu0
          %v1769 = vadd.f32 %v1273, %v1768
          %v1770 = vpop.f32.mrb[0].mxu0
          %v1771 = vpop.f32.mrb[0].mxu0
          %v1772 = vadd.f32 %v1273, %v1771
          %v1773 = vpop.f32.mrb[0].mxu0
          %1774 = vmatprep.mubr.bf16.mxu0 0
          %1775 = vmatmul.mubr.bf16.gmra.mrb[0].mxu0 %v1347
          %v1776 = vpop.f32.mrb[0].mxu0
          %v1777 = vadd.f32 %v1273, %v1776
          %v1778 = vpop.f32.mrb[0].mxu0
          %v1779 = vpop.f32.mrb[0].mxu0
          %v1780 = vadd.f32 %v1273, %v1779
          %v1781 = vpop.f32.mrb[0].mxu0
          %1782 = vmatprep.mubr.bf16.mxu0 0
          %1783 = vmatmul.mubr.bf16.gmra.mrb[0].mxu0 %v1348
          %v1784 = vpop.f32.mrb[0].mxu0
          %v1785 = vadd.f32 %v1273, %v1784
          %v1786 = vpop.f32.mrb[0].mxu0
          %v1787 = vpop.f32.mrb[0].mxu0
          %v1788 = vadd.f32 %v1273, %v1787
          %v1789 = vpop.f32.mrb[0].mxu0
          %1790 = vmatprep.mubr.bf16.mxu0 0
          %1791 = vmatmul.mubr.bf16.gmra.mrb[0].mxu0 %v1349
          %v1792 = vpop.f32.mrb[0].mxu0
          %v1793 = vadd.f32 %v1273, %v1792
          %v1794 = vpop.f32.mrb[0].mxu0
          %v1795 = vpop.f32.mrb[0].mxu0
          %v1796 = vadd.f32 %v1273, %v1795
          %v1797 = vpop.f32.mrb[0].mxu0
          %1798 = vmatprep.mubr.bf16.mxu0 0
          %1799 = vmatmul.mubr.bf16.gmra.mrb[0].mxu0 %v1350
          %v1800 = vpop.f32.mrb[0].mxu0
          %v1801 = vadd.f32 %v1273, %v1800
          %v1802 = vpop.f32.mrb[0].mxu0
          %v1803 = vpop.f32.mrb[0].mxu0
          %v1804 = vadd.f32 %v1273, %v1803
          %v1805 = vpop.f32.mrb[0].mxu0
          %1806 = vmatprep.mubr.bf16.mxu0 0
          %1807 = vmatmul.mubr.bf16.gmra.mrb[0].mxu0 %v1351
          %v1808 = vpop.f32.mrb[0].mxu0
          %v1809 = vadd.f32 %v1273, %v1808
          %v1810 = vpop.f32.mrb[0].mxu0
          %v1811 = vpop.f32.mrb[0].mxu0
          %v1812 = vadd.f32 %v1273, %v1811
          %v1813 = vpop.f32.mrb[0].mxu0
          %1814 = vmatprep.mubr.bf16.mxu0 0
          %1815 = vmatmul.mubr.bf16.gmra.mrb[0].mxu0 %v1352
          %v1816 = vpop.f32.mrb[0].mxu0
          %v1817 = vadd.f32 %v1273, %v1816
          %v1818 = vpop.f32.mrb[0].mxu0
          %v1819 = vpop.f32.mrb[0].mxu0
          %v1820 = vadd.f32 %v1273, %v1819
          %v1821 = vpop.f32.mrb[0].mxu0
          %1822 = vmatprep.mubr.bf16.mxu0 0
          %1823 = vmatmul.mubr.bf16.gmra.mrb[0].mxu0 %v1353
          %v1824 = vpop.f32.mrb[0].mxu0
          %v1825 = vadd.f32 %v1273, %v1824
          %v1826 = vpop.f32.mrb[0].mxu0
          %v1827 = vpop.f32.mrb[0].mxu0
          %v1828 = vadd.f32 %v1273, %v1827
          %v1829 = vpop.f32.mrb[0].mxu0
          %1830 = vmatprep.mubr.bf16.mxu0 0
          %1831 = vmatmul.mubr.bf16.gmra.mrb[0].mxu0 %v1354
          %v1832 = vpop.f32.mrb[0].mxu0
          %v1833 = vadd.f32 %v1273, %v1832
          %v1834 = vpop.f32.mrb[0].mxu0
          %v1835 = vpop.f32.mrb[0].mxu0
          %v1836 = vadd.f32 %v1273, %v1835
          %v1837 = vpop.f32.mrb[0].mxu0
          %1838 = vmatprep.mubr.bf16.mxu0 0
          %1839 = vmatmul.mubr.bf16.gmra.mrb[0].mxu0 %v1355
          %v1840 = vpop.f32.mrb[0].mxu0
          %v1841 = vadd.f32 %v1273, %v1840
          %v1842 = vpop.f32.mrb[0].mxu0
          %v1843 = vpop.f32.mrb[0].mxu0
          %v1844 = vadd.f32 %v1273, %v1843
          %v1845 = vpop.f32.mrb[0].mxu0
          %1846 = vmatprep.mubr.bf16.mxu0 0
          %1847 = vmatmul.mubr.bf16.gmra.mrb[0].mxu0 %v1356
          %v1848 = vpop.f32.mrb[0].mxu0
          %v1849 = vadd.f32 %v1273, %v1848
          %v1850 = vpop.f32.mrb[0].mxu0
          %v1851 = vpop.f32.mrb[0].mxu0
          %v1852 = vadd.f32 %v1273, %v1851
          %v1853 = vpop.f32.mrb[0].mxu0
          %1854 = vdwg.mxu0
          %v1855 = vpack.c.bf16 %v913, %v909
          %v1856 = vpack.c.bf16 %v915, %v911
          %v1857 = vpack.c.bf16 %v1105, %v1102
          %v1858 = vpack.c.bf16 %v923, %v919
          %v1859 = vpack.c.bf16 %v925, %v921
          %v1860 = vpack.c.bf16 %v1113, %v1110
          %v1861 = vpack.c.bf16 %v933, %v929
          %v1862 = vpack.c.bf16 %v935, %v931
          %v1863 = vpack.c.bf16 %v1121, %v1118
          %v1864 = vpack.c.bf16 %v943, %v939
          %v1865 = vpack.c.bf16 %v945, %v941
          %v1866 = vpack.c.bf16 %v1129, %v1126
          %v1867 = vpack.c.bf16 %v953, %v949
          %v1868 = vpack.c.bf16 %v955, %v951
          %v1869 = vpack.c.bf16 %v1137, %v1134
          %v1870 = vpack.c.bf16 %v963, %v959
          %v1871 = vpack.c.bf16 %v965, %v961
          %v1872 = vpack.c.bf16 %v1145, %v1142
          %v1873 = vpack.c.bf16 %v973, %v969
          %v1874 = vpack.c.bf16 %v975, %v971
          %v1875 = vpack.c.bf16 %v1153, %v1150
          %v1876 = vpack.c.bf16 %v983, %v979
          %v1877 = vpack.c.bf16 %v985, %v981
          %v1878 = vpack.c.bf16 %v1161, %v1158
          %v1879 = vpack.c.bf16 %v993, %v989
          %v1880 = vpack.c.bf16 %v995, %v991
          %v1881 = vpack.c.bf16 %v1169, %v1166
          %v1882 = vpack.c.bf16 %v1003, %v999
          %v1883 = vpack.c.bf16 %v1005, %v1001
          %v1884 = vpack.c.bf16 %v1177, %v1174
          %v1885 = vpack.c.bf16 %v1013, %v1009
          %v1886 = vpack.c.bf16 %v1015, %v1011
          %v1887 = vpack.c.bf16 %v1185, %v1182
          %v1888 = vpack.c.bf16 %v1023, %v1019
          %v1889 = vpack.c.bf16 %v1025, %v1021
          %v1890 = vpack.c.bf16 %v1193, %v1190
          %v1891 = vpack.c.bf16 %v1033, %v1029
          %v1892 = vpack.c.bf16 %v1035, %v1031
          %v1893 = vpack.c.bf16 %v1201, %v1198
          %v1894 = vpack.c.bf16 %v1043, %v1039
          %v1895 = vpack.c.bf16 %v1045, %v1041
          %v1896 = vpack.c.bf16 %v1209, %v1206
          %v1897 = vpack.c.bf16 %v1053, %v1049
          %v1898 = vpack.c.bf16 %v1055, %v1051
          %v1899 = vpack.c.bf16 %v1217, %v1214
          %v1900 = vpack.c.bf16 %v1063, %v1059
          %v1901 = vpack.c.bf16 %v1065, %v1061
          %v1902 = vpack.c.bf16 %v1225, %v1222
          %1903 = vst [vmem:[#allocation2] sm:$0xff] %v1855
          %1904 = vst [vmem:[#allocation2 + $0x8] sm:$0xff] %v1856
          %1905 = vst [vmem:[#allocation2 + $0x10] sm:$0xff] %v1857
          %1906 = vst [vmem:[#allocation2 + $0x18] sm:$0xff] %v1858
          %1907 = vst [vmem:[#allocation2 + $0x20] sm:$0xff] %v1859
          %1908 = vst [vmem:[#allocation2 + $0x28] sm:$0xff] %v1860
          %1909 = vst [vmem:[#allocation2 + $0x30] sm:$0xff] %v1861
          %1910 = vst [vmem:[#allocation2 + $0x38] sm:$0xff] %v1862
          %1911 = vst [vmem:[#allocation2 + $0x40] sm:$0xff] %v1863
          %1912 = vst [vmem:[#allocation2 + $0x48] sm:$0xff] %v1864
          %1913 = vst [vmem:[#allocation2 + $0x50] sm:$0xff] %v1865
          %1914 = vst [vmem:[#allocation2 + $0x58] sm:$0xff] %v1866
          %1915 = vst [vmem:[#allocation2 + $0x60] sm:$0xff] %v1867
          %1916 = vst [vmem:[#allocation2 + $0x68] sm:$0xff] %v1868
          %1917 = vst [vmem:[#allocation2 + $0x70] sm:$0xff] %v1869
          %1918 = vst [vmem:[#allocation2 + $0x78] sm:$0xff] %v1870
          %1919 = vst [vmem:[#allocation2 + $0x80] sm:$0xff] %v1871
          %1920 = vst [vmem:[#allocation2 + $0x88] sm:$0xff] %v1872
          %1921 = vst [vmem:[#allocation2 + $0x90] sm:$0xff] %v1873
          %1922 = vst [vmem:[#allocation2 + $0x98] sm:$0xff] %v1874
          %1923 = vst [vmem:[#allocation2 + $0xa0] sm:$0xff] %v1875
          %1924 = vst [vmem:[#allocation2 + $0xa8] sm:$0xff] %v1876
          %1925 = vst [vmem:[#allocation2 + $0xb0] sm:$0xff] %v1877
          %1926 = vst [vmem:[#allocation2 + $0xb8] sm:$0xff] %v1878
          %1927 = vst [vmem:[#allocation2 + $0xc0] sm:$0xff] %v1879
          %1928 = vst [vmem:[#allocation2 + $0xc8] sm:$0xff] %v1880
          %1929 = vst [vmem:[#allocation2 + $0xd0] sm:$0xff] %v1881
          %1930 = vst [vmem:[#allocation2 + $0xd8] sm:$0xff] %v1882
          %1931 = vst [vmem:[#allocation2 + $0xe0] sm:$0xff] %v1883
          %1932 = vst [vmem:[#allocation2 + $0xe8] sm:$0xff] %v1884
          %1933 = vst [vmem:[#allocation2 + $0xf0] sm:$0xff] %v1885
          %1934 = vst [vmem:[#allocation2 + $0xf8] sm:$0xff] %v1886
          %1935 = vst [vmem:[#allocation2 + $0x100] sm:$0xff] %v1887
          %1936 = vst [vmem:[#allocation2 + $0x108] sm:$0xff] %v1888
          %1937 = vst [vmem:[#allocation2 + $0x110] sm:$0xff] %v1889
          %1938 = vst [vmem:[#allocation2 + $0x118] sm:$0xff] %v1890
          %1939 = vst [vmem:[#allocation2 + $0x120] sm:$0xff] %v1891
          %1940 = vst [vmem:[#allocation2 + $0x128] sm:$0xff] %v1892
          %1941 = vst [vmem:[#allocation2 + $0x130] sm:$0xff] %v1893
          %1942 = vst [vmem:[#allocation2 + $0x138] sm:$0xff] %v1894
          %1943 = vst [vmem:[#allocation2 + $0x140] sm:$0xff] %v1895
          %1944 = vst [vmem:[#allocation2 + $0x148] sm:$0xff] %v1896
          %1945 = vst [vmem:[#allocation2 + $0x150] sm:$0xff] %v1897
          %1946 = vst [vmem:[#allocation2 + $0x158] sm:$0xff] %v1898
          %1947 = vst [vmem:[#allocation2 + $0x160] sm:$0xff] %v1899
          %1948 = vst [vmem:[#allocation2 + $0x168] sm:$0xff] %v1900
          %1949 = vst [vmem:[#allocation2 + $0x170] sm:$0xff] %v1901
          %1950 = vst [vmem:[#allocation2 + $0x178] sm:$0xff] %v1902
          %v1951 = vpack.c.bf16 %v1540, %v1536
          %v1952 = vpack.c.bf16 %v1542, %v1538
          %v1953 = vpack.c.bf16 %v1732, %v1729
          %v1954 = vpack.c.bf16 %v1550, %v1546
          %v1955 = vpack.c.bf16 %v1552, %v1548
          %v1956 = vpack.c.bf16 %v1740, %v1737
          %v1957 = vpack.c.bf16 %v1560, %v1556
          %v1958 = vpack.c.bf16 %v1562, %v1558
          %v1959 = vpack.c.bf16 %v1748, %v1745
          %v1960 = vpack.c.bf16 %v1570, %v1566
          %v1961 = vpack.c.bf16 %v1572, %v1568
          %v1962 = vpack.c.bf16 %v1756, %v1753
          %v1963 = vpack.c.bf16 %v1580, %v1576
          %v1964 = vpack.c.bf16 %v1582, %v1578
          %v1965 = vpack.c.bf16 %v1764, %v1761
          %v1966 = vpack.c.bf16 %v1590, %v1586
          %v1967 = vpack.c.bf16 %v1592, %v1588
          %v1968 = vpack.c.bf16 %v1772, %v1769
          %v1969 = vpack.c.bf16 %v1600, %v1596
          %v1970 = vpack.c.bf16 %v1602, %v1598
          %v1971 = vpack.c.bf16 %v1780, %v1777
          %v1972 = vpack.c.bf16 %v1610, %v1606
          %v1973 = vpack.c.bf16 %v1612, %v1608
          %v1974 = vpack.c.bf16 %v1788, %v1785
          %v1975 = vpack.c.bf16 %v1620, %v1616
          %v1976 = vpack.c.bf16 %v1622, %v1618
          %v1977 = vpack.c.bf16 %v1796, %v1793
          %v1978 = vpack.c.bf16 %v1630, %v1626
          %v1979 = vpack.c.bf16 %v1632, %v1628
          %v1980 = vpack.c.bf16 %v1804, %v1801
          %v1981 = vpack.c.bf16 %v1640, %v1636
          %v1982 = vpack.c.bf16 %v1642, %v1638
          %v1983 = vpack.c.bf16 %v1812, %v1809
          %v1984 = vpack.c.bf16 %v1650, %v1646
          %v1985 = vpack.c.bf16 %v1652, %v1648
          %v1986 = vpack.c.bf16 %v1820, %v1817
          %v1987 = vpack.c.bf16 %v1660, %v1656
          %v1988 = vpack.c.bf16 %v1662, %v1658
          %v1989 = vpack.c.bf16 %v1828, %v1825
          %v1990 = vpack.c.bf16 %v1670, %v1666
          %v1991 = vpack.c.bf16 %v1672, %v1668
          %v1992 = vpack.c.bf16 %v1836, %v1833
          %v1993 = vpack.c.bf16 %v1680, %v1676
          %v1994 = vpack.c.bf16 %v1682, %v1678
          %v1995 = vpack.c.bf16 %v1844, %v1841
          %v1996 = vpack.c.bf16 %v1690, %v1686
          %v1997 = vpack.c.bf16 %v1692, %v1688
          %v1998 = vpack.c.bf16 %v1852, %v1849
          %1999 = vst [vmem:[#allocation3] sm:$0xff] %v1951
          %2000 = vst [vmem:[#allocation3 + $0x8] sm:$0xff] %v1952
          %2001 = vst [vmem:[#allocation3 + $0x10] sm:$0xff] %v1953
          %2002 = vst [vmem:[#allocation3 + $0x18] sm:$0xff] %v1954
          %2003 = vst [vmem:[#allocation3 + $0x20] sm:$0xff] %v1955
          %2004 = vst [vmem:[#allocation3 + $0x28] sm:$0xff] %v1956
          %2005 = vst [vmem:[#allocation3 + $0x30] sm:$0xff] %v1957
          %2006 = vst [vmem:[#allocation3 + $0x38] sm:$0xff] %v1958
          %2007 = vst [vmem:[#allocation3 + $0x40] sm:$0xff] %v1959
          %2008 = vst [vmem:[#allocation3 + $0x48] sm:$0xff] %v1960
          %2009 = vst [vmem:[#allocation3 + $0x50] sm:$0xff] %v1961
          %2010 = vst [vmem:[#allocation3 + $0x58] sm:$0xff] %v1962
          %2011 = vst [vmem:[#allocation3 + $0x60] sm:$0xff] %v1963
          %2012 = vst [vmem:[#allocation3 + $0x68] sm:$0xff] %v1964
          %2013 = vst [vmem:[#allocation3 + $0x70] sm:$0xff] %v1965
          %2014 = vst [vmem:[#allocation3 + $0x78] sm:$0xff] %v1966
          %2015 = vst [vmem:[#allocation3 + $0x80] sm:$0xff] %v1967
          %2016 = vst [vmem:[#allocation3 + $0x88] sm:$0xff] %v1968
          %2017 = vst [vmem:[#allocation3 + $0x90] sm:$0xff] %v1969
          %2018 = vst [vmem:[#allocation3 + $0x98] sm:$0xff] %v1970
          %2019 = vst [vmem:[#allocation3 + $0xa0] sm:$0xff] %v1971
          %2020 = vst [vmem:[#allocation3 + $0xa8] sm:$0xff] %v1972
          %2021 = vst [vmem:[#allocation3 + $0xb0] sm:$0xff] %v1973
          %2022 = vst [vmem:[#allocation3 + $0xb8] sm:$0xff] %v1974
          %2023 = vst [vmem:[#allocation3 + $0xc0] sm:$0xff] %v1975
          %2024 = vst [vmem:[#allocation3 + $0xc8] sm:$0xff] %v1976
          %2025 = vst [vmem:[#allocation3 + $0xd0] sm:$0xff] %v1977
          %2026 = vst [vmem:[#allocation3 + $0xd8] sm:$0xff] %v1978
          %2027 = vst [vmem:[#allocation3 + $0xe0] sm:$0xff] %v1979
          %2028 = vst [vmem:[#allocation3 + $0xe8] sm:$0xff] %v1980
          %2029 = vst [vmem:[#allocation3 + $0xf0] sm:$0xff] %v1981
          %2030 = vst [vmem:[#allocation3 + $0xf8] sm:$0xff] %v1982
          %2031 = vst [vmem:[#allocation3 + $0x100] sm:$0xff] %v1983
          %2032 = vst [vmem:[#allocation3 + $0x108] sm:$0xff] %v1984
          %2033 = vst [vmem:[#allocation3 + $0x110] sm:$0xff] %v1985
          %2034 = vst [vmem:[#allocation3 + $0x118] sm:$0xff] %v1986
          %2035 = vst [vmem:[#allocation3 + $0x120] sm:$0xff] %v1987
          %2036 = vst [vmem:[#allocation3 + $0x128] sm:$0xff] %v1988
          %2037 = vst [vmem:[#allocation3 + $0x130] sm:$0xff] %v1989
          %2038 = vst [vmem:[#allocation3 + $0x138] sm:$0xff] %v1990
          %2039 = vst [vmem:[#allocation3 + $0x140] sm:$0xff] %v1991
          %2040 = vst [vmem:[#allocation3 + $0x148] sm:$0xff] %v1992
          %2041 = vst [vmem:[#allocation3 + $0x150] sm:$0xff] %v1993
          %2042 = vst [vmem:[#allocation3 + $0x158] sm:$0xff] %v1994
          %2043 = vst [vmem:[#allocation3 + $0x160] sm:$0xff] %v1995
          %2044 = vst [vmem:[#allocation3 + $0x168] sm:$0xff] %v1996
          %2045 = vst [vmem:[#allocation3 + $0x170] sm:$0xff] %v1997
          %2046 = vst [vmem:[#allocation3 + $0x178] sm:$0xff] %v1998
        $region88: #{tpu_custom_call.1} parent=59 // pred_fallthru
          _
        %s2047 = smul.u32 %s42, 256
        %s2048 = sshra.s32 %s2047, 4
        %s2049 = sand.u32 %s2047, 15
        %s2050 = smul.u32 %s2048, 3
        %s2051 = smul.addr %s2050, 8
        %s2052 = scalar_lea.vmem [#allocation2], %s2051
        %v2053 = vld [vmem:[%s2052] sm:$0xff]
        %v2054 = vld [vmem:[%s2052 + $0x18] sm:$0xff]
        %v2055 = vld [vmem:[%s2052 + $0x30] sm:$0xff]
        %v2056 = vld [vmem:[%s2052 + $0x48] sm:$0xff]
        %v2057 = vld [vmem:[%s2052 + $0x60] sm:$0xff]
        %v2058 = vld [vmem:[%s2052 + $0x78] sm:$0xff]
        %v2059 = vld [vmem:[%s2052 + $0x90] sm:$0xff]
        %v2060 = vld [vmem:[%s2052 + $0xa8] sm:$0xff]
        %v2061 = vld [vmem:[%s2052 + $0xc0] sm:$0xff]
        %v2062 = vld [vmem:[%s2052 + $0xd8] sm:$0xff]
        %v2063 = vld [vmem:[%s2052 + $0xf0] sm:$0xff]
        %v2064 = vld [vmem:[%s2052 + $0x108] sm:$0xff]
        %v2065 = vld [vmem:[%s2052 + $0x120] sm:$0xff]
        %v2066 = vld [vmem:[%s2052 + $0x138] sm:$0xff]
        %v2067 = vld [vmem:[%s2052 + $0x150] sm:$0xff]
        %v2068 = vld [vmem:[%s2052 + $0x168] sm:$0xff]
        %v2069 = vld [vmem:[#allocation3 + $0x8] sm:$0xff]
        %v2070 = vld [vmem:[#allocation3 + $0x20] sm:$0xff]
        %v2071 = vld [vmem:[#allocation3 + $0x38] sm:$0xff]
        %v2072 = vld [vmem:[#allocation3 + $0x50] sm:$0xff]
        %v2073 = vld [vmem:[#allocation3 + $0x68] sm:$0xff]
        %v2074 = vld [vmem:[#allocation3 + $0x80] sm:$0xff]
        %v2075 = vld [vmem:[#allocation3 + $0x98] sm:$0xff]
        %v2076 = vld [vmem:[#allocation3 + $0xb0] sm:$0xff]
        %v2077 = vld [vmem:[#allocation3 + $0xc8] sm:$0xff]
        %v2078 = vld [vmem:[#allocation3 + $0xe0] sm:$0xff]
        %v2079 = vld [vmem:[#allocation3 + $0xf8] sm:$0xff]
        %v2080 = vld [vmem:[#allocation3 + $0x110] sm:$0xff]
        %v2081 = vld [vmem:[#allocation3 + $0x128] sm:$0xff]
        %v2082 = vld [vmem:[#allocation3 + $0x140] sm:$0xff]
        %v2083 = vld [vmem:[#allocation3 + $0x158] sm:$0xff]
        %v2084 = vld [vmem:[#allocation3 + $0x170] sm:$0xff]
        %v2085 = vld [vmem:[#allocation3 + $0x10] sm:$0xff]
        %v2086 = vld [vmem:[#allocation3 + $0x28] sm:$0xff]
        %v2087 = vld [vmem:[#allocation3 + $0x40] sm:$0xff]
        %v2088 = vld [vmem:[#allocation3 + $0x58] sm:$0xff]
        %v2089 = vld [vmem:[#allocation3 + $0x70] sm:$0xff]
        %v2090 = vld [vmem:[#allocation3 + $0x88] sm:$0xff]
        %v2091 = vld [vmem:[#allocation3 + $0xa0] sm:$0xff]
        %v2092 = vld [vmem:[#allocation3 + $0xb8] sm:$0xff]
        %v2093 = vld [vmem:[#allocation3 + $0xd0] sm:$0xff]
        %v2094 = vld [vmem:[#allocation3 + $0xe8] sm:$0xff]
        %v2095 = vld [vmem:[#allocation3 + $0x100] sm:$0xff]
        %v2096 = vld [vmem:[#allocation3 + $0x118] sm:$0xff]
        %v2097 = vld [vmem:[#allocation3 + $0x130] sm:$0xff]
        %v2098 = vld [vmem:[#allocation3 + $0x148] sm:$0xff]
        %v2099 = vld [vmem:[#allocation3 + $0x160] sm:$0xff]
        %v2100 = vld [vmem:[#allocation3 + $0x178] sm:$0xff]
        %s2101 = smul.addr %s2050, 8
        %s2102 = scalar_lea.vmem [#allocation3], %s2101
        %v2103 = vld [vmem:[%s2102] sm:$0xff]
        %v2104 = vld [vmem:[%s2102 + $0x18] sm:$0xff]
        %v2105 = vld [vmem:[%s2102 + $0x30] sm:$0xff]
        %v2106 = vld [vmem:[%s2102 + $0x48] sm:$0xff]
        %v2107 = vld [vmem:[%s2102 + $0x60] sm:$0xff]
        %v2108 = vld [vmem:[%s2102 + $0x78] sm:$0xff]
        %v2109 = vld [vmem:[%s2102 + $0x90] sm:$0xff]
        %v2110 = vld [vmem:[%s2102 + $0xa8] sm:$0xff]
        %v2111 = vld [vmem:[%s2102 + $0xc0] sm:$0xff]
        %v2112 = vld [vmem:[%s2102 + $0xd8] sm:$0xff]
        %v2113 = vld [vmem:[%s2102 + $0xf0] sm:$0xff]
        %v2114 = vld [vmem:[%s2102 + $0x108] sm:$0xff]
        %v2115 = vld [vmem:[%s2102 + $0x120] sm:$0xff]
        %v2116 = vld [vmem:[%s2102 + $0x138] sm:$0xff]
        %v2117 = vld [vmem:[%s2102 + $0x150] sm:$0xff]
        %v2118 = vld [vmem:[%s2102 + $0x168] sm:$0xff]
        %v2119 = vld [vmem:[#allocation2 + $0x8] sm:$0xff]
        %v2120 = vld [vmem:[#allocation2 + $0x20] sm:$0xff]
        %v2121 = vld [vmem:[#allocation2 + $0x38] sm:$0xff]
        %v2122 = vld [vmem:[#allocation2 + $0x50] sm:$0xff]
        %v2123 = vld [vmem:[#allocation2 + $0x68] sm:$0xff]
        %v2124 = vld [vmem:[#allocation2 + $0x80] sm:$0xff]
        %v2125 = vld [vmem:[#allocation2 + $0x98] sm:$0xff]
        %v2126 = vld [vmem:[#allocation2 + $0xb0] sm:$0xff]
        %v2127 = vld [vmem:[#allocation2 + $0xc8] sm:$0xff]
        %v2128 = vld [vmem:[#allocation2 + $0xe0] sm:$0xff]
        %v2129 = vld [vmem:[#allocation2 + $0xf8] sm:$0xff]
        %v2130 = vld [vmem:[#allocation2 + $0x110] sm:$0xff]
        %v2131 = vld [vmem:[#allocation2 + $0x128] sm:$0xff]
        %v2132 = vld [vmem:[#allocation2 + $0x140] sm:$0xff]
        %v2133 = vld [vmem:[#allocation2 + $0x158] sm:$0xff]
        %v2134 = vld [vmem:[#allocation2 + $0x170] sm:$0xff]
        %v2135 = vld [vmem:[#allocation2 + $0x10] sm:$0xff]
        %v2136 = vld [vmem:[#allocation2 + $0x28] sm:$0xff]
        %v2137 = vld [vmem:[#allocation2 + $0x40] sm:$0xff]
        %v2138 = vld [vmem:[#allocation2 + $0x58] sm:$0xff]
        %v2139 = vld [vmem:[#allocation2 + $0x70] sm:$0xff]
        %v2140 = vld [vmem:[#allocation2 + $0x88] sm:$0xff]
        %v2141 = vld [vmem:[#allocation2 + $0xa0] sm:$0xff]
        %v2142 = vld [vmem:[#allocation2 + $0xb8] sm:$0xff]
        %v2143 = vld [vmem:[#allocation2 + $0xd0] sm:$0xff]
        %v2144 = vld [vmem:[#allocation2 + $0xe8] sm:$0xff]
        %v2145 = vld [vmem:[#allocation2 + $0x100] sm:$0xff]
        %v2146 = vld [vmem:[#allocation2 + $0x118] sm:$0xff]
        %v2147 = vld [vmem:[#allocation2 + $0x130] sm:$0xff]
        %v2148 = vld [vmem:[#allocation2 + $0x148] sm:$0xff]
        %v2149 = vld [vmem:[#allocation2 + $0x160] sm:$0xff]
        %v2150 = vld [vmem:[#allocation2 + $0x178] sm:$0xff]
        %2151 = vmatprep.subr.bf16.mxu0 0
        %2152 = vmatpush1.bf16.xpose.msra.mxu0 %v2069
        %2153 = vmatprep.subr.bf16.mxu0 0
        %2154 = vmatpush1.bf16.xpose.msra.mxu0 %v2070
        %2155 = vmatprep.subr.bf16.mxu0 0
        %2156 = vmatpush1.bf16.xpose.msra.mxu0 %v2071
        %2157 = vmatprep.subr.bf16.mxu0 0
        %2158 = vmatpush1.bf16.xpose.msra.mxu0 %v2072
        %2159 = vmatprep.subr.bf16.mxu0 0
        %2160 = vmatpush1.bf16.xpose.msra.mxu0 %v2073
        %2161 = vmatprep.subr.bf16.mxu0 0
        %2162 = vmatpush1.bf16.xpose.msra.mxu0 %v2074
        %2163 = vmatprep.subr.bf16.mxu0 0
        %2164 = vmatpush1.bf16.xpose.msra.mxu0 %v2075
        %2165 = vmatprep.subr.bf16.mxu0 0
        %2166 = vmatpush1.bf16.xpose.msra.mxu0 %v2076
        %2167 = vmatprep.subr.bf16.mxu0 0
        %2168 = vmatpush1.bf16.xpose.msra.mxu0 %v2077
        %2169 = vmatprep.subr.bf16.mxu0 0
        %2170 = vmatpush1.bf16.xpose.msra.mxu0 %v2078
        %2171 = vmatprep.subr.bf16.mxu0 0
        %2172 = vmatpush1.bf16.xpose.msra.mxu0 %v2079
        %2173 = vmatprep.subr.bf16.mxu0 0
        %2174 = vmatpush1.bf16.xpose.msra.mxu0 %v2080
        %2175 = vmatprep.subr.bf16.mxu0 0
        %2176 = vmatpush1.bf16.xpose.msra.mxu0 %v2081
        %2177 = vmatprep.subr.bf16.mxu0 0
        %2178 = vmatpush1.bf16.xpose.msra.mxu0 %v2082
        %2179 = vmatprep.subr.bf16.mxu0 0
        %2180 = vmatpush1.bf16.xpose.msra.mxu0 %v2083
        %2181 = vmatprep.subr.bf16.mxu0 0
        %2182 = vmatpush1.bf16.xpose.msra.mxu0 %v2084
        %2183 = vmatprep.mubr.bf16.mxu0 0
        %2184 = vmatmul.mubr.bf16.gmra.mrb[0].mxu0 %v2053
        %v2185 = vpop.f32.mrb[0].mxu0
        %v2186 = vadd.f32 0.0, %v2185
        %v2187 = vpop.f32.mrb[0].mxu0
        %v2188 = vadd.f32 0.0, %v2187
        %v2189 = vpop.f32.mrb[0].mxu0
        %v2190 = vadd.f32 0.0, %v2189
        %v2191 = vpop.f32.mrb[0].mxu0
        %v2192 = vadd.f32 0.0, %v2191
        %2193 = vmatprep.mubr.bf16.mxu0 0
        %2194 = vmatmul.mubr.bf16.gmra.mrb[0].mxu0 %v2054
        %v2195 = vpop.f32.mrb[0].mxu0
        %v2196 = vadd.f32 0.0, %v2195
        %v2197 = vpop.f32.mrb[0].mxu0
        %v2198 = vadd.f32 0.0, %v2197
        %v2199 = vpop.f32.mrb[0].mxu0
        %v2200 = vadd.f32 0.0, %v2199
        %v2201 = vpop.f32.mrb[0].mxu0
        %v2202 = vadd.f32 0.0, %v2201
        %2203 = vmatprep.mubr.bf16.mxu0 0
        %2204 = vmatmul.mubr.bf16.gmra.mrb[0].mxu0 %v2055
        %v2205 = vpop.f32.mrb[0].mxu0
        %v2206 = vadd.f32 0.0, %v2205
        %v2207 = vpop.f32.mrb[0].mxu0
        %v2208 = vadd.f32 0.0, %v2207
        %v2209 = vpop.f32.mrb[0].mxu0
        %v2210 = vadd.f32 0.0, %v2209
        %v2211 = vpop.f32.mrb[0].mxu0
        %v2212 = vadd.f32 0.0, %v2211
        %2213 = vmatprep.mubr.bf16.mxu0 0
        %2214 = vmatmul.mubr.bf16.gmra.mrb[0].mxu0 %v2056
        %v2215 = vpop.f32.mrb[0].mxu0
        %v2216 = vadd.f32 0.0, %v2215
        %v2217 = vpop.f32.mrb[0].mxu0
        %v2218 = vadd.f32 0.0, %v2217
        %v2219 = vpop.f32.mrb[0].mxu0
        %v2220 = vadd.f32 0.0, %v2219
        %v2221 = vpop.f32.mrb[0].mxu0
        %v2222 = vadd.f32 0.0, %v2221
        %2223 = vmatprep.mubr.bf16.mxu0 0
        %2224 = vmatmul.mubr.bf16.gmra.mrb[0].mxu0 %v2057
        %v2225 = vpop.f32.mrb[0].mxu0
        %v2226 = vadd.f32 0.0, %v2225
        %v2227 = vpop.f32.mrb[0].mxu0
        %v2228 = vadd.f32 0.0, %v2227
        %v2229 = vpop.f32.mrb[0].mxu0
        %v2230 = vadd.f32 0.0, %v2229
        %v2231 = vpop.f32.mrb[0].mxu0
        %v2232 = vadd.f32 0.0, %v2231
        %2233 = vmatprep.mubr.bf16.mxu0 0
        %2234 = vmatmul.mubr.bf16.gmra.mrb[0].mxu0 %v2058
        %v2235 = vpop.f32.mrb[0].mxu0
        %v2236 = vadd.f32 0.0, %v2235
        %v2237 = vpop.f32.mrb[0].mxu0
        %v2238 = vadd.f32 0.0, %v2237
        %v2239 = vpop.f32.mrb[0].mxu0
        %v2240 = vadd.f32 0.0, %v2239
        %v2241 = vpop.f32.mrb[0].mxu0
        %v2242 = vadd.f32 0.0, %v2241
        %2243 = vmatprep.mubr.bf16.mxu0 0
        %2244 = vmatmul.mubr.bf16.gmra.mrb[0].mxu0 %v2059
        %v2245 = vpop.f32.mrb[0].mxu0
        %v2246 = vadd.f32 0.0, %v2245
        %v2247 = vpop.f32.mrb[0].mxu0
        %v2248 = vadd.f32 0.0, %v2247
        %v2249 = vpop.f32.mrb[0].mxu0
        %v2250 = vadd.f32 0.0, %v2249
        %v2251 = vpop.f32.mrb[0].mxu0
        %v2252 = vadd.f32 0.0, %v2251
        %2253 = vmatprep.mubr.bf16.mxu0 0
        %2254 = vmatmul.mubr.bf16.gmra.mrb[0].mxu0 %v2060
        %v2255 = vpop.f32.mrb[0].mxu0
        %v2256 = vadd.f32 0.0, %v2255
        %v2257 = vpop.f32.mrb[0].mxu0
        %v2258 = vadd.f32 0.0, %v2257
        %v2259 = vpop.f32.mrb[0].mxu0
        %v2260 = vadd.f32 0.0, %v2259
        %v2261 = vpop.f32.mrb[0].mxu0
        %v2262 = vadd.f32 0.0, %v2261
        %2263 = vmatprep.mubr.bf16.mxu0 0
        %2264 = vmatmul.mubr.bf16.gmra.mrb[0].mxu0 %v2061
        %v2265 = vpop.f32.mrb[0].mxu0
        %v2266 = vadd.f32 0.0, %v2265
        %v2267 = vpop.f32.mrb[0].mxu0
        %v2268 = vadd.f32 0.0, %v2267
        %v2269 = vpop.f32.mrb[0].mxu0
        %v2270 = vadd.f32 0.0, %v2269
        %v2271 = vpop.f32.mrb[0].mxu0
        %v2272 = vadd.f32 0.0, %v2271
        %2273 = vmatprep.mubr.bf16.mxu0 0
        %2274 = vmatmul.mubr.bf16.gmra.mrb[0].mxu0 %v2062
        %v2275 = vpop.f32.mrb[0].mxu0
        %v2276 = vadd.f32 0.0, %v2275
        %v2277 = vpop.f32.mrb[0].mxu0
        %v2278 = vadd.f32 0.0, %v2277
        %v2279 = vpop.f32.mrb[0].mxu0
        %v2280 = vadd.f32 0.0, %v2279
        %v2281 = vpop.f32.mrb[0].mxu0
        %v2282 = vadd.f32 0.0, %v2281
        %2283 = vmatprep.mubr.bf16.mxu0 0
        %2284 = vmatmul.mubr.bf16.gmra.mrb[0].mxu0 %v2063
        %v2285 = vpop.f32.mrb[0].mxu0
        %v2286 = vadd.f32 0.0, %v2285
        %v2287 = vpop.f32.mrb[0].mxu0
        %v2288 = vadd.f32 0.0, %v2287
        %v2289 = vpop.f32.mrb[0].mxu0
        %v2290 = vadd.f32 0.0, %v2289
        %v2291 = vpop.f32.mrb[0].mxu0
        %v2292 = vadd.f32 0.0, %v2291
        %2293 = vmatprep.mubr.bf16.mxu0 0
        %2294 = vmatmul.mubr.bf16.gmra.mrb[0].mxu0 %v2064
        %v2295 = vpop.f32.mrb[0].mxu0
        %v2296 = vadd.f32 0.0, %v2295
        %v2297 = vpop.f32.mrb[0].mxu0
        %v2298 = vadd.f32 0.0, %v2297
        %v2299 = vpop.f32.mrb[0].mxu0
        %v2300 = vadd.f32 0.0, %v2299
        %v2301 = vpop.f32.mrb[0].mxu0
        %v2302 = vadd.f32 0.0, %v2301
        %2303 = vmatprep.mubr.bf16.mxu0 0
        %2304 = vmatmul.mubr.bf16.gmra.mrb[0].mxu0 %v2065
        %v2305 = vpop.f32.mrb[0].mxu0
        %v2306 = vadd.f32 0.0, %v2305
        %v2307 = vpop.f32.mrb[0].mxu0
        %v2308 = vadd.f32 0.0, %v2307
        %v2309 = vpop.f32.mrb[0].mxu0
        %v2310 = vadd.f32 0.0, %v2309
        %v2311 = vpop.f32.mrb[0].mxu0
        %v2312 = vadd.f32 0.0, %v2311
        %2313 = vmatprep.mubr.bf16.mxu0 0
        %2314 = vmatmul.mubr.bf16.gmra.mrb[0].mxu0 %v2066
        %v2315 = vpop.f32.mrb[0].mxu0
        %v2316 = vadd.f32 0.0, %v2315
        %v2317 = vpop.f32.mrb[0].mxu0
        %v2318 = vadd.f32 0.0, %v2317
        %v2319 = vpop.f32.mrb[0].mxu0
        %v2320 = vadd.f32 0.0, %v2319
        %v2321 = vpop.f32.mrb[0].mxu0
        %v2322 = vadd.f32 0.0, %v2321
        %2323 = vmatprep.mubr.bf16.mxu0 0
        %2324 = vmatmul.mubr.bf16.gmra.mrb[0].mxu0 %v2067
        %v2325 = vpop.f32.mrb[0].mxu0
        %v2326 = vadd.f32 0.0, %v2325
        %v2327 = vpop.f32.mrb[0].mxu0
        %v2328 = vadd.f32 0.0, %v2327
        %v2329 = vpop.f32.mrb[0].mxu0
        %v2330 = vadd.f32 0.0, %v2329
        %v2331 = vpop.f32.mrb[0].mxu0
        %v2332 = vadd.f32 0.0, %v2331
        %2333 = vmatprep.mubr.bf16.mxu0 0
        %2334 = vmatmul.mubr.bf16.gmra.mrb[0].mxu0 %v2068
        %v2335 = vpop.f32.mrb[0].mxu0
        %v2336 = vadd.f32 0.0, %v2335
        %v2337 = vpop.f32.mrb[0].mxu0
        %v2338 = vadd.f32 0.0, %v2337
        %v2339 = vpop.f32.mrb[0].mxu0
        %v2340 = vadd.f32 0.0, %v2339
        %v2341 = vpop.f32.mrb[0].mxu0
        %v2342 = vadd.f32 0.0, %v2341
        %2343 = vdwg.mxu0
        %v2344 = vmax.f32 %v2186, %v2188
        %2345 = vmax.xlane.f32.xlu0 %v2344
        %v2346 = vpop.xlane.xlu0 %2345
        %v2347 = vmax.f32 %v2190, %v2192
        %2348 = vmax.xlane.f32.xlu0 %v2347
        %v2349 = vpop.xlane.xlu0 %2348
        %v2350 = vmax.f32 %v2196, %v2198
        %2351 = vmax.xlane.f32.xlu0 %v2350
        %v2352 = vpop.xlane.xlu0 %2351
        %v2353 = vmax.f32 %v2200, %v2202
        %2354 = vmax.xlane.f32.xlu0 %v2353
        %v2355 = vpop.xlane.xlu0 %2354
        %v2356 = vmax.f32 %v2206, %v2208
        %2357 = vmax.xlane.f32.xlu0 %v2356
        %v2358 = vpop.xlane.xlu0 %2357
        %v2359 = vmax.f32 %v2210, %v2212
        %2360 = vmax.xlane.f32.xlu0 %v2359
        %v2361 = vpop.xlane.xlu0 %2360
        %v2362 = vmax.f32 %v2216, %v2218
        %2363 = vmax.xlane.f32.xlu0 %v2362
        %v2364 = vpop.xlane.xlu0 %2363
        %v2365 = vmax.f32 %v2220, %v2222
        %2366 = vmax.xlane.f32.xlu0 %v2365
        %v2367 = vpop.xlane.xlu0 %2366
        %v2368 = vmax.f32 %v2226, %v2228
        %2369 = vmax.xlane.f32.xlu0 %v2368
        %v2370 = vpop.xlane.xlu0 %2369
        %v2371 = vmax.f32 %v2230, %v2232
        %2372 = vmax.xlane.f32.xlu0 %v2371
        %v2373 = vpop.xlane.xlu0 %2372
        %v2374 = vmax.f32 %v2236, %v2238
        %2375 = vmax.xlane.f32.xlu0 %v2374
        %v2376 = vpop.xlane.xlu0 %2375
        %v2377 = vmax.f32 %v2240, %v2242
        %2378 = vmax.xlane.f32.xlu0 %v2377
        %v2379 = vpop.xlane.xlu0 %2378
        %v2380 = vmax.f32 %v2246, %v2248
        %2381 = vmax.xlane.f32.xlu0 %v2380
        %v2382 = vpop.xlane.xlu0 %2381
        %v2383 = vmax.f32 %v2250, %v2252
        %2384 = vmax.xlane.f32.xlu0 %v2383
        %v2385 = vpop.xlane.xlu0 %2384
        %v2386 = vmax.f32 %v2256, %v2258
        %2387 = vmax.xlane.f32.xlu0 %v2386
        %v2388 = vpop.xlane.xlu0 %2387
        %v2389 = vmax.f32 %v2260, %v2262
        %2390 = vmax.xlane.f32.xlu0 %v2389
        %v2391 = vpop.xlane.xlu0 %2390
        %v2392 = vmax.f32 %v2266, %v2268
        %2393 = vmax.xlane.f32.xlu0 %v2392
        %v2394 = vpop.xlane.xlu0 %2393
        %v2395 = vmax.f32 %v2270, %v2272
        %2396 = vmax.xlane.f32.xlu0 %v2395
        %v2397 = vpop.xlane.xlu0 %2396
        %v2398 = vmax.f32 %v2276, %v2278
        %2399 = vmax.xlane.f32.xlu0 %v2398
        %v2400 = vpop.xlane.xlu0 %2399
        %v2401 = vmax.f32 %v2280, %v2282
        %2402 = vmax.xlane.f32.xlu0 %v2401
        %v2403 = vpop.xlane.xlu0 %2402
        %v2404 = vmax.f32 %v2286, %v2288
        %2405 = vmax.xlane.f32.xlu0 %v2404
        %v2406 = vpop.xlane.xlu0 %2405
        %v2407 = vmax.f32 %v2290, %v2292
        %2408 = vmax.xlane.f32.xlu0 %v2407
        %v2409 = vpop.xlane.xlu0 %2408
        %v2410 = vmax.f32 %v2296, %v2298
        %2411 = vmax.xlane.f32.xlu0 %v2410
        %v2412 = vpop.xlane.xlu0 %2411
        %v2413 = vmax.f32 %v2300, %v2302
        %2414 = vmax.xlane.f32.xlu0 %v2413
        %v2415 = vpop.xlane.xlu0 %2414
        %v2416 = vmax.f32 %v2306, %v2308
        %2417 = vmax.xlane.f32.xlu0 %v2416
        %v2418 = vpop.xlane.xlu0 %2417
        %v2419 = vmax.f32 %v2310, %v2312
        %2420 = vmax.xlane.f32.xlu0 %v2419
        %v2421 = vpop.xlane.xlu0 %2420
        %v2422 = vmax.f32 %v2316, %v2318
        %2423 = vmax.xlane.f32.xlu0 %v2422
        %v2424 = vpop.xlane.xlu0 %2423
        %v2425 = vmax.f32 %v2320, %v2322
        %2426 = vmax.xlane.f32.xlu0 %v2425
        %v2427 = vpop.xlane.xlu0 %2426
        %v2428 = vmax.f32 %v2326, %v2328
        %2429 = vmax.xlane.f32.xlu0 %v2428
        %v2430 = vpop.xlane.xlu0 %2429
        %v2431 = vmax.f32 %v2330, %v2332
        %2432 = vmax.xlane.f32.xlu0 %v2431
        %v2433 = vpop.xlane.xlu0 %2432
        %v2434 = vmax.f32 %v2336, %v2338
        %2435 = vmax.xlane.f32.xlu0 %v2434
        %v2436 = vpop.xlane.xlu0 %2435
        %v2437 = vmax.f32 %v2340, %v2342
        %2438 = vmax.xlane.f32.xlu0 %v2437
        %v2439 = vpop.xlane.xlu0 %2438
        %v2440 = vsub.f32 %v2186, %v2346
        %v2441 = vsub.f32 %v2188, %v2346
        %v2442 = vsub.f32 %v2190, %v2349
        %v2443 = vsub.f32 %v2192, %v2349
        %v2444 = vsub.f32 %v2196, %v2352
        %v2445 = vsub.f32 %v2198, %v2352
        %v2446 = vsub.f32 %v2200, %v2355
        %v2447 = vsub.f32 %v2202, %v2355
        %v2448 = vsub.f32 %v2206, %v2358
        %v2449 = vsub.f32 %v2208, %v2358
        %v2450 = vsub.f32 %v2210, %v2361
        %v2451 = vsub.f32 %v2212, %v2361
        %v2452 = vsub.f32 %v2216, %v2364
        %v2453 = vsub.f32 %v2218, %v2364
        %v2454 = vsub.f32 %v2220, %v2367
        %v2455 = vsub.f32 %v2222, %v2367
        %v2456 = vsub.f32 %v2226, %v2370
        %v2457 = vsub.f32 %v2228, %v2370
        %v2458 = vsub.f32 %v2230, %v2373
        %v2459 = vsub.f32 %v2232, %v2373
        %v2460 = vsub.f32 %v2236, %v2376
        %v2461 = vsub.f32 %v2238, %v2376
        %v2462 = vsub.f32 %v2240, %v2379
        %v2463 = vsub.f32 %v2242, %v2379
        %v2464 = vsub.f32 %v2246, %v2382
        %v2465 = vsub.f32 %v2248, %v2382
        %v2466 = vsub.f32 %v2250, %v2385
        %v2467 = vsub.f32 %v2252, %v2385
        %v2468 = vsub.f32 %v2256, %v2388
        %v2469 = vsub.f32 %v2258, %v2388
        %v2470 = vsub.f32 %v2260, %v2391
        %v2471 = vsub.f32 %v2262, %v2391
        %v2472 = vsub.f32 %v2266, %v2394
        %v2473 = vsub.f32 %v2268, %v2394
        %v2474 = vsub.f32 %v2270, %v2397
        %v2475 = vsub.f32 %v2272, %v2397
        %v2476 = vsub.f32 %v2276, %v2400
        %v2477 = vsub.f32 %v2278, %v2400
        %v2478 = vsub.f32 %v2280, %v2403
        %v2479 = vsub.f32 %v2282, %v2403
        %v2480 = vsub.f32 %v2286, %v2406
        %v2481 = vsub.f32 %v2288, %v2406
        %v2482 = vsub.f32 %v2290, %v2409
        %v2483 = vsub.f32 %v2292, %v2409
        %v2484 = vsub.f32 %v2296, %v2412
        %v2485 = vsub.f32 %v2298, %v2412
        %v2486 = vsub.f32 %v2300, %v2415
        %v2487 = vsub.f32 %v2302, %v2415
        %v2488 = vsub.f32 %v2306, %v2418
        %v2489 = vsub.f32 %v2308, %v2418
        %v2490 = vsub.f32 %v2310, %v2421
        %v2491 = vsub.f32 %v2312, %v2421
        %v2492 = vsub.f32 %v2316, %v2424
        %v2493 = vsub.f32 %v2318, %v2424
        %v2494 = vsub.f32 %v2320, %v2427
        %v2495 = vsub.f32 %v2322, %v2427
        %v2496 = vsub.f32 %v2326, %v2430
        %v2497 = vsub.f32 %v2328, %v2430
        %v2498 = vsub.f32 %v2330, %v2433
        %v2499 = vsub.f32 %v2332, %v2433
        %v2500 = vsub.f32 %v2336, %v2436
        %v2501 = vsub.f32 %v2338, %v2436
        %v2502 = vsub.f32 %v2340, %v2439
        %v2503 = vsub.f32 %v2342, %v2439
        %v2504 = vmul.f32 %v2440, 1.442695
        %v2505 = vpow.pop %v2504
        %v2506 = vmul.f32 %v2441, 1.442695
        %v2507 = vpow.pop %v2506
        %v2508 = vmul.f32 %v2442, 1.442695
        %v2509 = vpow.pop %v2508
        %v2510 = vmul.f32 %v2443, 1.442695
        %v2511 = vpow.pop %v2510
        %v2512 = vmul.f32 %v2444, 1.442695
        %v2513 = vpow.pop %v2512
        %v2514 = vmul.f32 %v2445, 1.442695
        %v2515 = vpow.pop %v2514
        %v2516 = vmul.f32 %v2446, 1.442695
        %v2517 = vpow.pop %v2516
        %v2518 = vmul.f32 %v2447, 1.442695
        %v2519 = vpow.pop %v2518
        %v2520 = vmul.f32 %v2448, 1.442695
        %v2521 = vpow.pop %v2520
        %v2522 = vmul.f32 %v2449, 1.442695
        %v2523 = vpow.pop %v2522
        %v2524 = vmul.f32 %v2450, 1.442695
        %v2525 = vpow.pop %v2524
        %v2526 = vmul.f32 %v2451, 1.442695
        %v2527 = vpow.pop %v2526
        %v2528 = vmul.f32 %v2452, 1.442695
        %v2529 = vpow.pop %v2528
        %v2530 = vmul.f32 %v2453, 1.442695
        %v2531 = vpow.pop %v2530
        %v2532 = vmul.f32 %v2454, 1.442695
        %v2533 = vpow.pop %v2532
        %v2534 = vmul.f32 %v2455, 1.442695
        %v2535 = vpow.pop %v2534
        %v2536 = vmul.f32 %v2456, 1.442695
        %v2537 = vpow.pop %v2536
        %v2538 = vmul.f32 %v2457, 1.442695
        %v2539 = vpow.pop %v2538
        %v2540 = vmul.f32 %v2458, 1.442695
        %v2541 = vpow.pop %v2540
        %v2542 = vmul.f32 %v2459, 1.442695
        %v2543 = vpow.pop %v2542
        %v2544 = vmul.f32 %v2460, 1.442695
        %v2545 = vpow.pop %v2544
        %v2546 = vmul.f32 %v2461, 1.442695
        %v2547 = vpow.pop %v2546
        %v2548 = vmul.f32 %v2462, 1.442695
        %v2549 = vpow.pop %v2548
        %v2550 = vmul.f32 %v2463, 1.442695
        %v2551 = vpow.pop %v2550
        %v2552 = vmul.f32 %v2464, 1.442695
        %v2553 = vpow.pop %v2552
        %v2554 = vmul.f32 %v2465, 1.442695
        %v2555 = vpow.pop %v2554
        %v2556 = vmul.f32 %v2466, 1.442695
        %v2557 = vpow.pop %v2556
        %v2558 = vmul.f32 %v2467, 1.442695
        %v2559 = vpow.pop %v2558
        %v2560 = vmul.f32 %v2468, 1.442695
        %v2561 = vpow.pop %v2560
        %v2562 = vmul.f32 %v2469, 1.442695
        %v2563 = vpow.pop %v2562
        %v2564 = vmul.f32 %v2470, 1.442695
        %v2565 = vpow.pop %v2564
        %v2566 = vmul.f32 %v2471, 1.442695
        %v2567 = vpow.pop %v2566
        %v2568 = vmul.f32 %v2472, 1.442695
        %v2569 = vpow.pop %v2568
        %v2570 = vmul.f32 %v2473, 1.442695
        %v2571 = vpow.pop %v2570
        %v2572 = vmul.f32 %v2474, 1.442695
        %v2573 = vpow.pop %v2572
        %v2574 = vmul.f32 %v2475, 1.442695
        %v2575 = vpow.pop %v2574
        %v2576 = vmul.f32 %v2476, 1.442695
        %v2577 = vpow.pop %v2576
        %v2578 = vmul.f32 %v2477, 1.442695
        %v2579 = vpow.pop %v2578
        %v2580 = vmul.f32 %v2478, 1.442695
        %v2581 = vpow.pop %v2580
        %v2582 = vmul.f32 %v2479, 1.442695
        %v2583 = vpow.pop %v2582
        %v2584 = vmul.f32 %v2480, 1.442695
        %v2585 = vpow.pop %v2584
        %v2586 = vmul.f32 %v2481, 1.442695
        %v2587 = vpow.pop %v2586
        %v2588 = vmul.f32 %v2482, 1.442695
        %v2589 = vpow.pop %v2588
        %v2590 = vmul.f32 %v2483, 1.442695
        %v2591 = vpow.pop %v2590
        %v2592 = vmul.f32 %v2484, 1.442695
        %v2593 = vpow.pop %v2592
        %v2594 = vmul.f32 %v2485, 1.442695
        %v2595 = vpow.pop %v2594
        %v2596 = vmul.f32 %v2486, 1.442695
        %v2597 = vpow.pop %v2596
        %v2598 = vmul.f32 %v2487, 1.442695
        %v2599 = vpow.pop %v2598
        %v2600 = vmul.f32 %v2488, 1.442695
        %v2601 = vpow.pop %v2600
        %v2602 = vmul.f32 %v2489, 1.442695
        %v2603 = vpow.pop %v2602
        %v2604 = vmul.f32 %v2490, 1.442695
        %v2605 = vpow.pop %v2604
        %v2606 = vmul.f32 %v2491, 1.442695
        %v2607 = vpow.pop %v2606
        %v2608 = vmul.f32 %v2492, 1.442695
        %v2609 = vpow.pop %v2608
        %v2610 = vmul.f32 %v2493, 1.442695
        %v2611 = vpow.pop %v2610
        %v2612 = vmul.f32 %v2494, 1.442695
        %v2613 = vpow.pop %v2612
        %v2614 = vmul.f32 %v2495, 1.442695
        %v2615 = vpow.pop %v2614
        %v2616 = vmul.f32 %v2496, 1.442695
        %v2617 = vpow.pop %v2616
        %v2618 = vmul.f32 %v2497, 1.442695
        %v2619 = vpow.pop %v2618
        %v2620 = vmul.f32 %v2498, 1.442695
        %v2621 = vpow.pop %v2620
        %v2622 = vmul.f32 %v2499, 1.442695
        %v2623 = vpow.pop %v2622
        %v2624 = vmul.f32 %v2500, 1.442695
        %v2625 = vpow.pop %v2624
        %v2626 = vmul.f32 %v2501, 1.442695
        %v2627 = vpow.pop %v2626
        %v2628 = vmul.f32 %v2502, 1.442695
        %v2629 = vpow.pop %v2628
        %v2630 = vmul.f32 %v2503, 1.442695
        %v2631 = vpow.pop %v2630
        %v2632 = vadd.f32 %v2505, %v2507
        %2633 = vadd.xlane.f32.xlu0 %v2632
        %v2634 = vpop.xlane.xlu0 %2633
        %v2635 = vadd.f32 %v2509, %v2511
        %2636 = vadd.xlane.f32.xlu0 %v2635
        %v2637 = vpop.xlane.xlu0 %2636
        %v2638 = vadd.f32 %v2513, %v2515
        %2639 = vadd.xlane.f32.xlu0 %v2638
        %v2640 = vpop.xlane.xlu0 %2639
        %v2641 = vadd.f32 %v2517, %v2519
        %2642 = vadd.xlane.f32.xlu0 %v2641
        %v2643 = vpop.xlane.xlu0 %2642
        %v2644 = vadd.f32 %v2521, %v2523
        %2645 = vadd.xlane.f32.xlu0 %v2644
        %v2646 = vpop.xlane.xlu0 %2645
        %v2647 = vadd.f32 %v2525, %v2527
        %2648 = vadd.xlane.f32.xlu0 %v2647
        %v2649 = vpop.xlane.xlu0 %2648
        %v2650 = vadd.f32 %v2529, %v2531
        %2651 = vadd.xlane.f32.xlu0 %v2650
        %v2652 = vpop.xlane.xlu0 %2651
        %v2653 = vadd.f32 %v2533, %v2535
        %2654 = vadd.xlane.f32.xlu0 %v2653
        %v2655 = vpop.xlane.xlu0 %2654
        %v2656 = vadd.f32 %v2537, %v2539
        %2657 = vadd.xlane.f32.xlu0 %v2656
        %v2658 = vpop.xlane.xlu0 %2657
        %v2659 = vadd.f32 %v2541, %v2543
        %2660 = vadd.xlane.f32.xlu0 %v2659
        %v2661 = vpop.xlane.xlu0 %2660
        %v2662 = vadd.f32 %v2545, %v2547
        %2663 = vadd.xlane.f32.xlu0 %v2662
        %v2664 = vpop.xlane.xlu0 %2663
        %v2665 = vadd.f32 %v2549, %v2551
        %2666 = vadd.xlane.f32.xlu0 %v2665
        %v2667 = vpop.xlane.xlu0 %2666
        %v2668 = vadd.f32 %v2553, %v2555
        %2669 = vadd.xlane.f32.xlu0 %v2668
        %v2670 = vpop.xlane.xlu0 %2669
        %v2671 = vadd.f32 %v2557, %v2559
        %2672 = vadd.xlane.f32.xlu0 %v2671
        %v2673 = vpop.xlane.xlu0 %2672
        %v2674 = vadd.f32 %v2561, %v2563
        %2675 = vadd.xlane.f32.xlu0 %v2674
        %v2676 = vpop.xlane.xlu0 %2675
        %v2677 = vadd.f32 %v2565, %v2567
        %2678 = vadd.xlane.f32.xlu0 %v2677
        %v2679 = vpop.xlane.xlu0 %2678
        %v2680 = vadd.f32 %v2569, %v2571
        %2681 = vadd.xlane.f32.xlu0 %v2680
        %v2682 = vpop.xlane.xlu0 %2681
        %v2683 = vadd.f32 %v2573, %v2575
        %2684 = vadd.xlane.f32.xlu0 %v2683
        %v2685 = vpop.xlane.xlu0 %2684
        %v2686 = vadd.f32 %v2577, %v2579
        %2687 = vadd.xlane.f32.xlu0 %v2686
        %v2688 = vpop.xlane.xlu0 %2687
        %v2689 = vadd.f32 %v2581, %v2583
        %2690 = vadd.xlane.f32.xlu0 %v2689
        %v2691 = vpop.xlane.xlu0 %2690
        %v2692 = vadd.f32 %v2585, %v2587
        %2693 = vadd.xlane.f32.xlu0 %v2692
        %v2694 = vpop.xlane.xlu0 %2693
        %v2695 = vadd.f32 %v2589, %v2591
        %2696 = vadd.xlane.f32.xlu0 %v2695
        %v2697 = vpop.xlane.xlu0 %2696
        %v2698 = vadd.f32 %v2593, %v2595
        %2699 = vadd.xlane.f32.xlu0 %v2698
        %v2700 = vpop.xlane.xlu0 %2699
        %v2701 = vadd.f32 %v2597, %v2599
        %2702 = vadd.xlane.f32.xlu0 %v2701
        %v2703 = vpop.xlane.xlu0 %2702
        %v2704 = vadd.f32 %v2601, %v2603
        %2705 = vadd.xlane.f32.xlu0 %v2704
        %v2706 = vpop.xlane.xlu0 %2705
        %v2707 = vadd.f32 %v2605, %v2607
        %2708 = vadd.xlane.f32.xlu0 %v2707
        %v2709 = vpop.xlane.xlu0 %2708
        %v2710 = vadd.f32 %v2609, %v2611
        %2711 = vadd.xlane.f32.xlu0 %v2710
        %v2712 = vpop.xlane.xlu0 %2711
        %v2713 = vadd.f32 %v2613, %v2615
        %2714 = vadd.xlane.f32.xlu0 %v2713
        %v2715 = vpop.xlane.xlu0 %2714
        %v2716 = vadd.f32 %v2617, %v2619
        %2717 = vadd.xlane.f32.xlu0 %v2716
        %v2718 = vpop.xlane.xlu0 %2717
        %v2719 = vadd.f32 %v2621, %v2623
        %2720 = vadd.xlane.f32.xlu0 %v2719
        %v2721 = vpop.xlane.xlu0 %2720
        %v2722 = vadd.f32 %v2625, %v2627
        %2723 = vadd.xlane.f32.xlu0 %v2722
        %v2724 = vpop.xlane.xlu0 %2723
        %v2725 = vadd.f32 %v2629, %v2631
        %2726 = vadd.xlane.f32.xlu0 %v2725
        %v2727 = vpop.xlane.xlu0 %2726
        %v2728 = vrcp.pop %v2634
        %v2729 = vmul.f32 1.0, %v2728
        %v2730 = vrcp.pop %v2637
        %v2731 = vmul.f32 1.0, %v2730
        %v2732 = vrcp.pop %v2640
        %v2733 = vmul.f32 1.0, %v2732
        %v2734 = vrcp.pop %v2643
        %v2735 = vmul.f32 1.0, %v2734
        %v2736 = vrcp.pop %v2646
        %v2737 = vmul.f32 1.0, %v2736
        %v2738 = vrcp.pop %v2649
        %v2739 = vmul.f32 1.0, %v2738
        %v2740 = vrcp.pop %v2652
        %v2741 = vmul.f32 1.0, %v2740
        %v2742 = vrcp.pop %v2655
        %v2743 = vmul.f32 1.0, %v2742
        %v2744 = vrcp.pop %v2658
        %v2745 = vmul.f32 1.0, %v2744
        %v2746 = vrcp.pop %v2661
        %v2747 = vmul.f32 1.0, %v2746
        %v2748 = vrcp.pop %v2664
        %v2749 = vmul.f32 1.0, %v2748
        %v2750 = vrcp.pop %v2667
        %v2751 = vmul.f32 1.0, %v2750
        %v2752 = vrcp.pop %v2670
        %v2753 = vmul.f32 1.0, %v2752
        %v2754 = vrcp.pop %v2673
        %v2755 = vmul.f32 1.0, %v2754
        %v2756 = vrcp.pop %v2676
        %v2757 = vmul.f32 1.0, %v2756
        %v2758 = vrcp.pop %v2679
        %v2759 = vmul.f32 1.0, %v2758
        %v2760 = vrcp.pop %v2682
        %v2761 = vmul.f32 1.0, %v2760
        %v2762 = vrcp.pop %v2685
        %v2763 = vmul.f32 1.0, %v2762
        %v2764 = vrcp.pop %v2688
        %v2765 = vmul.f32 1.0, %v2764
        %v2766 = vrcp.pop %v2691
        %v2767 = vmul.f32 1.0, %v2766
        %v2768 = vrcp.pop %v2694
        %v2769 = vmul.f32 1.0, %v2768
        %v2770 = vrcp.pop %v2697
        %v2771 = vmul.f32 1.0, %v2770
        %v2772 = vrcp.pop %v2700
        %v2773 = vmul.f32 1.0, %v2772
        %v2774 = vrcp.pop %v2703
        %v2775 = vmul.f32 1.0, %v2774
        %v2776 = vrcp.pop %v2706
        %v2777 = vmul.f32 1.0, %v2776
        %v2778 = vrcp.pop %v2709
        %v2779 = vmul.f32 1.0, %v2778
        %v2780 = vrcp.pop %v2712
        %v2781 = vmul.f32 1.0, %v2780
        %v2782 = vrcp.pop %v2715
        %v2783 = vmul.f32 1.0, %v2782
        %v2784 = vrcp.pop %v2718
        %v2785 = vmul.f32 1.0, %v2784
        %v2786 = vrcp.pop %v2721
        %v2787 = vmul.f32 1.0, %v2786
        %v2788 = vrcp.pop %v2724
        %v2789 = vmul.f32 1.0, %v2788
        %v2790 = vrcp.pop %v2727
        %v2791 = vmul.f32 1.0, %v2790
        %v2792 = vpack.c.bf16 %v2509, %v2505
        %v2793 = vpack.c.bf16 %v2511, %v2507
        %v2794 = vpack.c.bf16 %v2517, %v2513
        %v2795 = vpack.c.bf16 %v2519, %v2515
        %v2796 = vpack.c.bf16 %v2525, %v2521
        %v2797 = vpack.c.bf16 %v2527, %v2523
        %v2798 = vpack.c.bf16 %v2533, %v2529
        %v2799 = vpack.c.bf16 %v2535, %v2531
        %v2800 = vpack.c.bf16 %v2541, %v2537
        %v2801 = vpack.c.bf16 %v2543, %v2539
        %v2802 = vpack.c.bf16 %v2549, %v2545
        %v2803 = vpack.c.bf16 %v2551, %v2547
        %v2804 = vpack.c.bf16 %v2557, %v2553
        %v2805 = vpack.c.bf16 %v2559, %v2555
        %v2806 = vpack.c.bf16 %v2565, %v2561
        %v2807 = vpack.c.bf16 %v2567, %v2563
        %v2808 = vpack.c.bf16 %v2573, %v2569
        %v2809 = vpack.c.bf16 %v2575, %v2571
        %v2810 = vpack.c.bf16 %v2581, %v2577
        %v2811 = vpack.c.bf16 %v2583, %v2579
        %v2812 = vpack.c.bf16 %v2589, %v2585
        %v2813 = vpack.c.bf16 %v2591, %v2587
        %v2814 = vpack.c.bf16 %v2597, %v2593
        %v2815 = vpack.c.bf16 %v2599, %v2595
        %v2816 = vpack.c.bf16 %v2605, %v2601
        %v2817 = vpack.c.bf16 %v2607, %v2603
        %v2818 = vpack.c.bf16 %v2613, %v2609
        %v2819 = vpack.c.bf16 %v2615, %v2611
        %v2820 = vpack.c.bf16 %v2621, %v2617
        %v2821 = vpack.c.bf16 %v2623, %v2619
        %v2822 = vpack.c.bf16 %v2629, %v2625
        %v2823 = vpack.c.bf16 %v2631, %v2627
        %2824 = vmatprep.subr.bf16.mxu0 0
        %2825 = vmatpush1.bf16.msra.mxu0 %v2085
        %2826 = vmatprep.subr.bf16.mxu0 0
        %2827 = vmatpush1.bf16.msra.mxu0 %v2086
        %2828 = vmatprep.subr.bf16.mxu0 0
        %2829 = vmatpush1.bf16.msra.mxu0 %v2087
        %2830 = vmatprep.subr.bf16.mxu0 0
        %2831 = vmatpush1.bf16.msra.mxu0 %v2088
        %2832 = vmatprep.subr.bf16.mxu0 0
        %2833 = vmatpush1.bf16.msra.mxu0 %v2089
        %2834 = vmatprep.subr.bf16.mxu0 0
        %2835 = vmatpush1.bf16.msra.mxu0 %v2090
        %2836 = vmatprep.subr.bf16.mxu0 0
        %2837 = vmatpush1.bf16.msra.mxu0 %v2091
        %2838 = vmatprep.subr.bf16.mxu0 0
        %2839 = vmatpush1.bf16.msra.mxu0 %v2092
        %2840 = vmatprep.subr.bf16.mxu0 0
        %2841 = vmatpush1.bf16.msra.mxu0 %v2093
        %2842 = vmatprep.subr.bf16.mxu0 0
        %2843 = vmatpush1.bf16.msra.mxu0 %v2094
        %2844 = vmatprep.subr.bf16.mxu0 0
        %2845 = vmatpush1.bf16.msra.mxu0 %v2095
        %2846 = vmatprep.subr.bf16.mxu0 0
        %2847 = vmatpush1.bf16.msra.mxu0 %v2096
        %2848 = vmatprep.subr.bf16.mxu0 0
        %2849 = vmatpush1.bf16.msra.mxu0 %v2097
        %2850 = vmatprep.subr.bf16.mxu0 0
        %2851 = vmatpush1.bf16.msra.mxu0 %v2098
        %2852 = vmatprep.subr.bf16.mxu0 0
        %2853 = vmatpush1.bf16.msra.mxu0 %v2099
        %2854 = vmatprep.subr.bf16.mxu0 0
        %2855 = vmatpush1.bf16.msra.mxu0 %v2100
        %2856 = vmatprep.mubr.bf16.mxu0 %v2793
        %2857 = vmatmul.mubr.bf16.gmra.mrb[0].mxu0 %v2792
        %v2858 = vpop.f32.mrb[0].mxu0
        %v2859 = vadd.f32 0.0, %v2858
        %v2860 = vpop.f32.mrb[0].mxu0
        %v2861 = vpop.f32.mrb[0].mxu0
        %v2862 = vadd.f32 0.0, %v2861
        %v2863 = vpop.f32.mrb[0].mxu0
        %2864 = vmatprep.mubr.bf16.mxu0 %v2795
        %2865 = vmatmul.mubr.bf16.gmra.mrb[0].mxu0 %v2794
        %v2866 = vpop.f32.mrb[0].mxu0
        %v2867 = vadd.f32 0.0, %v2866
        %v2868 = vpop.f32.mrb[0].mxu0
        %v2869 = vpop.f32.mrb[0].mxu0
        %v2870 = vadd.f32 0.0, %v2869
        %v2871 = vpop.f32.mrb[0].mxu0
        %2872 = vmatprep.mubr.bf16.mxu0 %v2797
        %2873 = vmatmul.mubr.bf16.gmra.mrb[0].mxu0 %v2796
        %v2874 = vpop.f32.mrb[0].mxu0
        %v2875 = vadd.f32 0.0, %v2874
        %v2876 = vpop.f32.mrb[0].mxu0
        %v2877 = vpop.f32.mrb[0].mxu0
        %v2878 = vadd.f32 0.0, %v2877
        %v2879 = vpop.f32.mrb[0].mxu0
        %2880 = vmatprep.mubr.bf16.mxu0 %v2799
        %2881 = vmatmul.mubr.bf16.gmra.mrb[0].mxu0 %v2798
        %v2882 = vpop.f32.mrb[0].mxu0
        %v2883 = vadd.f32 0.0, %v2882
        %v2884 = vpop.f32.mrb[0].mxu0
        %v2885 = vpop.f32.mrb[0].mxu0
        %v2886 = vadd.f32 0.0, %v2885
        %v2887 = vpop.f32.mrb[0].mxu0
        %2888 = vmatprep.mubr.bf16.mxu0 %v2801
        %2889 = vmatmul.mubr.bf16.gmra.mrb[0].mxu0 %v2800
        %v2890 = vpop.f32.mrb[0].mxu0
        %v2891 = vadd.f32 0.0, %v2890
        %v2892 = vpop.f32.mrb[0].mxu0
        %v2893 = vpop.f32.mrb[0].mxu0
        %v2894 = vadd.f32 0.0, %v2893
        %v2895 = vpop.f32.mrb[0].mxu0
        %2896 = vmatprep.mubr.bf16.mxu0 %v2803
        %2897 = vmatmul.mubr.bf16.gmra.mrb[0].mxu0 %v2802
        %v2898 = vpop.f32.mrb[0].mxu0
        %v2899 = vadd.f32 0.0, %v2898
        %v2900 = vpop.f32.mrb[0].mxu0
        %v2901 = vpop.f32.mrb[0].mxu0
        %v2902 = vadd.f32 0.0, %v2901
        %v2903 = vpop.f32.mrb[0].mxu0
        %2904 = vmatprep.mubr.bf16.mxu0 %v2805
        %2905 = vmatmul.mubr.bf16.gmra.mrb[0].mxu0 %v2804
        %v2906 = vpop.f32.mrb[0].mxu0
        %v2907 = vadd.f32 0.0, %v2906
        %v2908 = vpop.f32.mrb[0].mxu0
        %v2909 = vpop.f32.mrb[0].mxu0
        %v2910 = vadd.f32 0.0, %v2909
        %v2911 = vpop.f32.mrb[0].mxu0
        %2912 = vmatprep.mubr.bf16.mxu0 %v2807
        %2913 = vmatmul.mubr.bf16.gmra.mrb[0].mxu0 %v2806
        %v2914 = vpop.f32.mrb[0].mxu0
        %v2915 = vadd.f32 0.0, %v2914
        %v2916 = vpop.f32.mrb[0].mxu0
        %v2917 = vpop.f32.mrb[0].mxu0
        %v2918 = vadd.f32 0.0, %v2917
        %v2919 = vpop.f32.mrb[0].mxu0
        %2920 = vmatprep.mubr.bf16.mxu0 %v2809
        %2921 = vmatmul.mubr.bf16.gmra.mrb[0].mxu0 %v2808
        %v2922 = vpop.f32.mrb[0].mxu0
        %v2923 = vadd.f32 0.0, %v2922
        %v2924 = vpop.f32.mrb[0].mxu0
        %v2925 = vpop.f32.mrb[0].mxu0
        %v2926 = vadd.f32 0.0, %v2925
        %v2927 = vpop.f32.mrb[0].mxu0
        %2928 = vmatprep.mubr.bf16.mxu0 %v2811
        %2929 = vmatmul.mubr.bf16.gmra.mrb[0].mxu0 %v2810
        %v2930 = vpop.f32.mrb[0].mxu0
        %v2931 = vadd.f32 0.0, %v2930
        %v2932 = vpop.f32.mrb[0].mxu0
        %v2933 = vpop.f32.mrb[0].mxu0
        %v2934 = vadd.f32 0.0, %v2933
        %v2935 = vpop.f32.mrb[0].mxu0
        %2936 = vmatprep.mubr.bf16.mxu0 %v2813
        %2937 = vmatmul.mubr.bf16.gmra.mrb[0].mxu0 %v2812
        %v2938 = vpop.f32.mrb[0].mxu0
        %v2939 = vadd.f32 0.0, %v2938
        %v2940 = vpop.f32.mrb[0].mxu0
        %v2941 = vpop.f32.mrb[0].mxu0
        %v2942 = vadd.f32 0.0, %v2941
        %v2943 = vpop.f32.mrb[0].mxu0
        %2944 = vmatprep.mubr.bf16.mxu0 %v2815
        %2945 = vmatmul.mubr.bf16.gmra.mrb[0].mxu0 %v2814
        %v2946 = vpop.f32.mrb[0].mxu0
        %v2947 = vadd.f32 0.0, %v2946
        %v2948 = vpop.f32.mrb[0].mxu0
        %v2949 = vpop.f32.mrb[0].mxu0
        %v2950 = vadd.f32 0.0, %v2949
        %v2951 = vpop.f32.mrb[0].mxu0
        %2952 = vmatprep.mubr.bf16.mxu0 %v2817
        %2953 = vmatmul.mubr.bf16.gmra.mrb[0].mxu0 %v2816
        %v2954 = vpop.f32.mrb[0].mxu0
        %v2955 = vadd.f32 0.0, %v2954
        %v2956 = vpop.f32.mrb[0].mxu0
        %v2957 = vpop.f32.mrb[0].mxu0
        %v2958 = vadd.f32 0.0, %v2957
        %v2959 = vpop.f32.mrb[0].mxu0
        %2960 = vmatprep.mubr.bf16.mxu0 %v2819
        %2961 = vmatmul.mubr.bf16.gmra.mrb[0].mxu0 %v2818
        %v2962 = vpop.f32.mrb[0].mxu0
        %v2963 = vadd.f32 0.0, %v2962
        %v2964 = vpop.f32.mrb[0].mxu0
        %v2965 = vpop.f32.mrb[0].mxu0
        %v2966 = vadd.f32 0.0, %v2965
        %v2967 = vpop.f32.mrb[0].mxu0
        %2968 = vmatprep.mubr.bf16.mxu0 %v2821
        %2969 = vmatmul.mubr.bf16.gmra.mrb[0].mxu0 %v2820
        %v2970 = vpop.f32.mrb[0].mxu0
        %v2971 = vadd.f32 0.0, %v2970
        %v2972 = vpop.f32.mrb[0].mxu0
        %v2973 = vpop.f32.mrb[0].mxu0
        %v2974 = vadd.f32 0.0, %v2973
        %v2975 = vpop.f32.mrb[0].mxu0
        %2976 = vmatprep.mubr.bf16.mxu0 %v2823
        %2977 = vmatmul.mubr.bf16.gmra.mrb[0].mxu0 %v2822
        %v2978 = vpop.f32.mrb[0].mxu0
        %v2979 = vadd.f32 0.0, %v2978
        %v2980 = vpop.f32.mrb[0].mxu0
        %v2981 = vpop.f32.mrb[0].mxu0
        %v2982 = vadd.f32 0.0, %v2981
        %v2983 = vpop.f32.mrb[0].mxu0
        %2984 = vdwg.mxu0
        %v2985 = vmul.f32 %v2859, %v2729
        %v2986 = vmul.f32 %v2862, %v2731
        %v2987 = vmul.f32 %v2867, %v2733
        %v2988 = vmul.f32 %v2870, %v2735
        %v2989 = vmul.f32 %v2875, %v2737
        %v2990 = vmul.f32 %v2878, %v2739
        %v2991 = vmul.f32 %v2883, %v2741
        %v2992 = vmul.f32 %v2886, %v2743
        %v2993 = vmul.f32 %v2891, %v2745
        %v2994 = vmul.f32 %v2894, %v2747
        %v2995 = vmul.f32 %v2899, %v2749
        %v2996 = vmul.f32 %v2902, %v2751
        %v2997 = vmul.f32 %v2907, %v2753
        %v2998 = vmul.f32 %v2910, %v2755
        %v2999 = vmul.f32 %v2915, %v2757
        %v3000 = vmul.f32 %v2918, %v2759
        %v3001 = vmul.f32 %v2923, %v2761
        %v3002 = vmul.f32 %v2926, %v2763
        %v3003 = vmul.f32 %v2931, %v2765
        %v3004 = vmul.f32 %v2934, %v2767
        %v3005 = vmul.f32 %v2939, %v2769
        %v3006 = vmul.f32 %v2942, %v2771
        %v3007 = vmul.f32 %v2947, %v2773
        %v3008 = vmul.f32 %v2950, %v2775
        %v3009 = vmul.f32 %v2955, %v2777
        %v3010 = vmul.f32 %v2958, %v2779
        %v3011 = vmul.f32 %v2963, %v2781
        %v3012 = vmul.f32 %v2966, %v2783
        %v3013 = vmul.f32 %v2971, %v2785
        %v3014 = vmul.f32 %v2974, %v2787
        %v3015 = vmul.f32 %v2979, %v2789
        %v3016 = vmul.f32 %v2982, %v2791
        %v3017 = vpack.c.bf16 %v2986, %v2985
        %v3018 = vpack.c.bf16 %v2988, %v2987
        %v3019 = vpack.c.bf16 %v2990, %v2989
        %v3020 = vpack.c.bf16 %v2992, %v2991
        %v3021 = vpack.c.bf16 %v2994, %v2993
        %v3022 = vpack.c.bf16 %v2996, %v2995
        %v3023 = vpack.c.bf16 %v2998, %v2997
        %v3024 = vpack.c.bf16 %v3000, %v2999
        %v3025 = vpack.c.bf16 %v3002, %v3001
        %v3026 = vpack.c.bf16 %v3004, %v3003
        %v3027 = vpack.c.bf16 %v3006, %v3005
        %v3028 = vpack.c.bf16 %v3008, %v3007
        %v3029 = vpack.c.bf16 %v3010, %v3009
        %v3030 = vpack.c.bf16 %v3012, %v3011
        %v3031 = vpack.c.bf16 %v3014, %v3013
        %v3032 = vpack.c.bf16 %v3016, %v3015
        %v3033 = vld [vmem:[#allocation12] sm:$0xf]
        %v3034 = vld [vmem:[#allocation12 + $0x4] sm:$0xf]
        %v3035 = vld [vmem:[#allocation12 + $0x8] sm:$0xf]
        %v3036 = vld [vmem:[#allocation12 + $0xc] sm:$0xf]
        %v3037 = vld [vmem:[#allocation12 + $0x10] sm:$0xf]
        %v3038 = vld [vmem:[#allocation12 + $0x14] sm:$0xf]
        %v3039 = vld [vmem:[#allocation12 + $0x18] sm:$0xf]
        %v3040 = vld [vmem:[#allocation12 + $0x1c] sm:$0xf]
        %v3041 = vld [vmem:[#allocation12 + $0x20] sm:$0xf]
        %v3042 = vld [vmem:[#allocation12 + $0x24] sm:$0xf]
        %v3043 = vld [vmem:[#allocation12 + $0x28] sm:$0xf]
        %v3044 = vld [vmem:[#allocation12 + $0x2c] sm:$0xf]
        %v3045 = vld [vmem:[#allocation12 + $0x30] sm:$0xf]
        %v3046 = vld [vmem:[#allocation12 + $0x34] sm:$0xf]
        %v3047 = vld [vmem:[#allocation12 + $0x38] sm:$0xf]
        %v3048 = vld [vmem:[#allocation12 + $0x3c] sm:$0xf]
        %v3049 = vld [vmem:[%s7] sm:$0x1]
        %v3051 = vlaneseq
        %v3052 = vshrl.u32 %v3051, 7
        %v3053 = vsub.s32 0, %v3052
        %v3054 = vrot.slane %v3049, %v3053
        %v3072 = vunpack.c.l.b16 %v3033
        %v3073 = vunpack.c.l.b16 %v3034
        %v3074 = vunpack.c.l.b16 %v3035
        %v3075 = vunpack.c.l.b16 %v3036
        %v3076 = vunpack.c.l.b16 %v3037
        %v3077 = vunpack.c.l.b16 %v3038
        %v3078 = vunpack.c.l.b16 %v3039
        %v3079 = vunpack.c.l.b16 %v3040
        %v3080 = vunpack.c.l.b16 %v3041
        %v3081 = vunpack.c.l.b16 %v3042
        %v3082 = vunpack.c.l.b16 %v3043
        %v3083 = vunpack.c.l.b16 %v3044
        %v3084 = vunpack.c.l.b16 %v3045
        %v3085 = vunpack.c.l.b16 %v3046
        %v3086 = vunpack.c.l.b16 %v3047
        %v3087 = vunpack.c.l.b16 %v3048
        %v3088 = vpack.c.b16 %v3073, %v3072
        %v3089 = vpack.c.b16 %v3075, %v3074
        %v3090 = vpack.c.b16 %v3077, %v3076
        %v3091 = vpack.c.b16 %v3079, %v3078
        %v3092 = vpack.c.b16 %v3081, %v3080
        %v3093 = vpack.c.b16 %v3083, %v3082
        %v3094 = vpack.c.b16 %v3085, %v3084
        %v3095 = vpack.c.b16 %v3087, %v3086
        %3104 = vmatprep.subr.bf16.mxu0 0
        %3105 = vmatpush1.bf16.msra.mxu0 %v3088
        %3106 = vmatprep.subr.bf16.mxu0 0
        %3107 = vmatpush1.bf16.msra.mxu0 %v3089
        %3108 = vmatprep.subr.bf16.mxu0 0
        %3109 = vmatpush1.bf16.msra.mxu0 %v3090
        %3110 = vmatprep.subr.bf16.mxu0 0
        %3111 = vmatpush1.bf16.msra.mxu0 %v3091
        %3112 = vmatprep.subr.bf16.mxu0 0
        %3113 = vmatpush1.bf16.msra.mxu0 %v3092
        %3114 = vmatprep.subr.bf16.mxu0 0
        %3115 = vmatpush1.bf16.msra.mxu0 %v3093
        %3116 = vmatprep.subr.bf16.mxu0 0
        %3117 = vmatpush1.bf16.msra.mxu0 %v3094
        %3118 = vmatprep.subr.bf16.mxu0 0
        %3119 = vmatpush1.bf16.msra.mxu0 %v3095
        %3120 = vmatprep.subr.bf16.mxu0 0
        %3121 = vmatpush1.bf16.msra.mxu0 0
        %3122 = vmatprep.subr.bf16.mxu0 0
        %3123 = vmatpush1.bf16.msra.mxu0 0
        %3124 = vmatprep.subr.bf16.mxu0 0
        %3125 = vmatpush1.bf16.msra.mxu0 0
        %3126 = vmatprep.subr.bf16.mxu0 0
        %3127 = vmatpush1.bf16.msra.mxu0 0
        %3128 = vmatprep.subr.bf16.mxu0 0
        %3129 = vmatpush1.bf16.msra.mxu0 0
        %3130 = vmatprep.subr.bf16.mxu0 0
        %3131 = vmatpush1.bf16.msra.mxu0 0
        %3132 = vmatprep.subr.bf16.mxu0 0
        %3133 = vmatpush1.bf16.msra.mxu0 0
        %3134 = vmatprep.subr.bf16.mxu0 0
        %3135 = vmatpush1.bf16.msra.mxu0 0
        %3136 = vmatprep.mubr.bf16.mxu0 0
        %3137 = vmatmul.mubr.bf16.gmra.mrb[0].mxu0 %v3017
        %v3138 = vpop.f32.mrb[0].mxu0
        %v3139 = vadd.f32 %v3054, %v3138
        %v3140 = vpop.f32.mrb[0].mxu0
        %v3141 = vpop.f32.mrb[0].mxu0
        %v3142 = vadd.f32 %v3054, %v3141
        %v3143 = vpop.f32.mrb[0].mxu0
        %3144 = vmatprep.mubr.bf16.mxu0 0
        %3145 = vmatmul.mubr.bf16.gmra.mrb[0].mxu0 %v3018
        %v3146 = vpop.f32.mrb[0].mxu0
        %v3147 = vadd.f32 %v3054, %v3146
        %v3148 = vpop.f32.mrb[0].mxu0
        %v3149 = vpop.f32.mrb[0].mxu0
        %v3150 = vadd.f32 %v3054, %v3149
        %v3151 = vpop.f32.mrb[0].mxu0
        %3152 = vmatprep.mubr.bf16.mxu0 0
        %3153 = vmatmul.mubr.bf16.gmra.mrb[0].mxu0 %v3019
        %v3154 = vpop.f32.mrb[0].mxu0
        %v3155 = vadd.f32 %v3054, %v3154
        %v3156 = vpop.f32.mrb[0].mxu0
        %v3157 = vpop.f32.mrb[0].mxu0
        %v3158 = vadd.f32 %v3054, %v3157
        %v3159 = vpop.f32.mrb[0].mxu0
        %3160 = vmatprep.mubr.bf16.mxu0 0
        %3161 = vmatmul.mubr.bf16.gmra.mrb[0].mxu0 %v3020
        %v3162 = vpop.f32.mrb[0].mxu0
        %v3163 = vadd.f32 %v3054, %v3162
        %v3164 = vpop.f32.mrb[0].mxu0
        %v3165 = vpop.f32.mrb[0].mxu0
        %v3166 = vadd.f32 %v3054, %v3165
        %v3167 = vpop.f32.mrb[0].mxu0
        %3168 = vmatprep.mubr.bf16.mxu0 0
        %3169 = vmatmul.mubr.bf16.gmra.mrb[0].mxu0 %v3021
        %v3170 = vpop.f32.mrb[0].mxu0
        %v3171 = vadd.f32 %v3054, %v3170
        %v3172 = vpop.f32.mrb[0].mxu0
        %v3173 = vpop.f32.mrb[0].mxu0
        %v3174 = vadd.f32 %v3054, %v3173
        %v3175 = vpop.f32.mrb[0].mxu0
        %3176 = vmatprep.mubr.bf16.mxu0 0
        %3177 = vmatmul.mubr.bf16.gmra.mrb[0].mxu0 %v3022
        %v3178 = vpop.f32.mrb[0].mxu0
        %v3179 = vadd.f32 %v3054, %v3178
        %v3180 = vpop.f32.mrb[0].mxu0
        %v3181 = vpop.f32.mrb[0].mxu0
        %v3182 = vadd.f32 %v3054, %v3181
        %v3183 = vpop.f32.mrb[0].mxu0
        %3184 = vmatprep.mubr.bf16.mxu0 0
        %3185 = vmatmul.mubr.bf16.gmra.mrb[0].mxu0 %v3023
        %v3186 = vpop.f32.mrb[0].mxu0
        %v3187 = vadd.f32 %v3054, %v3186
        %v3188 = vpop.f32.mrb[0].mxu0
        %v3189 = vpop.f32.mrb[0].mxu0
        %v3190 = vadd.f32 %v3054, %v3189
        %v3191 = vpop.f32.mrb[0].mxu0
        %3192 = vmatprep.mubr.bf16.mxu0 0
        %3193 = vmatmul.mubr.bf16.gmra.mrb[0].mxu0 %v3024
        %v3194 = vpop.f32.mrb[0].mxu0
        %v3195 = vadd.f32 %v3054, %v3194
        %v3196 = vpop.f32.mrb[0].mxu0
        %v3197 = vpop.f32.mrb[0].mxu0
        %v3198 = vadd.f32 %v3054, %v3197
        %v3199 = vpop.f32.mrb[0].mxu0
        %3200 = vmatprep.mubr.bf16.mxu0 0
        %3201 = vmatmul.mubr.bf16.gmra.mrb[0].mxu0 %v3025
        %v3202 = vpop.f32.mrb[0].mxu0
        %v3203 = vadd.f32 %v3054, %v3202
        %v3204 = vpop.f32.mrb[0].mxu0
        %v3205 = vpop.f32.mrb[0].mxu0
        %v3206 = vadd.f32 %v3054, %v3205
        %v3207 = vpop.f32.mrb[0].mxu0
        %3208 = vmatprep.mubr.bf16.mxu0 0
        %3209 = vmatmul.mubr.bf16.gmra.mrb[0].mxu0 %v3026
        %v3210 = vpop.f32.mrb[0].mxu0
        %v3211 = vadd.f32 %v3054, %v3210
        %v3212 = vpop.f32.mrb[0].mxu0
        %v3213 = vpop.f32.mrb[0].mxu0
        %v3214 = vadd.f32 %v3054, %v3213
        %v3215 = vpop.f32.mrb[0].mxu0
        %3216 = vmatprep.mubr.bf16.mxu0 0
        %3217 = vmatmul.mubr.bf16.gmra.mrb[0].mxu0 %v3027
        %v3218 = vpop.f32.mrb[0].mxu0
        %v3219 = vadd.f32 %v3054, %v3218
        %v3220 = vpop.f32.mrb[0].mxu0
        %v3221 = vpop.f32.mrb[0].mxu0
        %v3222 = vadd.f32 %v3054, %v3221
        %v3223 = vpop.f32.mrb[0].mxu0
        %3224 = vmatprep.mubr.bf16.mxu0 0
        %3225 = vmatmul.mubr.bf16.gmra.mrb[0].mxu0 %v3028
        %v3226 = vpop.f32.mrb[0].mxu0
        %v3227 = vadd.f32 %v3054, %v3226
        %v3228 = vpop.f32.mrb[0].mxu0
        %v3229 = vpop.f32.mrb[0].mxu0
        %v3230 = vadd.f32 %v3054, %v3229
        %v3231 = vpop.f32.mrb[0].mxu0
        %3232 = vmatprep.mubr.bf16.mxu0 0
        %3233 = vmatmul.mubr.bf16.gmra.mrb[0].mxu0 %v3029
        %v3234 = vpop.f32.mrb[0].mxu0
        %v3235 = vadd.f32 %v3054, %v3234
        %v3236 = vpop.f32.mrb[0].mxu0
        %v3237 = vpop.f32.mrb[0].mxu0
        %v3238 = vadd.f32 %v3054, %v3237
        %v3239 = vpop.f32.mrb[0].mxu0
        %3240 = vmatprep.mubr.bf16.mxu0 0
        %3241 = vmatmul.mubr.bf16.gmra.mrb[0].mxu0 %v3030
        %v3242 = vpop.f32.mrb[0].mxu0
        %v3243 = vadd.f32 %v3054, %v3242
        %v3244 = vpop.f32.mrb[0].mxu0
        %v3245 = vpop.f32.mrb[0].mxu0
        %v3246 = vadd.f32 %v3054, %v3245
        %v3247 = vpop.f32.mrb[0].mxu0
        %3248 = vmatprep.mubr.bf16.mxu0 0
        %3249 = vmatmul.mubr.bf16.gmra.mrb[0].mxu0 %v3031
        %v3250 = vpop.f32.mrb[0].mxu0
        %v3251 = vadd.f32 %v3054, %v3250
        %v3252 = vpop.f32.mrb[0].mxu0
        %v3253 = vpop.f32.mrb[0].mxu0
        %v3254 = vadd.f32 %v3054, %v3253
        %v3255 = vpop.f32.mrb[0].mxu0
        %3256 = vmatprep.mubr.bf16.mxu0 0
        %3257 = vmatmul.mubr.bf16.gmra.mrb[0].mxu0 %v3032
        %v3258 = vpop.f32.mrb[0].mxu0
        %v3259 = vadd.f32 %v3054, %v3258
        %v3260 = vpop.f32.mrb[0].mxu0
        %v3261 = vpop.f32.mrb[0].mxu0
        %v3262 = vadd.f32 %v3054, %v3261
        %v3263 = vpop.f32.mrb[0].mxu0
        %3264 = vdwg.mxu0
        %v3265 = vpack.c.bf16 %v3142, %v3139
        %v3266 = vpack.c.bf16 %v3150, %v3147
        %v3267 = vpack.c.bf16 %v3158, %v3155
        %v3268 = vpack.c.bf16 %v3166, %v3163
        %v3269 = vpack.c.bf16 %v3174, %v3171
        %v3270 = vpack.c.bf16 %v3182, %v3179
        %v3271 = vpack.c.bf16 %v3190, %v3187
        %v3272 = vpack.c.bf16 %v3198, %v3195
        %v3273 = vpack.c.bf16 %v3206, %v3203
        %v3274 = vpack.c.bf16 %v3214, %v3211
        %v3275 = vpack.c.bf16 %v3222, %v3219
        %v3276 = vpack.c.bf16 %v3230, %v3227
        %v3277 = vpack.c.bf16 %v3238, %v3235
        %v3278 = vpack.c.bf16 %v3246, %v3243
        %v3279 = vpack.c.bf16 %v3254, %v3251
        %v3280 = vpack.c.bf16 %v3262, %v3259
        %v3297 = vunpack.c.l.b16 %v3265
        %v3298 = vunpack.c.h.b16 %v3265
        %v3299 = vunpack.c.l.b16 %v3266
        %v3300 = vunpack.c.h.b16 %v3266
        %v3301 = vunpack.c.l.b16 %v3267
        %v3302 = vunpack.c.h.b16 %v3267
        %v3303 = vunpack.c.l.b16 %v3268
        %v3304 = vunpack.c.h.b16 %v3268
        %v3305 = vunpack.c.l.b16 %v3269
        %v3306 = vunpack.c.h.b16 %v3269
        %v3307 = vunpack.c.l.b16 %v3270
        %v3308 = vunpack.c.h.b16 %v3270
        %v3309 = vunpack.c.l.b16 %v3271
        %v3310 = vunpack.c.h.b16 %v3271
        %v3311 = vunpack.c.l.b16 %v3272
        %v3312 = vunpack.c.h.b16 %v3272
        %v3313 = vunpack.c.l.b16 %v3273
        %v3314 = vunpack.c.h.b16 %v3273
        %v3315 = vunpack.c.l.b16 %v3274
        %v3316 = vunpack.c.h.b16 %v3274
        %v3317 = vunpack.c.l.b16 %v3275
        %v3318 = vunpack.c.h.b16 %v3275
        %v3319 = vunpack.c.l.b16 %v3276
        %v3320 = vunpack.c.h.b16 %v3276
        %v3321 = vunpack.c.l.b16 %v3277
        %v3322 = vunpack.c.h.b16 %v3277
        %v3323 = vunpack.c.l.b16 %v3278
        %v3324 = vunpack.c.h.b16 %v3278
        %v3325 = vunpack.c.l.b16 %v3279
        %v3326 = vunpack.c.h.b16 %v3279
        %v3327 = vunpack.c.l.b16 %v3280
        %v3328 = vunpack.c.h.b16 %v3280
        %v3329 = vpack.c.b16 %v3297, %v3297
        %v3330 = vpack.c.b16 %v3298, %v3298
        %v3331 = vpack.c.b16 %v3299, %v3299
        %v3332 = vpack.c.b16 %v3300, %v3300
        %v3333 = vpack.c.b16 %v3301, %v3301
        %v3334 = vpack.c.b16 %v3302, %v3302
        %v3335 = vpack.c.b16 %v3303, %v3303
        %v3336 = vpack.c.b16 %v3304, %v3304
        %v3337 = vpack.c.b16 %v3305, %v3305
        %v3338 = vpack.c.b16 %v3306, %v3306
        %v3339 = vpack.c.b16 %v3307, %v3307
        %v3340 = vpack.c.b16 %v3308, %v3308
        %v3341 = vpack.c.b16 %v3309, %v3309
        %v3342 = vpack.c.b16 %v3310, %v3310
        %v3343 = vpack.c.b16 %v3311, %v3311
        %v3344 = vpack.c.b16 %v3312, %v3312
        %v3345 = vpack.c.b16 %v3313, %v3313
        %v3346 = vpack.c.b16 %v3314, %v3314
        %v3347 = vpack.c.b16 %v3315, %v3315
        %v3348 = vpack.c.b16 %v3316, %v3316
        %v3349 = vpack.c.b16 %v3317, %v3317
        %v3350 = vpack.c.b16 %v3318, %v3318
        %v3351 = vpack.c.b16 %v3319, %v3319
        %v3352 = vpack.c.b16 %v3320, %v3320
        %v3353 = vpack.c.b16 %v3321, %v3321
        %v3354 = vpack.c.b16 %v3322, %v3322
        %v3355 = vpack.c.b16 %v3323, %v3323
        %v3356 = vpack.c.b16 %v3324, %v3324
        %v3357 = vpack.c.b16 %v3325, %v3325
        %v3358 = vpack.c.b16 %v3326, %v3326
        %v3359 = vpack.c.b16 %v3327, %v3327
        %v3360 = vpack.c.b16 %v3328, %v3328
        %3393 = vst [vmem:[%s522] sm:$0xf] %v3329
        %3394 = vst [vmem:[%s522 + $0x4] sm:$0xf] %v3330
        %3395 = vst [vmem:[%s522 + $0x8] sm:$0xf] %v3331
        %3396 = vst [vmem:[%s522 + $0xc] sm:$0xf] %v3332
        %3397 = vst [vmem:[%s522 + $0x10] sm:$0xf] %v3333
        %3398 = vst [vmem:[%s522 + $0x14] sm:$0xf] %v3334
        %3399 = vst [vmem:[%s522 + $0x18] sm:$0xf] %v3335
        %3400 = vst [vmem:[%s522 + $0x1c] sm:$0xf] %v3336
        %3401 = vst [vmem:[%s522 + $0x20] sm:$0xf] %v3337
        %3402 = vst [vmem:[%s522 + $0x24] sm:$0xf] %v3338
        %3403 = vst [vmem:[%s522 + $0x28] sm:$0xf] %v3339
        %3404 = vst [vmem:[%s522 + $0x2c] sm:$0xf] %v3340
        %3405 = vst [vmem:[%s522 + $0x30] sm:$0xf] %v3341
        %3406 = vst [vmem:[%s522 + $0x34] sm:$0xf] %v3342
        %3407 = vst [vmem:[%s522 + $0x38] sm:$0xf] %v3343
        %3408 = vst [vmem:[%s522 + $0x3c] sm:$0xf] %v3344
        %3409 = vst [vmem:[%s522 + $0x40] sm:$0xf] %v3345
        %3410 = vst [vmem:[%s522 + $0x44] sm:$0xf] %v3346
        %3411 = vst [vmem:[%s522 + $0x48] sm:$0xf] %v3347
        %3412 = vst [vmem:[%s522 + $0x4c] sm:$0xf] %v3348
        %3413 = vst [vmem:[%s522 + $0x50] sm:$0xf] %v3349
        %3414 = vst [vmem:[%s522 + $0x54] sm:$0xf] %v3350
        %3415 = vst [vmem:[%s522 + $0x58] sm:$0xf] %v3351
        %3416 = vst [vmem:[%s522 + $0x5c] sm:$0xf] %v3352
        %3417 = vst [vmem:[%s522 + $0x60] sm:$0xf] %v3353
        %3418 = vst [vmem:[%s522 + $0x64] sm:$0xf] %v3354
        %3419 = vst [vmem:[%s522 + $0x68] sm:$0xf] %v3355
        %3420 = vst [vmem:[%s522 + $0x6c] sm:$0xf] %v3356
        %3421 = vst [vmem:[%s522 + $0x70] sm:$0xf] %v3357
        %3422 = vst [vmem:[%s522 + $0x74] sm:$0xf] %v3358
        %3423 = vst [vmem:[%s522 + $0x78] sm:$0xf] %v3359
        %3424 = vst [vmem:[%s522 + $0x7c] sm:$0xf] %v3360
        %3425 = vmatprep.subr.bf16.mxu0 0
        %3426 = vmatpush1.bf16.xpose.msra.mxu0 %v2119
        %3427 = vmatprep.subr.bf16.mxu0 0
        %3428 = vmatpush1.bf16.xpose.msra.mxu0 %v2120
        %3429 = vmatprep.subr.bf16.mxu0 0
        %3430 = vmatpush1.bf16.xpose.msra.mxu0 %v2121
        %3431 = vmatprep.subr.bf16.mxu0 0
        %3432 = vmatpush1.bf16.xpose.msra.mxu0 %v2122
        %3433 = vmatprep.subr.bf16.mxu0 0
        %3434 = vmatpush1.bf16.xpose.msra.mxu0 %v2123
        %3435 = vmatprep.subr.bf16.mxu0 0
        %3436 = vmatpush1.bf16.xpose.msra.mxu0 %v2124
        %3437 = vmatprep.subr.bf16.mxu0 0
        %3438 = vmatpush1.bf16.xpose.msra.mxu0 %v2125
        %3439 = vmatprep.subr.bf16.mxu0 0
        %3440 = vmatpush1.bf16.xpose.msra.mxu0 %v2126
        %3441 = vmatprep.subr.bf16.mxu0 0
        %3442 = vmatpush1.bf16.xpose.msra.mxu0 %v2127
        %3443 = vmatprep.subr.bf16.mxu0 0
        %3444 = vmatpush1.bf16.xpose.msra.mxu0 %v2128
        %3445 = vmatprep.subr.bf16.mxu0 0
        %3446 = vmatpush1.bf16.xpose.msra.mxu0 %v2129
        %3447 = vmatprep.subr.bf16.mxu0 0
        %3448 = vmatpush1.bf16.xpose.msra.mxu0 %v2130
        %3449 = vmatprep.subr.bf16.mxu0 0
        %3450 = vmatpush1.bf16.xpose.msra.mxu0 %v2131
        %3451 = vmatprep.subr.bf16.mxu0 0
        %3452 = vmatpush1.bf16.xpose.msra.mxu0 %v2132
        %3453 = vmatprep.subr.bf16.mxu0 0
        %3454 = vmatpush1.bf16.xpose.msra.mxu0 %v2133
        %3455 = vmatprep.subr.bf16.mxu0 0
        %3456 = vmatpush1.bf16.xpose.msra.mxu0 %v2134
        %3457 = vmatprep.mubr.bf16.mxu0 0
        %3458 = vmatmul.mubr.bf16.gmra.mrb[0].mxu0 %v2103
        %v3459 = vpop.f32.mrb[0].mxu0
        %v3460 = vadd.f32 0.0, %v3459
        %v3461 = vpop.f32.mrb[0].mxu0
        %v3462 = vadd.f32 0.0, %v3461
        %v3463 = vpop.f32.mrb[0].mxu0
        %v3464 = vadd.f32 0.0, %v3463
        %v3465 = vpop.f32.mrb[0].mxu0
        %v3466 = vadd.f32 0.0, %v3465
        %3467 = vmatprep.mubr.bf16.mxu0 0
        %3468 = vmatmul.mubr.bf16.gmra.mrb[0].mxu0 %v2104
        %v3469 = vpop.f32.mrb[0].mxu0
        %v3470 = vadd.f32 0.0, %v3469
        %v3471 = vpop.f32.mrb[0].mxu0
        %v3472 = vadd.f32 0.0, %v3471
        %v3473 = vpop.f32.mrb[0].mxu0
        %v3474 = vadd.f32 0.0, %v3473
        %v3475 = vpop.f32.mrb[0].mxu0
        %v3476 = vadd.f32 0.0, %v3475
        %3477 = vmatprep.mubr.bf16.mxu0 0
        %3478 = vmatmul.mubr.bf16.gmra.mrb[0].mxu0 %v2105
        %v3479 = vpop.f32.mrb[0].mxu0
        %v3480 = vadd.f32 0.0, %v3479
        %v3481 = vpop.f32.mrb[0].mxu0
        %v3482 = vadd.f32 0.0, %v3481
        %v3483 = vpop.f32.mrb[0].mxu0
        %v3484 = vadd.f32 0.0, %v3483
        %v3485 = vpop.f32.mrb[0].mxu0
        %v3486 = vadd.f32 0.0, %v3485
        %3487 = vmatprep.mubr.bf16.mxu0 0
        %3488 = vmatmul.mubr.bf16.gmra.mrb[0].mxu0 %v2106
        %v3489 = vpop.f32.mrb[0].mxu0
        %v3490 = vadd.f32 0.0, %v3489
        %v3491 = vpop.f32.mrb[0].mxu0
        %v3492 = vadd.f32 0.0, %v3491
        %v3493 = vpop.f32.mrb[0].mxu0
        %v3494 = vadd.f32 0.0, %v3493
        %v3495 = vpop.f32.mrb[0].mxu0
        %v3496 = vadd.f32 0.0, %v3495
        %3497 = vmatprep.mubr.bf16.mxu0 0
        %3498 = vmatmul.mubr.bf16.gmra.mrb[0].mxu0 %v2107
        %v3499 = vpop.f32.mrb[0].mxu0
        %v3500 = vadd.f32 0.0, %v3499
        %v3501 = vpop.f32.mrb[0].mxu0
        %v3502 = vadd.f32 0.0, %v3501
        %v3503 = vpop.f32.mrb[0].mxu0
        %v3504 = vadd.f32 0.0, %v3503
        %v3505 = vpop.f32.mrb[0].mxu0
        %v3506 = vadd.f32 0.0, %v3505
        %3507 = vmatprep.mubr.bf16.mxu0 0
        %3508 = vmatmul.mubr.bf16.gmra.mrb[0].mxu0 %v2108
        %v3509 = vpop.f32.mrb[0].mxu0
        %v3510 = vadd.f32 0.0, %v3509
        %v3511 = vpop.f32.mrb[0].mxu0
        %v3512 = vadd.f32 0.0, %v3511
        %v3513 = vpop.f32.mrb[0].mxu0
        %v3514 = vadd.f32 0.0, %v3513
        %v3515 = vpop.f32.mrb[0].mxu0
        %v3516 = vadd.f32 0.0, %v3515
        %3517 = vmatprep.mubr.bf16.mxu0 0
        %3518 = vmatmul.mubr.bf16.gmra.mrb[0].mxu0 %v2109
        %v3519 = vpop.f32.mrb[0].mxu0
        %v3520 = vadd.f32 0.0, %v3519
        %v3521 = vpop.f32.mrb[0].mxu0
        %v3522 = vadd.f32 0.0, %v3521
        %v3523 = vpop.f32.mrb[0].mxu0
        %v3524 = vadd.f32 0.0, %v3523
        %v3525 = vpop.f32.mrb[0].mxu0
        %v3526 = vadd.f32 0.0, %v3525
        %3527 = vmatprep.mubr.bf16.mxu0 0
        %3528 = vmatmul.mubr.bf16.gmra.mrb[0].mxu0 %v2110
        %v3529 = vpop.f32.mrb[0].mxu0
        %v3530 = vadd.f32 0.0, %v3529
        %v3531 = vpop.f32.mrb[0].mxu0
        %v3532 = vadd.f32 0.0, %v3531
        %v3533 = vpop.f32.mrb[0].mxu0
        %v3534 = vadd.f32 0.0, %v3533
        %v3535 = vpop.f32.mrb[0].mxu0
        %v3536 = vadd.f32 0.0, %v3535
        %3537 = vmatprep.mubr.bf16.mxu0 0
        %3538 = vmatmul.mubr.bf16.gmra.mrb[0].mxu0 %v2111
        %v3539 = vpop.f32.mrb[0].mxu0
        %v3540 = vadd.f32 0.0, %v3539
        %v3541 = vpop.f32.mrb[0].mxu0
        %v3542 = vadd.f32 0.0, %v3541
        %v3543 = vpop.f32.mrb[0].mxu0
        %v3544 = vadd.f32 0.0, %v3543
        %v3545 = vpop.f32.mrb[0].mxu0
        %v3546 = vadd.f32 0.0, %v3545
        %3547 = vmatprep.mubr.bf16.mxu0 0
        %3548 = vmatmul.mubr.bf16.gmra.mrb[0].mxu0 %v2112
        %v3549 = vpop.f32.mrb[0].mxu0
        %v3550 = vadd.f32 0.0, %v3549
        %v3551 = vpop.f32.mrb[0].mxu0
        %v3552 = vadd.f32 0.0, %v3551
        %v3553 = vpop.f32.mrb[0].mxu0
        %v3554 = vadd.f32 0.0, %v3553
        %v3555 = vpop.f32.mrb[0].mxu0
        %v3556 = vadd.f32 0.0, %v3555
        %3557 = vmatprep.mubr.bf16.mxu0 0
        %3558 = vmatmul.mubr.bf16.gmra.mrb[0].mxu0 %v2113
        %v3559 = vpop.f32.mrb[0].mxu0
        %v3560 = vadd.f32 0.0, %v3559
        %v3561 = vpop.f32.mrb[0].mxu0
        %v3562 = vadd.f32 0.0, %v3561
        %v3563 = vpop.f32.mrb[0].mxu0
        %v3564 = vadd.f32 0.0, %v3563
        %v3565 = vpop.f32.mrb[0].mxu0
        %v3566 = vadd.f32 0.0, %v3565
        %3567 = vmatprep.mubr.bf16.mxu0 0
        %3568 = vmatmul.mubr.bf16.gmra.mrb[0].mxu0 %v2114
        %v3569 = vpop.f32.mrb[0].mxu0
        %v3570 = vadd.f32 0.0, %v3569
        %v3571 = vpop.f32.mrb[0].mxu0
        %v3572 = vadd.f32 0.0, %v3571
        %v3573 = vpop.f32.mrb[0].mxu0
        %v3574 = vadd.f32 0.0, %v3573
        %v3575 = vpop.f32.mrb[0].mxu0
        %v3576 = vadd.f32 0.0, %v3575
        %3577 = vmatprep.mubr.bf16.mxu0 0
        %3578 = vmatmul.mubr.bf16.gmra.mrb[0].mxu0 %v2115
        %v3579 = vpop.f32.mrb[0].mxu0
        %v3580 = vadd.f32 0.0, %v3579
        %v3581 = vpop.f32.mrb[0].mxu0
        %v3582 = vadd.f32 0.0, %v3581
        %v3583 = vpop.f32.mrb[0].mxu0
        %v3584 = vadd.f32 0.0, %v3583
        %v3585 = vpop.f32.mrb[0].mxu0
        %v3586 = vadd.f32 0.0, %v3585
        %3587 = vmatprep.mubr.bf16.mxu0 0
        %3588 = vmatmul.mubr.bf16.gmra.mrb[0].mxu0 %v2116
        %v3589 = vpop.f32.mrb[0].mxu0
        %v3590 = vadd.f32 0.0, %v3589
        %v3591 = vpop.f32.mrb[0].mxu0
        %v3592 = vadd.f32 0.0, %v3591
        %v3593 = vpop.f32.mrb[0].mxu0
        %v3594 = vadd.f32 0.0, %v3593
        %v3595 = vpop.f32.mrb[0].mxu0
        %v3596 = vadd.f32 0.0, %v3595
        %3597 = vmatprep.mubr.bf16.mxu0 0
        %3598 = vmatmul.mubr.bf16.gmra.mrb[0].mxu0 %v2117
        %v3599 = vpop.f32.mrb[0].mxu0
        %v3600 = vadd.f32 0.0, %v3599
        %v3601 = vpop.f32.mrb[0].mxu0
        %v3602 = vadd.f32 0.0, %v3601
        %v3603 = vpop.f32.mrb[0].mxu0
        %v3604 = vadd.f32 0.0, %v3603
        %v3605 = vpop.f32.mrb[0].mxu0
        %v3606 = vadd.f32 0.0, %v3605
        %3607 = vmatprep.mubr.bf16.mxu0 0
        %3608 = vmatmul.mubr.bf16.gmra.mrb[0].mxu0 %v2118
        %v3609 = vpop.f32.mrb[0].mxu0
        %v3610 = vadd.f32 0.0, %v3609
        %v3611 = vpop.f32.mrb[0].mxu0
        %v3612 = vadd.f32 0.0, %v3611
        %v3613 = vpop.f32.mrb[0].mxu0
        %v3614 = vadd.f32 0.0, %v3613
        %v3615 = vpop.f32.mrb[0].mxu0
        %v3616 = vadd.f32 0.0, %v3615
        %3617 = vdwg.mxu0
        %v3618 = vmax.f32 %v3460, %v3462
        %3619 = vmax.xlane.f32.xlu0 %v3618
        %v3620 = vpop.xlane.xlu0 %3619
        %v3621 = vmax.f32 %v3464, %v3466
        %3622 = vmax.xlane.f32.xlu0 %v3621
        %v3623 = vpop.xlane.xlu0 %3622
        %v3624 = vmax.f32 %v3470, %v3472
        %3625 = vmax.xlane.f32.xlu0 %v3624
        %v3626 = vpop.xlane.xlu0 %3625
        %v3627 = vmax.f32 %v3474, %v3476
        %3628 = vmax.xlane.f32.xlu0 %v3627
        %v3629 = vpop.xlane.xlu0 %3628
        %v3630 = vmax.f32 %v3480, %v3482
        %3631 = vmax.xlane.f32.xlu0 %v3630
        %v3632 = vpop.xlane.xlu0 %3631
        %v3633 = vmax.f32 %v3484, %v3486
        %3634 = vmax.xlane.f32.xlu0 %v3633
        %v3635 = vpop.xlane.xlu0 %3634
        %v3636 = vmax.f32 %v3490, %v3492
        %3637 = vmax.xlane.f32.xlu0 %v3636
        %v3638 = vpop.xlane.xlu0 %3637
        %v3639 = vmax.f32 %v3494, %v3496
        %3640 = vmax.xlane.f32.xlu0 %v3639
        %v3641 = vpop.xlane.xlu0 %3640
        %v3642 = vmax.f32 %v3500, %v3502
        %3643 = vmax.xlane.f32.xlu0 %v3642
        %v3644 = vpop.xlane.xlu0 %3643
        %v3645 = vmax.f32 %v3504, %v3506
        %3646 = vmax.xlane.f32.xlu0 %v3645
        %v3647 = vpop.xlane.xlu0 %3646
        %v3648 = vmax.f32 %v3510, %v3512
        %3649 = vmax.xlane.f32.xlu0 %v3648
        %v3650 = vpop.xlane.xlu0 %3649
        %v3651 = vmax.f32 %v3514, %v3516
        %3652 = vmax.xlane.f32.xlu0 %v3651
        %v3653 = vpop.xlane.xlu0 %3652
        %v3654 = vmax.f32 %v3520, %v3522
        %3655 = vmax.xlane.f32.xlu0 %v3654
        %v3656 = vpop.xlane.xlu0 %3655
        %v3657 = vmax.f32 %v3524, %v3526
        %3658 = vmax.xlane.f32.xlu0 %v3657
        %v3659 = vpop.xlane.xlu0 %3658
        %v3660 = vmax.f32 %v3530, %v3532
        %3661 = vmax.xlane.f32.xlu0 %v3660
        %v3662 = vpop.xlane.xlu0 %3661
        %v3663 = vmax.f32 %v3534, %v3536
        %3664 = vmax.xlane.f32.xlu0 %v3663
        %v3665 = vpop.xlane.xlu0 %3664
        %v3666 = vmax.f32 %v3540, %v3542
        %3667 = vmax.xlane.f32.xlu0 %v3666
        %v3668 = vpop.xlane.xlu0 %3667
        %v3669 = vmax.f32 %v3544, %v3546
        %3670 = vmax.xlane.f32.xlu0 %v3669
        %v3671 = vpop.xlane.xlu0 %3670
        %v3672 = vmax.f32 %v3550, %v3552
        %3673 = vmax.xlane.f32.xlu0 %v3672
        %v3674 = vpop.xlane.xlu0 %3673
        %v3675 = vmax.f32 %v3554, %v3556
        %3676 = vmax.xlane.f32.xlu0 %v3675
        %v3677 = vpop.xlane.xlu0 %3676
        %v3678 = vmax.f32 %v3560, %v3562
        %3679 = vmax.xlane.f32.xlu0 %v3678
        %v3680 = vpop.xlane.xlu0 %3679
        %v3681 = vmax.f32 %v3564, %v3566
        %3682 = vmax.xlane.f32.xlu0 %v3681
        %v3683 = vpop.xlane.xlu0 %3682
        %v3684 = vmax.f32 %v3570, %v3572
        %3685 = vmax.xlane.f32.xlu0 %v3684
        %v3686 = vpop.xlane.xlu0 %3685
        %v3687 = vmax.f32 %v3574, %v3576
        %3688 = vmax.xlane.f32.xlu0 %v3687
        %v3689 = vpop.xlane.xlu0 %3688
        %v3690 = vmax.f32 %v3580, %v3582
        %3691 = vmax.xlane.f32.xlu0 %v3690
        %v3692 = vpop.xlane.xlu0 %3691
        %v3693 = vmax.f32 %v3584, %v3586
        %3694 = vmax.xlane.f32.xlu0 %v3693
        %v3695 = vpop.xlane.xlu0 %3694
        %v3696 = vmax.f32 %v3590, %v3592
        %3697 = vmax.xlane.f32.xlu0 %v3696
        %v3698 = vpop.xlane.xlu0 %3697
        %v3699 = vmax.f32 %v3594, %v3596
        %3700 = vmax.xlane.f32.xlu0 %v3699
        %v3701 = vpop.xlane.xlu0 %3700
        %v3702 = vmax.f32 %v3600, %v3602
        %3703 = vmax.xlane.f32.xlu0 %v3702
        %v3704 = vpop.xlane.xlu0 %3703
        %v3705 = vmax.f32 %v3604, %v3606
        %3706 = vmax.xlane.f32.xlu0 %v3705
        %v3707 = vpop.xlane.xlu0 %3706
        %v3708 = vmax.f32 %v3610, %v3612
        %3709 = vmax.xlane.f32.xlu0 %v3708
        %v3710 = vpop.xlane.xlu0 %3709
        %v3711 = vmax.f32 %v3614, %v3616
        %3712 = vmax.xlane.f32.xlu0 %v3711
        %v3713 = vpop.xlane.xlu0 %3712
        %v3714 = vsub.f32 %v3460, %v3620
        %v3715 = vsub.f32 %v3462, %v3620
        %v3716 = vsub.f32 %v3464, %v3623
        %v3717 = vsub.f32 %v3466, %v3623
        %v3718 = vsub.f32 %v3470, %v3626
        %v3719 = vsub.f32 %v3472, %v3626
        %v3720 = vsub.f32 %v3474, %v3629
        %v3721 = vsub.f32 %v3476, %v3629
        %v3722 = vsub.f32 %v3480, %v3632
        %v3723 = vsub.f32 %v3482, %v3632
        %v3724 = vsub.f32 %v3484, %v3635
        %v3725 = vsub.f32 %v3486, %v3635
        %v3726 = vsub.f32 %v3490, %v3638
        %v3727 = vsub.f32 %v3492, %v3638
        %v3728 = vsub.f32 %v3494, %v3641
        %v3729 = vsub.f32 %v3496, %v3641
        %v3730 = vsub.f32 %v3500, %v3644
        %v3731 = vsub.f32 %v3502, %v3644
        %v3732 = vsub.f32 %v3504, %v3647
        %v3733 = vsub.f32 %v3506, %v3647
        %v3734 = vsub.f32 %v3510, %v3650
        %v3735 = vsub.f32 %v3512, %v3650
        %v3736 = vsub.f32 %v3514, %v3653
        %v3737 = vsub.f32 %v3516, %v3653
        %v3738 = vsub.f32 %v3520, %v3656
        %v3739 = vsub.f32 %v3522, %v3656
        %v3740 = vsub.f32 %v3524, %v3659
        %v3741 = vsub.f32 %v3526, %v3659
        %v3742 = vsub.f32 %v3530, %v3662
        %v3743 = vsub.f32 %v3532, %v3662
        %v3744 = vsub.f32 %v3534, %v3665
        %v3745 = vsub.f32 %v3536, %v3665
        %v3746 = vsub.f32 %v3540, %v3668
        %v3747 = vsub.f32 %v3542, %v3668
        %v3748 = vsub.f32 %v3544, %v3671
        %v3749 = vsub.f32 %v3546, %v3671
        %v3750 = vsub.f32 %v3550, %v3674
        %v3751 = vsub.f32 %v3552, %v3674
        %v3752 = vsub.f32 %v3554, %v3677
        %v3753 = vsub.f32 %v3556, %v3677
        %v3754 = vsub.f32 %v3560, %v3680
        %v3755 = vsub.f32 %v3562, %v3680
        %v3756 = vsub.f32 %v3564, %v3683
        %v3757 = vsub.f32 %v3566, %v3683
        %v3758 = vsub.f32 %v3570, %v3686
        %v3759 = vsub.f32 %v3572, %v3686
        %v3760 = vsub.f32 %v3574, %v3689
        %v3761 = vsub.f32 %v3576, %v3689
        %v3762 = vsub.f32 %v3580, %v3692
        %v3763 = vsub.f32 %v3582, %v3692
        %v3764 = vsub.f32 %v3584, %v3695
        %v3765 = vsub.f32 %v3586, %v3695
        %v3766 = vsub.f32 %v3590, %v3698
        %v3767 = vsub.f32 %v3592, %v3698
        %v3768 = vsub.f32 %v3594, %v3701
        %v3769 = vsub.f32 %v3596, %v3701
        %v3770 = vsub.f32 %v3600, %v3704
        %v3771 = vsub.f32 %v3602, %v3704
        %v3772 = vsub.f32 %v3604, %v3707
        %v3773 = vsub.f32 %v3606, %v3707
        %v3774 = vsub.f32 %v3610, %v3710
        %v3775 = vsub.f32 %v3612, %v3710
        %v3776 = vsub.f32 %v3614, %v3713
        %v3777 = vsub.f32 %v3616, %v3713
        %v3778 = vmul.f32 %v3714, 1.442695
        %v3779 = vpow.pop %v3778
        %v3780 = vmul.f32 %v3715, 1.442695
        %v3781 = vpow.pop %v3780
        %v3782 = vmul.f32 %v3716, 1.442695
        %v3783 = vpow.pop %v3782
        %v3784 = vmul.f32 %v3717, 1.442695
        %v3785 = vpow.pop %v3784
        %v3786 = vmul.f32 %v3718, 1.442695
        %v3787 = vpow.pop %v3786
        %v3788 = vmul.f32 %v3719, 1.442695
        %v3789 = vpow.pop %v3788
        %v3790 = vmul.f32 %v3720, 1.442695
        %v3791 = vpow.pop %v3790
        %v3792 = vmul.f32 %v3721, 1.442695
        %v3793 = vpow.pop %v3792
        %v3794 = vmul.f32 %v3722, 1.442695
        %v3795 = vpow.pop %v3794
        %v3796 = vmul.f32 %v3723, 1.442695
        %v3797 = vpow.pop %v3796
        %v3798 = vmul.f32 %v3724, 1.442695
        %v3799 = vpow.pop %v3798
        %v3800 = vmul.f32 %v3725, 1.442695
        %v3801 = vpow.pop %v3800
        %v3802 = vmul.f32 %v3726, 1.442695
        %v3803 = vpow.pop %v3802
        %v3804 = vmul.f32 %v3727, 1.442695
        %v3805 = vpow.pop %v3804
        %v3806 = vmul.f32 %v3728, 1.442695
        %v3807 = vpow.pop %v3806
        %v3808 = vmul.f32 %v3729, 1.442695
        %v3809 = vpow.pop %v3808
        %v3810 = vmul.f32 %v3730, 1.442695
        %v3811 = vpow.pop %v3810
        %v3812 = vmul.f32 %v3731, 1.442695
        %v3813 = vpow.pop %v3812
        %v3814 = vmul.f32 %v3732, 1.442695
        %v3815 = vpow.pop %v3814
        %v3816 = vmul.f32 %v3733, 1.442695
        %v3817 = vpow.pop %v3816
        %v3818 = vmul.f32 %v3734, 1.442695
        %v3819 = vpow.pop %v3818
        %v3820 = vmul.f32 %v3735, 1.442695
        %v3821 = vpow.pop %v3820
        %v3822 = vmul.f32 %v3736, 1.442695
        %v3823 = vpow.pop %v3822
        %v3824 = vmul.f32 %v3737, 1.442695
        %v3825 = vpow.pop %v3824
        %v3826 = vmul.f32 %v3738, 1.442695
        %v3827 = vpow.pop %v3826
        %v3828 = vmul.f32 %v3739, 1.442695
        %v3829 = vpow.pop %v3828
        %v3830 = vmul.f32 %v3740, 1.442695
        %v3831 = vpow.pop %v3830
        %v3832 = vmul.f32 %v3741, 1.442695
        %v3833 = vpow.pop %v3832
        %v3834 = vmul.f32 %v3742, 1.442695
        %v3835 = vpow.pop %v3834
        %v3836 = vmul.f32 %v3743, 1.442695
        %v3837 = vpow.pop %v3836
        %v3838 = vmul.f32 %v3744, 1.442695
        %v3839 = vpow.pop %v3838
        %v3840 = vmul.f32 %v3745, 1.442695
        %v3841 = vpow.pop %v3840
        %v3842 = vmul.f32 %v3746, 1.442695
        %v3843 = vpow.pop %v3842
        %v3844 = vmul.f32 %v3747, 1.442695
        %v3845 = vpow.pop %v3844
        %v3846 = vmul.f32 %v3748, 1.442695
        %v3847 = vpow.pop %v3846
        %v3848 = vmul.f32 %v3749, 1.442695
        %v3849 = vpow.pop %v3848
        %v3850 = vmul.f32 %v3750, 1.442695
        %v3851 = vpow.pop %v3850
        %v3852 = vmul.f32 %v3751, 1.442695
        %v3853 = vpow.pop %v3852
        %v3854 = vmul.f32 %v3752, 1.442695
        %v3855 = vpow.pop %v3854
        %v3856 = vmul.f32 %v3753, 1.442695
        %v3857 = vpow.pop %v3856
        %v3858 = vmul.f32 %v3754, 1.442695
        %v3859 = vpow.pop %v3858
        %v3860 = vmul.f32 %v3755, 1.442695
        %v3861 = vpow.pop %v3860
        %v3862 = vmul.f32 %v3756, 1.442695
        %v3863 = vpow.pop %v3862
        %v3864 = vmul.f32 %v3757, 1.442695
        %v3865 = vpow.pop %v3864
        %v3866 = vmul.f32 %v3758, 1.442695
        %v3867 = vpow.pop %v3866
        %v3868 = vmul.f32 %v3759, 1.442695
        %v3869 = vpow.pop %v3868
        %v3870 = vmul.f32 %v3760, 1.442695
        %v3871 = vpow.pop %v3870
        %v3872 = vmul.f32 %v3761, 1.442695
        %v3873 = vpow.pop %v3872
        %v3874 = vmul.f32 %v3762, 1.442695
        %v3875 = vpow.pop %v3874
        %v3876 = vmul.f32 %v3763, 1.442695
        %v3877 = vpow.pop %v3876
        %v3878 = vmul.f32 %v3764, 1.442695
        %v3879 = vpow.pop %v3878
        %v3880 = vmul.f32 %v3765, 1.442695
        %v3881 = vpow.pop %v3880
        %v3882 = vmul.f32 %v3766, 1.442695
        %v3883 = vpow.pop %v3882
        %v3884 = vmul.f32 %v3767, 1.442695
        %v3885 = vpow.pop %v3884
        %v3886 = vmul.f32 %v3768, 1.442695
        %v3887 = vpow.pop %v3886
        %v3888 = vmul.f32 %v3769, 1.442695
        %v3889 = vpow.pop %v3888
        %v3890 = vmul.f32 %v3770, 1.442695
        %v3891 = vpow.pop %v3890
        %v3892 = vmul.f32 %v3771, 1.442695
        %v3893 = vpow.pop %v3892
        %v3894 = vmul.f32 %v3772, 1.442695
        %v3895 = vpow.pop %v3894
        %v3896 = vmul.f32 %v3773, 1.442695
        %v3897 = vpow.pop %v3896
        %v3898 = vmul.f32 %v3774, 1.442695
        %v3899 = vpow.pop %v3898
        %v3900 = vmul.f32 %v3775, 1.442695
        %v3901 = vpow.pop %v3900
        %v3902 = vmul.f32 %v3776, 1.442695
        %v3903 = vpow.pop %v3902
        %v3904 = vmul.f32 %v3777, 1.442695
        %v3905 = vpow.pop %v3904
        %v3906 = vadd.f32 %v3779, %v3781
        %3907 = vadd.xlane.f32.xlu0 %v3906
        %v3908 = vpop.xlane.xlu0 %3907
        %v3909 = vadd.f32 %v3783, %v3785
        %3910 = vadd.xlane.f32.xlu0 %v3909
        %v3911 = vpop.xlane.xlu0 %3910
        %v3912 = vadd.f32 %v3787, %v3789
        %3913 = vadd.xlane.f32.xlu0 %v3912
        %v3914 = vpop.xlane.xlu0 %3913
        %v3915 = vadd.f32 %v3791, %v3793
        %3916 = vadd.xlane.f32.xlu0 %v3915
        %v3917 = vpop.xlane.xlu0 %3916
        %v3918 = vadd.f32 %v3795, %v3797
        %3919 = vadd.xlane.f32.xlu0 %v3918
        %v3920 = vpop.xlane.xlu0 %3919
        %v3921 = vadd.f32 %v3799, %v3801
        %3922 = vadd.xlane.f32.xlu0 %v3921
        %v3923 = vpop.xlane.xlu0 %3922
        %v3924 = vadd.f32 %v3803, %v3805
        %3925 = vadd.xlane.f32.xlu0 %v3924
        %v3926 = vpop.xlane.xlu0 %3925
        %v3927 = vadd.f32 %v3807, %v3809
        %3928 = vadd.xlane.f32.xlu0 %v3927
        %v3929 = vpop.xlane.xlu0 %3928
        %v3930 = vadd.f32 %v3811, %v3813
        %3931 = vadd.xlane.f32.xlu0 %v3930
        %v3932 = vpop.xlane.xlu0 %3931
        %v3933 = vadd.f32 %v3815, %v3817
        %3934 = vadd.xlane.f32.xlu0 %v3933
        %v3935 = vpop.xlane.xlu0 %3934
        %v3936 = vadd.f32 %v3819, %v3821
        %3937 = vadd.xlane.f32.xlu0 %v3936
        %v3938 = vpop.xlane.xlu0 %3937
        %v3939 = vadd.f32 %v3823, %v3825
        %3940 = vadd.xlane.f32.xlu0 %v3939
        %v3941 = vpop.xlane.xlu0 %3940
        %v3942 = vadd.f32 %v3827, %v3829
        %3943 = vadd.xlane.f32.xlu0 %v3942
        %v3944 = vpop.xlane.xlu0 %3943
        %v3945 = vadd.f32 %v3831, %v3833
        %3946 = vadd.xlane.f32.xlu0 %v3945
        %v3947 = vpop.xlane.xlu0 %3946
        %v3948 = vadd.f32 %v3835, %v3837
        %3949 = vadd.xlane.f32.xlu0 %v3948
        %v3950 = vpop.xlane.xlu0 %3949
        %v3951 = vadd.f32 %v3839, %v3841
        %3952 = vadd.xlane.f32.xlu0 %v3951
        %v3953 = vpop.xlane.xlu0 %3952
        %v3954 = vadd.f32 %v3843, %v3845
        %3955 = vadd.xlane.f32.xlu0 %v3954
        %v3956 = vpop.xlane.xlu0 %3955
        %v3957 = vadd.f32 %v3847, %v3849
        %3958 = vadd.xlane.f32.xlu0 %v3957
        %v3959 = vpop.xlane.xlu0 %3958
        %v3960 = vadd.f32 %v3851, %v3853
        %3961 = vadd.xlane.f32.xlu0 %v3960
        %v3962 = vpop.xlane.xlu0 %3961
        %v3963 = vadd.f32 %v3855, %v3857
        %3964 = vadd.xlane.f32.xlu0 %v3963
        %v3965 = vpop.xlane.xlu0 %3964
        %v3966 = vadd.f32 %v3859, %v3861
        %3967 = vadd.xlane.f32.xlu0 %v3966
        %v3968 = vpop.xlane.xlu0 %3967
        %v3969 = vadd.f32 %v3863, %v3865
        %3970 = vadd.xlane.f32.xlu0 %v3969
        %v3971 = vpop.xlane.xlu0 %3970
        %v3972 = vadd.f32 %v3867, %v3869
        %3973 = vadd.xlane.f32.xlu0 %v3972
        %v3974 = vpop.xlane.xlu0 %3973
        %v3975 = vadd.f32 %v3871, %v3873
        %3976 = vadd.xlane.f32.xlu0 %v3975
        %v3977 = vpop.xlane.xlu0 %3976
        %v3978 = vadd.f32 %v3875, %v3877
        %3979 = vadd.xlane.f32.xlu0 %v3978
        %v3980 = vpop.xlane.xlu0 %3979
        %v3981 = vadd.f32 %v3879, %v3881
        %3982 = vadd.xlane.f32.xlu0 %v3981
        %v3983 = vpop.xlane.xlu0 %3982
        %v3984 = vadd.f32 %v3883, %v3885
        %3985 = vadd.xlane.f32.xlu0 %v3984
        %v3986 = vpop.xlane.xlu0 %3985
        %v3987 = vadd.f32 %v3887, %v3889
        %3988 = vadd.xlane.f32.xlu0 %v3987
        %v3989 = vpop.xlane.xlu0 %3988
        %v3990 = vadd.f32 %v3891, %v3893
        %3991 = vadd.xlane.f32.xlu0 %v3990
        %v3992 = vpop.xlane.xlu0 %3991
        %v3993 = vadd.f32 %v3895, %v3897
        %3994 = vadd.xlane.f32.xlu0 %v3993
        %v3995 = vpop.xlane.xlu0 %3994
        %v3996 = vadd.f32 %v3899, %v3901
        %3997 = vadd.xlane.f32.xlu0 %v3996
        %v3998 = vpop.xlane.xlu0 %3997
        %v3999 = vadd.f32 %v3903, %v3905
        %4000 = vadd.xlane.f32.xlu0 %v3999
        %v4001 = vpop.xlane.xlu0 %4000
        %v4002 = vrcp.pop %v3908
        %v4003 = vmul.f32 1.0, %v4002
        %v4004 = vrcp.pop %v3911
        %v4005 = vmul.f32 1.0, %v4004
        %v4006 = vrcp.pop %v3914
        %v4007 = vmul.f32 1.0, %v4006
        %v4008 = vrcp.pop %v3917
        %v4009 = vmul.f32 1.0, %v4008
        %v4010 = vrcp.pop %v3920
        %v4011 = vmul.f32 1.0, %v4010
        %v4012 = vrcp.pop %v3923
        %v4013 = vmul.f32 1.0, %v4012
        %v4014 = vrcp.pop %v3926
        %v4015 = vmul.f32 1.0, %v4014
        %v4016 = vrcp.pop %v3929
        %v4017 = vmul.f32 1.0, %v4016
        %v4018 = vrcp.pop %v3932
        %v4019 = vmul.f32 1.0, %v4018
        %v4020 = vrcp.pop %v3935
        %v4021 = vmul.f32 1.0, %v4020
        %v4022 = vrcp.pop %v3938
        %v4023 = vmul.f32 1.0, %v4022
        %v4024 = vrcp.pop %v3941
        %v4025 = vmul.f32 1.0, %v4024
        %v4026 = vrcp.pop %v3944
        %v4027 = vmul.f32 1.0, %v4026
        %v4028 = vrcp.pop %v3947
        %v4029 = vmul.f32 1.0, %v4028
        %v4030 = vrcp.pop %v3950
        %v4031 = vmul.f32 1.0, %v4030
        %v4032 = vrcp.pop %v3953
        %v4033 = vmul.f32 1.0, %v4032
        %v4034 = vrcp.pop %v3956
        %v4035 = vmul.f32 1.0, %v4034
        %v4036 = vrcp.pop %v3959
        %v4037 = vmul.f32 1.0, %v4036
        %v4038 = vrcp.pop %v3962
        %v4039 = vmul.f32 1.0, %v4038
        %v4040 = vrcp.pop %v3965
        %v4041 = vmul.f32 1.0, %v4040
        %v4042 = vrcp.pop %v3968
        %v4043 = vmul.f32 1.0, %v4042
        %v4044 = vrcp.pop %v3971
        %v4045 = vmul.f32 1.0, %v4044
        %v4046 = vrcp.pop %v3974
        %v4047 = vmul.f32 1.0, %v4046
        %v4048 = vrcp.pop %v3977
        %v4049 = vmul.f32 1.0, %v4048
        %v4050 = vrcp.pop %v3980
        %v4051 = vmul.f32 1.0, %v4050
        %v4052 = vrcp.pop %v3983
        %v4053 = vmul.f32 1.0, %v4052
        %v4054 = vrcp.pop %v3986
        %v4055 = vmul.f32 1.0, %v4054
        %v4056 = vrcp.pop %v3989
        %v4057 = vmul.f32 1.0, %v4056
        %v4058 = vrcp.pop %v3992
        %v4059 = vmul.f32 1.0, %v4058
        %v4060 = vrcp.pop %v3995
        %v4061 = vmul.f32 1.0, %v4060
        %v4062 = vrcp.pop %v3998
        %v4063 = vmul.f32 1.0, %v4062
        %v4064 = vrcp.pop %v4001
        %v4065 = vmul.f32 1.0, %v4064
        %v4066 = vpack.c.bf16 %v3783, %v3779
        %v4067 = vpack.c.bf16 %v3785, %v3781
        %v4068 = vpack.c.bf16 %v3791, %v3787
        %v4069 = vpack.c.bf16 %v3793, %v3789
        %v4070 = vpack.c.bf16 %v3799, %v3795
        %v4071 = vpack.c.bf16 %v3801, %v3797
        %v4072 = vpack.c.bf16 %v3807, %v3803
        %v4073 = vpack.c.bf16 %v3809, %v3805
        %v4074 = vpack.c.bf16 %v3815, %v3811
        %v4075 = vpack.c.bf16 %v3817, %v3813
        %v4076 = vpack.c.bf16 %v3823, %v3819
        %v4077 = vpack.c.bf16 %v3825, %v3821
        %v4078 = vpack.c.bf16 %v3831, %v3827
        %v4079 = vpack.c.bf16 %v3833, %v3829
        %v4080 = vpack.c.bf16 %v3839, %v3835
        %v4081 = vpack.c.bf16 %v3841, %v3837
        %v4082 = vpack.c.bf16 %v3847, %v3843
        %v4083 = vpack.c.bf16 %v3849, %v3845
        %v4084 = vpack.c.bf16 %v3855, %v3851
        %v4085 = vpack.c.bf16 %v3857, %v3853
        %v4086 = vpack.c.bf16 %v3863, %v3859
        %v4087 = vpack.c.bf16 %v3865, %v3861
        %v4088 = vpack.c.bf16 %v3871, %v3867
        %v4089 = vpack.c.bf16 %v3873, %v3869
        %v4090 = vpack.c.bf16 %v3879, %v3875
        %v4091 = vpack.c.bf16 %v3881, %v3877
        %v4092 = vpack.c.bf16 %v3887, %v3883
        %v4093 = vpack.c.bf16 %v3889, %v3885
        %v4094 = vpack.c.bf16 %v3895, %v3891
        %v4095 = vpack.c.bf16 %v3897, %v3893
        %v4096 = vpack.c.bf16 %v3903, %v3899
        %v4097 = vpack.c.bf16 %v3905, %v3901
        %4098 = vmatprep.subr.bf16.mxu0 0
        %4099 = vmatpush1.bf16.msra.mxu0 %v2135
        %4100 = vmatprep.subr.bf16.mxu0 0
        %4101 = vmatpush1.bf16.msra.mxu0 %v2136
        %4102 = vmatprep.subr.bf16.mxu0 0
        %4103 = vmatpush1.bf16.msra.mxu0 %v2137
        %4104 = vmatprep.subr.bf16.mxu0 0
        %4105 = vmatpush1.bf16.msra.mxu0 %v2138
        %4106 = vmatprep.subr.bf16.mxu0 0
        %4107 = vmatpush1.bf16.msra.mxu0 %v2139
        %4108 = vmatprep.subr.bf16.mxu0 0
        %4109 = vmatpush1.bf16.msra.mxu0 %v2140
        %4110 = vmatprep.subr.bf16.mxu0 0
        %4111 = vmatpush1.bf16.msra.mxu0 %v2141
        %4112 = vmatprep.subr.bf16.mxu0 0
        %4113 = vmatpush1.bf16.msra.mxu0 %v2142
        %4114 = vmatprep.subr.bf16.mxu0 0
        %4115 = vmatpush1.bf16.msra.mxu0 %v2143
        %4116 = vmatprep.subr.bf16.mxu0 0
        %4117 = vmatpush1.bf16.msra.mxu0 %v2144
        %4118 = vmatprep.subr.bf16.mxu0 0
        %4119 = vmatpush1.bf16.msra.mxu0 %v2145
        %4120 = vmatprep.subr.bf16.mxu0 0
        %4121 = vmatpush1.bf16.msra.mxu0 %v2146
        %4122 = vmatprep.subr.bf16.mxu0 0
        %4123 = vmatpush1.bf16.msra.mxu0 %v2147
        %4124 = vmatprep.subr.bf16.mxu0 0
        %4125 = vmatpush1.bf16.msra.mxu0 %v2148
        %4126 = vmatprep.subr.bf16.mxu0 0
        %4127 = vmatpush1.bf16.msra.mxu0 %v2149
        %4128 = vmatprep.subr.bf16.mxu0 0
        %4129 = vmatpush1.bf16.msra.mxu0 %v2150
        %4130 = vmatprep.mubr.bf16.mxu0 %v4067
        %4131 = vmatmul.mubr.bf16.gmra.mrb[0].mxu0 %v4066
        %v4132 = vpop.f32.mrb[0].mxu0
        %v4133 = vadd.f32 0.0, %v4132
        %v4134 = vpop.f32.mrb[0].mxu0
        %v4135 = vpop.f32.mrb[0].mxu0
        %v4136 = vadd.f32 0.0, %v4135
        %v4137 = vpop.f32.mrb[0].mxu0
        %4138 = vmatprep.mubr.bf16.mxu0 %v4069
        %4139 = vmatmul.mubr.bf16.gmra.mrb[0].mxu0 %v4068
        %v4140 = vpop.f32.mrb[0].mxu0
        %v4141 = vadd.f32 0.0, %v4140
        %v4142 = vpop.f32.mrb[0].mxu0
        %v4143 = vpop.f32.mrb[0].mxu0
        %v4144 = vadd.f32 0.0, %v4143
        %v4145 = vpop.f32.mrb[0].mxu0
        %4146 = vmatprep.mubr.bf16.mxu0 %v4071
        %4147 = vmatmul.mubr.bf16.gmra.mrb[0].mxu0 %v4070
        %v4148 = vpop.f32.mrb[0].mxu0
        %v4149 = vadd.f32 0.0, %v4148
        %v4150 = vpop.f32.mrb[0].mxu0
        %v4151 = vpop.f32.mrb[0].mxu0
        %v4152 = vadd.f32 0.0, %v4151
        %v4153 = vpop.f32.mrb[0].mxu0
        %4154 = vmatprep.mubr.bf16.mxu0 %v4073
        %4155 = vmatmul.mubr.bf16.gmra.mrb[0].mxu0 %v4072
        %v4156 = vpop.f32.mrb[0].mxu0
        %v4157 = vadd.f32 0.0, %v4156
        %v4158 = vpop.f32.mrb[0].mxu0
        %v4159 = vpop.f32.mrb[0].mxu0
        %v4160 = vadd.f32 0.0, %v4159
        %v4161 = vpop.f32.mrb[0].mxu0
        %4162 = vmatprep.mubr.bf16.mxu0 %v4075
        %4163 = vmatmul.mubr.bf16.gmra.mrb[0].mxu0 %v4074
        %v4164 = vpop.f32.mrb[0].mxu0
        %v4165 = vadd.f32 0.0, %v4164
        %v4166 = vpop.f32.mrb[0].mxu0
        %v4167 = vpop.f32.mrb[0].mxu0
        %v4168 = vadd.f32 0.0, %v4167
        %v4169 = vpop.f32.mrb[0].mxu0
        %4170 = vmatprep.mubr.bf16.mxu0 %v4077
        %4171 = vmatmul.mubr.bf16.gmra.mrb[0].mxu0 %v4076
        %v4172 = vpop.f32.mrb[0].mxu0
        %v4173 = vadd.f32 0.0, %v4172
        %v4174 = vpop.f32.mrb[0].mxu0
        %v4175 = vpop.f32.mrb[0].mxu0
        %v4176 = vadd.f32 0.0, %v4175
        %v4177 = vpop.f32.mrb[0].mxu0
        %4178 = vmatprep.mubr.bf16.mxu0 %v4079
        %4179 = vmatmul.mubr.bf16.gmra.mrb[0].mxu0 %v4078
        %v4180 = vpop.f32.mrb[0].mxu0
        %v4181 = vadd.f32 0.0, %v4180
        %v4182 = vpop.f32.mrb[0].mxu0
        %v4183 = vpop.f32.mrb[0].mxu0
        %v4184 = vadd.f32 0.0, %v4183
        %v4185 = vpop.f32.mrb[0].mxu0
        %4186 = vmatprep.mubr.bf16.mxu0 %v4081
        %4187 = vmatmul.mubr.bf16.gmra.mrb[0].mxu0 %v4080
        %v4188 = vpop.f32.mrb[0].mxu0
        %v4189 = vadd.f32 0.0, %v4188
        %v4190 = vpop.f32.mrb[0].mxu0
        %v4191 = vpop.f32.mrb[0].mxu0
        %v4192 = vadd.f32 0.0, %v4191
        %v4193 = vpop.f32.mrb[0].mxu0
        %4194 = vmatprep.mubr.bf16.mxu0 %v4083
        %4195 = vmatmul.mubr.bf16.gmra.mrb[0].mxu0 %v4082
        %v4196 = vpop.f32.mrb[0].mxu0
        %v4197 = vadd.f32 0.0, %v4196
        %v4198 = vpop.f32.mrb[0].mxu0
        %v4199 = vpop.f32.mrb[0].mxu0
        %v4200 = vadd.f32 0.0, %v4199
        %v4201 = vpop.f32.mrb[0].mxu0
        %4202 = vmatprep.mubr.bf16.mxu0 %v4085
        %4203 = vmatmul.mubr.bf16.gmra.mrb[0].mxu0 %v4084
        %v4204 = vpop.f32.mrb[0].mxu0
        %v4205 = vadd.f32 0.0, %v4204
        %v4206 = vpop.f32.mrb[0].mxu0
        %v4207 = vpop.f32.mrb[0].mxu0
        %v4208 = vadd.f32 0.0, %v4207
        %v4209 = vpop.f32.mrb[0].mxu0
        %4210 = vmatprep.mubr.bf16.mxu0 %v4087
        %4211 = vmatmul.mubr.bf16.gmra.mrb[0].mxu0 %v4086
        %v4212 = vpop.f32.mrb[0].mxu0
        %v4213 = vadd.f32 0.0, %v4212
        %v4214 = vpop.f32.mrb[0].mxu0
        %v4215 = vpop.f32.mrb[0].mxu0
        %v4216 = vadd.f32 0.0, %v4215
        %v4217 = vpop.f32.mrb[0].mxu0
        %4218 = vmatprep.mubr.bf16.mxu0 %v4089
        %4219 = vmatmul.mubr.bf16.gmra.mrb[0].mxu0 %v4088
        %v4220 = vpop.f32.mrb[0].mxu0
        %v4221 = vadd.f32 0.0, %v4220
        %v4222 = vpop.f32.mrb[0].mxu0
        %v4223 = vpop.f32.mrb[0].mxu0
        %v4224 = vadd.f32 0.0, %v4223
        %v4225 = vpop.f32.mrb[0].mxu0
        %4226 = vmatprep.mubr.bf16.mxu0 %v4091
        %4227 = vmatmul.mubr.bf16.gmra.mrb[0].mxu0 %v4090
        %v4228 = vpop.f32.mrb[0].mxu0
        %v4229 = vadd.f32 0.0, %v4228
        %v4230 = vpop.f32.mrb[0].mxu0
        %v4231 = vpop.f32.mrb[0].mxu0
        %v4232 = vadd.f32 0.0, %v4231
        %v4233 = vpop.f32.mrb[0].mxu0
        %4234 = vmatprep.mubr.bf16.mxu0 %v4093
        %4235 = vmatmul.mubr.bf16.gmra.mrb[0].mxu0 %v4092
        %v4236 = vpop.f32.mrb[0].mxu0
        %v4237 = vadd.f32 0.0, %v4236
        %v4238 = vpop.f32.mrb[0].mxu0
        %v4239 = vpop.f32.mrb[0].mxu0
        %v4240 = vadd.f32 0.0, %v4239
        %v4241 = vpop.f32.mrb[0].mxu0
        %4242 = vmatprep.mubr.bf16.mxu0 %v4095
        %4243 = vmatmul.mubr.bf16.gmra.mrb[0].mxu0 %v4094
        %v4244 = vpop.f32.mrb[0].mxu0
        %v4245 = vadd.f32 0.0, %v4244
        %v4246 = vpop.f32.mrb[0].mxu0
        %v4247 = vpop.f32.mrb[0].mxu0
        %v4248 = vadd.f32 0.0, %v4247
        %v4249 = vpop.f32.mrb[0].mxu0
        %4250 = vmatprep.mubr.bf16.mxu0 %v4097
        %4251 = vmatmul.mubr.bf16.gmra.mrb[0].mxu0 %v4096
        %v4252 = vpop.f32.mrb[0].mxu0
        %v4253 = vadd.f32 0.0, %v4252
        %v4254 = vpop.f32.mrb[0].mxu0
        %v4255 = vpop.f32.mrb[0].mxu0
        %v4256 = vadd.f32 0.0, %v4255
        %v4257 = vpop.f32.mrb[0].mxu0
        %4258 = vdwg.mxu0
        %v4259 = vmul.f32 %v4133, %v4003
        %v4260 = vmul.f32 %v4136, %v4005
        %v4261 = vmul.f32 %v4141, %v4007
        %v4262 = vmul.f32 %v4144, %v4009
        %v4263 = vmul.f32 %v4149, %v4011
        %v4264 = vmul.f32 %v4152, %v4013
        %v4265 = vmul.f32 %v4157, %v4015
        %v4266 = vmul.f32 %v4160, %v4017
        %v4267 = vmul.f32 %v4165, %v4019
        %v4268 = vmul.f32 %v4168, %v4021
        %v4269 = vmul.f32 %v4173, %v4023
        %v4270 = vmul.f32 %v4176, %v4025
        %v4271 = vmul.f32 %v4181, %v4027
        %v4272 = vmul.f32 %v4184, %v4029
        %v4273 = vmul.f32 %v4189, %v4031
        %v4274 = vmul.f32 %v4192, %v4033
        %v4275 = vmul.f32 %v4197, %v4035
        %v4276 = vmul.f32 %v4200, %v4037
        %v4277 = vmul.f32 %v4205, %v4039
        %v4278 = vmul.f32 %v4208, %v4041
        %v4279 = vmul.f32 %v4213, %v4043
        %v4280 = vmul.f32 %v4216, %v4045
        %v4281 = vmul.f32 %v4221, %v4047
        %v4282 = vmul.f32 %v4224, %v4049
        %v4283 = vmul.f32 %v4229, %v4051
        %v4284 = vmul.f32 %v4232, %v4053
        %v4285 = vmul.f32 %v4237, %v4055
        %v4286 = vmul.f32 %v4240, %v4057
        %v4287 = vmul.f32 %v4245, %v4059
        %v4288 = vmul.f32 %v4248, %v4061
        %v4289 = vmul.f32 %v4253, %v4063
        %v4290 = vmul.f32 %v4256, %v4065
        %v4291 = vpack.c.bf16 %v4260, %v4259
        %v4292 = vpack.c.bf16 %v4262, %v4261
        %v4293 = vpack.c.bf16 %v4264, %v4263
        %v4294 = vpack.c.bf16 %v4266, %v4265
        %v4295 = vpack.c.bf16 %v4268, %v4267
        %v4296 = vpack.c.bf16 %v4270, %v4269
        %v4297 = vpack.c.bf16 %v4272, %v4271
        %v4298 = vpack.c.bf16 %v4274, %v4273
        %v4299 = vpack.c.bf16 %v4276, %v4275
        %v4300 = vpack.c.bf16 %v4278, %v4277
        %v4301 = vpack.c.bf16 %v4280, %v4279
        %v4302 = vpack.c.bf16 %v4282, %v4281
        %v4303 = vpack.c.bf16 %v4284, %v4283
        %v4304 = vpack.c.bf16 %v4286, %v4285
        %v4305 = vpack.c.bf16 %v4288, %v4287
        %v4306 = vpack.c.bf16 %v4290, %v4289
        %v4307 = vld [vmem:[#allocation13] sm:$0xf]
        %v4308 = vld [vmem:[#allocation13 + $0x4] sm:$0xf]
        %v4309 = vld [vmem:[#allocation13 + $0x8] sm:$0xf]
        %v4310 = vld [vmem:[#allocation13 + $0xc] sm:$0xf]
        %v4311 = vld [vmem:[#allocation13 + $0x10] sm:$0xf]
        %v4312 = vld [vmem:[#allocation13 + $0x14] sm:$0xf]
        %v4313 = vld [vmem:[#allocation13 + $0x18] sm:$0xf]
        %v4314 = vld [vmem:[#allocation13 + $0x1c] sm:$0xf]
        %v4315 = vld [vmem:[#allocation13 + $0x20] sm:$0xf]
        %v4316 = vld [vmem:[#allocation13 + $0x24] sm:$0xf]
        %v4317 = vld [vmem:[#allocation13 + $0x28] sm:$0xf]
        %v4318 = vld [vmem:[#allocation13 + $0x2c] sm:$0xf]
        %v4319 = vld [vmem:[#allocation13 + $0x30] sm:$0xf]
        %v4320 = vld [vmem:[#allocation13 + $0x34] sm:$0xf]
        %v4321 = vld [vmem:[#allocation13 + $0x38] sm:$0xf]
        %v4322 = vld [vmem:[#allocation13 + $0x3c] sm:$0xf]
        %v4323 = vld [vmem:[%s9] sm:$0x1]
        %v4325 = vlaneseq
        %v4326 = vshrl.u32 %v4325, 7
        %v4327 = vsub.s32 0, %v4326
        %v4328 = vrot.slane %v4323, %v4327
        %v4346 = vunpack.c.l.b16 %v4307
        %v4347 = vunpack.c.l.b16 %v4308
        %v4348 = vunpack.c.l.b16 %v4309
        %v4349 = vunpack.c.l.b16 %v4310
        %v4350 = vunpack.c.l.b16 %v4311
        %v4351 = vunpack.c.l.b16 %v4312
        %v4352 = vunpack.c.l.b16 %v4313
        %v4353 = vunpack.c.l.b16 %v4314
        %v4354 = vunpack.c.l.b16 %v4315
        %v4355 = vunpack.c.l.b16 %v4316
        %v4356 = vunpack.c.l.b16 %v4317
        %v4357 = vunpack.c.l.b16 %v4318
        %v4358 = vunpack.c.l.b16 %v4319
        %v4359 = vunpack.c.l.b16 %v4320
        %v4360 = vunpack.c.l.b16 %v4321
        %v4361 = vunpack.c.l.b16 %v4322
        %v4362 = vpack.c.b16 %v4347, %v4346
        %v4363 = vpack.c.b16 %v4349, %v4348
        %v4364 = vpack.c.b16 %v4351, %v4350
        %v4365 = vpack.c.b16 %v4353, %v4352
        %v4366 = vpack.c.b16 %v4355, %v4354
        %v4367 = vpack.c.b16 %v4357, %v4356
        %v4368 = vpack.c.b16 %v4359, %v4358
        %v4369 = vpack.c.b16 %v4361, %v4360
        %4378 = vmatprep.subr.bf16.mxu0 0
        %4379 = vmatpush1.bf16.msra.mxu0 %v4362
        %4380 = vmatprep.subr.bf16.mxu0 0
        %4381 = vmatpush1.bf16.msra.mxu0 %v4363
        %4382 = vmatprep.subr.bf16.mxu0 0
        %4383 = vmatpush1.bf16.msra.mxu0 %v4364
        %4384 = vmatprep.subr.bf16.mxu0 0
        %4385 = vmatpush1.bf16.msra.mxu0 %v4365
        %4386 = vmatprep.subr.bf16.mxu0 0
        %4387 = vmatpush1.bf16.msra.mxu0 %v4366
        %4388 = vmatprep.subr.bf16.mxu0 0
        %4389 = vmatpush1.bf16.msra.mxu0 %v4367
        %4390 = vmatprep.subr.bf16.mxu0 0
        %4391 = vmatpush1.bf16.msra.mxu0 %v4368
        %4392 = vmatprep.subr.bf16.mxu0 0
        %4393 = vmatpush1.bf16.msra.mxu0 %v4369
        %4394 = vmatprep.subr.bf16.mxu0 0
        %4395 = vmatpush1.bf16.msra.mxu0 0
        %4396 = vmatprep.subr.bf16.mxu0 0
        %4397 = vmatpush1.bf16.msra.mxu0 0
        %4398 = vmatprep.subr.bf16.mxu0 0
        %4399 = vmatpush1.bf16.msra.mxu0 0
        %4400 = vmatprep.subr.bf16.mxu0 0
        %4401 = vmatpush1.bf16.msra.mxu0 0
        %4402 = vmatprep.subr.bf16.mxu0 0
        %4403 = vmatpush1.bf16.msra.mxu0 0
        %4404 = vmatprep.subr.bf16.mxu0 0
        %4405 = vmatpush1.bf16.msra.mxu0 0
        %4406 = vmatprep.subr.bf16.mxu0 0
        %4407 = vmatpush1.bf16.msra.mxu0 0
        %4408 = vmatprep.subr.bf16.mxu0 0
        %4409 = vmatpush1.bf16.msra.mxu0 0
        %4410 = vmatprep.mubr.bf16.mxu0 0
        %4411 = vmatmul.mubr.bf16.gmra.mrb[0].mxu0 %v4291
        %v4412 = vpop.f32.mrb[0].mxu0
        %v4413 = vadd.f32 %v4328, %v4412
        %v4414 = vpop.f32.mrb[0].mxu0
        %v4415 = vpop.f32.mrb[0].mxu0
        %v4416 = vadd.f32 %v4328, %v4415
        %v4417 = vpop.f32.mrb[0].mxu0
        %4418 = vmatprep.mubr.bf16.mxu0 0
        %4419 = vmatmul.mubr.bf16.gmra.mrb[0].mxu0 %v4292
        %v4420 = vpop.f32.mrb[0].mxu0
        %v4421 = vadd.f32 %v4328, %v4420
        %v4422 = vpop.f32.mrb[0].mxu0
        %v4423 = vpop.f32.mrb[0].mxu0
        %v4424 = vadd.f32 %v4328, %v4423
        %v4425 = vpop.f32.mrb[0].mxu0
        %4426 = vmatprep.mubr.bf16.mxu0 0
        %4427 = vmatmul.mubr.bf16.gmra.mrb[0].mxu0 %v4293
        %v4428 = vpop.f32.mrb[0].mxu0
        %v4429 = vadd.f32 %v4328, %v4428
        %v4430 = vpop.f32.mrb[0].mxu0
        %v4431 = vpop.f32.mrb[0].mxu0
        %v4432 = vadd.f32 %v4328, %v4431
        %v4433 = vpop.f32.mrb[0].mxu0
        %4434 = vmatprep.mubr.bf16.mxu0 0
        %4435 = vmatmul.mubr.bf16.gmra.mrb[0].mxu0 %v4294
        %v4436 = vpop.f32.mrb[0].mxu0
        %v4437 = vadd.f32 %v4328, %v4436
        %v4438 = vpop.f32.mrb[0].mxu0
        %v4439 = vpop.f32.mrb[0].mxu0
        %v4440 = vadd.f32 %v4328, %v4439
        %v4441 = vpop.f32.mrb[0].mxu0
        %4442 = vmatprep.mubr.bf16.mxu0 0
        %4443 = vmatmul.mubr.bf16.gmra.mrb[0].mxu0 %v4295
        %v4444 = vpop.f32.mrb[0].mxu0
        %v4445 = vadd.f32 %v4328, %v4444
        %v4446 = vpop.f32.mrb[0].mxu0
        %v4447 = vpop.f32.mrb[0].mxu0
        %v4448 = vadd.f32 %v4328, %v4447
        %v4449 = vpop.f32.mrb[0].mxu0
        %4450 = vmatprep.mubr.bf16.mxu0 0
        %4451 = vmatmul.mubr.bf16.gmra.mrb[0].mxu0 %v4296
        %v4452 = vpop.f32.mrb[0].mxu0
        %v4453 = vadd.f32 %v4328, %v4452
        %v4454 = vpop.f32.mrb[0].mxu0
        %v4455 = vpop.f32.mrb[0].mxu0
        %v4456 = vadd.f32 %v4328, %v4455
        %v4457 = vpop.f32.mrb[0].mxu0
        %4458 = vmatprep.mubr.bf16.mxu0 0
        %4459 = vmatmul.mubr.bf16.gmra.mrb[0].mxu0 %v4297
        %v4460 = vpop.f32.mrb[0].mxu0
        %v4461 = vadd.f32 %v4328, %v4460
        %v4462 = vpop.f32.mrb[0].mxu0
        %v4463 = vpop.f32.mrb[0].mxu0
        %v4464 = vadd.f32 %v4328, %v4463
        %v4465 = vpop.f32.mrb[0].mxu0
        %4466 = vmatprep.mubr.bf16.mxu0 0
        %4467 = vmatmul.mubr.bf16.gmra.mrb[0].mxu0 %v4298
        %v4468 = vpop.f32.mrb[0].mxu0
        %v4469 = vadd.f32 %v4328, %v4468
        %v4470 = vpop.f32.mrb[0].mxu0
        %v4471 = vpop.f32.mrb[0].mxu0
        %v4472 = vadd.f32 %v4328, %v4471
        %v4473 = vpop.f32.mrb[0].mxu0
        %4474 = vmatprep.mubr.bf16.mxu0 0
        %4475 = vmatmul.mubr.bf16.gmra.mrb[0].mxu0 %v4299
        %v4476 = vpop.f32.mrb[0].mxu0
        %v4477 = vadd.f32 %v4328, %v4476
        %v4478 = vpop.f32.mrb[0].mxu0
        %v4479 = vpop.f32.mrb[0].mxu0
        %v4480 = vadd.f32 %v4328, %v4479
        %v4481 = vpop.f32.mrb[0].mxu0
        %4482 = vmatprep.mubr.bf16.mxu0 0
        %4483 = vmatmul.mubr.bf16.gmra.mrb[0].mxu0 %v4300
        %v4484 = vpop.f32.mrb[0].mxu0
        %v4485 = vadd.f32 %v4328, %v4484
        %v4486 = vpop.f32.mrb[0].mxu0
        %v4487 = vpop.f32.mrb[0].mxu0
        %v4488 = vadd.f32 %v4328, %v4487
        %v4489 = vpop.f32.mrb[0].mxu0
        %4490 = vmatprep.mubr.bf16.mxu0 0
        %4491 = vmatmul.mubr.bf16.gmra.mrb[0].mxu0 %v4301
        %v4492 = vpop.f32.mrb[0].mxu0
        %v4493 = vadd.f32 %v4328, %v4492
        %v4494 = vpop.f32.mrb[0].mxu0
        %v4495 = vpop.f32.mrb[0].mxu0
        %v4496 = vadd.f32 %v4328, %v4495
        %v4497 = vpop.f32.mrb[0].mxu0
        %4498 = vmatprep.mubr.bf16.mxu0 0
        %4499 = vmatmul.mubr.bf16.gmra.mrb[0].mxu0 %v4302
        %v4500 = vpop.f32.mrb[0].mxu0
        %v4501 = vadd.f32 %v4328, %v4500
        %v4502 = vpop.f32.mrb[0].mxu0
        %v4503 = vpop.f32.mrb[0].mxu0
        %v4504 = vadd.f32 %v4328, %v4503
        %v4505 = vpop.f32.mrb[0].mxu0
        %4506 = vmatprep.mubr.bf16.mxu0 0
        %4507 = vmatmul.mubr.bf16.gmra.mrb[0].mxu0 %v4303
        %v4508 = vpop.f32.mrb[0].mxu0
        %v4509 = vadd.f32 %v4328, %v4508
        %v4510 = vpop.f32.mrb[0].mxu0
        %v4511 = vpop.f32.mrb[0].mxu0
        %v4512 = vadd.f32 %v4328, %v4511
        %v4513 = vpop.f32.mrb[0].mxu0
        %4514 = vmatprep.mubr.bf16.mxu0 0
        %4515 = vmatmul.mubr.bf16.gmra.mrb[0].mxu0 %v4304
        %v4516 = vpop.f32.mrb[0].mxu0
        %v4517 = vadd.f32 %v4328, %v4516
        %v4518 = vpop.f32.mrb[0].mxu0
        %v4519 = vpop.f32.mrb[0].mxu0
        %v4520 = vadd.f32 %v4328, %v4519
        %v4521 = vpop.f32.mrb[0].mxu0
        %4522 = vmatprep.mubr.bf16.mxu0 0
        %4523 = vmatmul.mubr.bf16.gmra.mrb[0].mxu0 %v4305
        %v4524 = vpop.f32.mrb[0].mxu0
        %v4525 = vadd.f32 %v4328, %v4524
        %v4526 = vpop.f32.mrb[0].mxu0
        %v4527 = vpop.f32.mrb[0].mxu0
        %v4528 = vadd.f32 %v4328, %v4527
        %v4529 = vpop.f32.mrb[0].mxu0
        %4530 = vmatprep.mubr.bf16.mxu0 0
        %4531 = vmatmul.mubr.bf16.gmra.mrb[0].mxu0 %v4306
        %v4532 = vpop.f32.mrb[0].mxu0
        %v4533 = vadd.f32 %v4328, %v4532
        %v4534 = vpop.f32.mrb[0].mxu0
        %v4535 = vpop.f32.mrb[0].mxu0
        %v4536 = vadd.f32 %v4328, %v4535
        %v4537 = vpop.f32.mrb[0].mxu0
        %4538 = vdwg.mxu0
        %v4539 = vpack.c.bf16 %v4416, %v4413
        %v4540 = vpack.c.bf16 %v4424, %v4421
        %v4541 = vpack.c.bf16 %v4432, %v4429
        %v4542 = vpack.c.bf16 %v4440, %v4437
        %v4543 = vpack.c.bf16 %v4448, %v4445
        %v4544 = vpack.c.bf16 %v4456, %v4453
        %v4545 = vpack.c.bf16 %v4464, %v4461
        %v4546 = vpack.c.bf16 %v4472, %v4469
        %v4547 = vpack.c.bf16 %v4480, %v4477
        %v4548 = vpack.c.bf16 %v4488, %v4485
        %v4549 = vpack.c.bf16 %v4496, %v4493
        %v4550 = vpack.c.bf16 %v4504, %v4501
        %v4551 = vpack.c.bf16 %v4512, %v4509
        %v4552 = vpack.c.bf16 %v4520, %v4517
        %v4553 = vpack.c.bf16 %v4528, %v4525
        %v4554 = vpack.c.bf16 %v4536, %v4533
        %v4571 = vunpack.c.l.b16 %v4539
        %v4572 = vunpack.c.h.b16 %v4539
        %v4573 = vunpack.c.l.b16 %v4540
        %v4574 = vunpack.c.h.b16 %v4540
        %v4575 = vunpack.c.l.b16 %v4541
        %v4576 = vunpack.c.h.b16 %v4541
        %v4577 = vunpack.c.l.b16 %v4542
        %v4578 = vunpack.c.h.b16 %v4542
        %v4579 = vunpack.c.l.b16 %v4543
        %v4580 = vunpack.c.h.b16 %v4543
        %v4581 = vunpack.c.l.b16 %v4544
        %v4582 = vunpack.c.h.b16 %v4544
        %v4583 = vunpack.c.l.b16 %v4545
        %v4584 = vunpack.c.h.b16 %v4545
        %v4585 = vunpack.c.l.b16 %v4546
        %v4586 = vunpack.c.h.b16 %v4546
        %v4587 = vunpack.c.l.b16 %v4547
        %v4588 = vunpack.c.h.b16 %v4547
        %v4589 = vunpack.c.l.b16 %v4548
        %v4590 = vunpack.c.h.b16 %v4548
        %v4591 = vunpack.c.l.b16 %v4549
        %v4592 = vunpack.c.h.b16 %v4549
        %v4593 = vunpack.c.l.b16 %v4550
        %v4594 = vunpack.c.h.b16 %v4550
        %v4595 = vunpack.c.l.b16 %v4551
        %v4596 = vunpack.c.h.b16 %v4551
        %v4597 = vunpack.c.l.b16 %v4552
        %v4598 = vunpack.c.h.b16 %v4552
        %v4599 = vunpack.c.l.b16 %v4553
        %v4600 = vunpack.c.h.b16 %v4553
        %v4601 = vunpack.c.l.b16 %v4554
        %v4602 = vunpack.c.h.b16 %v4554
        %v4603 = vpack.c.b16 %v4571, %v4571
        %v4604 = vpack.c.b16 %v4572, %v4572
        %v4605 = vpack.c.b16 %v4573, %v4573
        %v4606 = vpack.c.b16 %v4574, %v4574
        %v4607 = vpack.c.b16 %v4575, %v4575
        %v4608 = vpack.c.b16 %v4576, %v4576
        %v4609 = vpack.c.b16 %v4577, %v4577
        %v4610 = vpack.c.b16 %v4578, %v4578
        %v4611 = vpack.c.b16 %v4579, %v4579
        %v4612 = vpack.c.b16 %v4580, %v4580
        %v4613 = vpack.c.b16 %v4581, %v4581
        %v4614 = vpack.c.b16 %v4582, %v4582
        %v4615 = vpack.c.b16 %v4583, %v4583
        %v4616 = vpack.c.b16 %v4584, %v4584
        %v4617 = vpack.c.b16 %v4585, %v4585
        %v4618 = vpack.c.b16 %v4586, %v4586
        %v4619 = vpack.c.b16 %v4587, %v4587
        %v4620 = vpack.c.b16 %v4588, %v4588
        %v4621 = vpack.c.b16 %v4589, %v4589
        %v4622 = vpack.c.b16 %v4590, %v4590
        %v4623 = vpack.c.b16 %v4591, %v4591
        %v4624 = vpack.c.b16 %v4592, %v4592
        %v4625 = vpack.c.b16 %v4593, %v4593
        %v4626 = vpack.c.b16 %v4594, %v4594
        %v4627 = vpack.c.b16 %v4595, %v4595
        %v4628 = vpack.c.b16 %v4596, %v4596
        %v4629 = vpack.c.b16 %v4597, %v4597
        %v4630 = vpack.c.b16 %v4598, %v4598
        %v4631 = vpack.c.b16 %v4599, %v4599
        %v4632 = vpack.c.b16 %v4600, %v4600
        %v4633 = vpack.c.b16 %v4601, %v4601
        %v4634 = vpack.c.b16 %v4602, %v4602
        %4667 = vst [vmem:[%s529] sm:$0xf] %v4603
        %4668 = vst [vmem:[%s529 + $0x4] sm:$0xf] %v4604
        %4669 = vst [vmem:[%s529 + $0x8] sm:$0xf] %v4605
        %4670 = vst [vmem:[%s529 + $0xc] sm:$0xf] %v4606
        %4671 = vst [vmem:[%s529 + $0x10] sm:$0xf] %v4607
        %4672 = vst [vmem:[%s529 + $0x14] sm:$0xf] %v4608
        %4673 = vst [vmem:[%s529 + $0x18] sm:$0xf] %v4609
        %4674 = vst [vmem:[%s529 + $0x1c] sm:$0xf] %v4610
        %4675 = vst [vmem:[%s529 + $0x20] sm:$0xf] %v4611
        %4676 = vst [vmem:[%s529 + $0x24] sm:$0xf] %v4612
        %4677 = vst [vmem:[%s529 + $0x28] sm:$0xf] %v4613
        %4678 = vst [vmem:[%s529 + $0x2c] sm:$0xf] %v4614
        %4679 = vst [vmem:[%s529 + $0x30] sm:$0xf] %v4615
        %4680 = vst [vmem:[%s529 + $0x34] sm:$0xf] %v4616
        %4681 = vst [vmem:[%s529 + $0x38] sm:$0xf] %v4617
        %4682 = vst [vmem:[%s529 + $0x3c] sm:$0xf] %v4618
        %4683 = vst [vmem:[%s529 + $0x40] sm:$0xf] %v4619
        %4684 = vst [vmem:[%s529 + $0x44] sm:$0xf] %v4620
        %4685 = vst [vmem:[%s529 + $0x48] sm:$0xf] %v4621
        %4686 = vst [vmem:[%s529 + $0x4c] sm:$0xf] %v4622
        %4687 = vst [vmem:[%s529 + $0x50] sm:$0xf] %v4623
        %4688 = vst [vmem:[%s529 + $0x54] sm:$0xf] %v4624
        %4689 = vst [vmem:[%s529 + $0x58] sm:$0xf] %v4625
        %4690 = vst [vmem:[%s529 + $0x5c] sm:$0xf] %v4626
        %4691 = vst [vmem:[%s529 + $0x60] sm:$0xf] %v4627
        %4692 = vst [vmem:[%s529 + $0x64] sm:$0xf] %v4628
        %4693 = vst [vmem:[%s529 + $0x68] sm:$0xf] %v4629
        %4694 = vst [vmem:[%s529 + $0x6c] sm:$0xf] %v4630
        %4695 = vst [vmem:[%s529 + $0x70] sm:$0xf] %v4631
        %4696 = vst [vmem:[%s529 + $0x74] sm:$0xf] %v4632
        %4697 = vst [vmem:[%s529 + $0x78] sm:$0xf] %v4633
        %4698 = vst [vmem:[%s529 + $0x7c] sm:$0xf] %v4634
        %s4699 = sand.u32 %s279, 1
        %s4700 = scalar_lea.sflag [#allocation6], %s4699
        %s4701 = sand.u32 %s279, 1
        %s4702 = smul.addr %s4701, 128
        %s4703 = scalar_lea.vmem [#allocation15], %s4702
        %s4704 = sand.u32 %s307, 1
        %s4705 = scalar_lea.sflag [#allocation17], %s4704
        %s4706 = sand.u32 %s307, 1
        %s4707 = smul.addr %s4706, 128
        %s4708 = scalar_lea.vmem [#allocation16], %s4707
        // Predicated region
        $region89: #{tpu_custom_call.1} parent=59 // pred_check
          %p4709 = pneg %p289
        $region90: #{tpu_custom_call.1} parent=59 // pred_check_branch
          %4711 = sbr.rel (%p4709) target = $region92
        $region91: #{tpu_custom_call.1} parent=59 // pred_region
          %s4712 = smul.u32 32, %s42
          %s4714 = ssub.s32 2048, 2048
          %4715 = vsyncadd %s4700, %s4714
          %s4716 = smul.addr %s41, 32
          %s4717 = sadd.s32 %s4712, %s4716
          %s4718 = smul.addr %s4717, 64
          %s4719 = scalar_lea.hbm %s10, %s4718
          %s4720 = sshll.u32 %s4703, 4
          %s4721 = int_to_ptr.vmem [resolvable:$true] %s4720
          %4726 = dma.vmem_to_hbm [thread:$0]  %s4721, 2048, %s4719, %s4700, 64, 64, 4
        $region92: #{tpu_custom_call.1} parent=59 // pred_fallthru
          _
        // Predicated region
        $region93: #{tpu_custom_call.1} parent=59 // pred_check
          %p4727 = pneg %p317
        $region94: #{tpu_custom_call.1} parent=59 // pred_check_branch
          %4729 = sbr.rel (%p4727) target = $region96
        $region95: #{tpu_custom_call.1} parent=59 // pred_region
          %s4730 = smul.u32 32, %s42
          %s4732 = ssub.s32 2048, 2048
          %4733 = vsyncadd %s4705, %s4732
          %s4734 = smul.addr %s41, 32
          %s4735 = sadd.s32 %s4730, %s4734
          %s4736 = smul.addr %s4735, 64
          %s4737 = scalar_lea.hbm %s11, %s4736
          %s4738 = sshll.u32 %s4708, 4
          %s4739 = int_to_ptr.vmem [resolvable:$true] %s4738
          %4744 = dma.vmem_to_hbm [thread:$0]  %s4739, 2048, %s4737, %s4705, 64, 64, 4
        $region96: #{tpu_custom_call.1} parent=59 // pred_fallthru
          _
      $region60: #{tpu_custom_call.1} parent=5 // pred_fallthru
        _
      %p4745 = scmp.le.s32.totalorder 2, %s32
      // Predicated region
      $region97: #{tpu_custom_call.1} parent=5 // pred_check
        %p4746 = pneg %p4745
      $region98: #{tpu_custom_call.1} parent=5 // pred_check_branch
        %4748 = sbr.rel (%p4746) target = $region100
      $region99: #{tpu_custom_call.1} parent=5 // pred_region
        %s4749 = ssub.s32 %s32, 2
        // Predicated region
        $region101: #{tpu_custom_call.1} parent=99 // pred_check
          %p4750 = pneg %p295
        $region102: #{tpu_custom_call.1} parent=99 // pred_check_branch
          %4752 = sbr.rel (%p4750) target = $region104
        $region103: #{tpu_custom_call.1} parent=99 // pred_region
          %s4753 = sand.u32 %s280, 1
          %s4754 = scalar_lea.sflag [#allocation6], %s4753
          %s4755 = sand.u32 %s280, 1
          %s4756 = smul.addr %s4755, 128
          %s4757 = scalar_lea.vmem [#allocation15], %s4756
          %4758 = dma.done %s4754, 2048
        $region104: #{tpu_custom_call.1} parent=99 // pred_fallthru
          _
        // Predicated region
        $region105: #{tpu_custom_call.1} parent=99 // pred_check
          %p4759 = pneg %p323
        $region106: #{tpu_custom_call.1} parent=99 // pred_check_branch
          %4761 = sbr.rel (%p4759) target = $region108
        $region107: #{tpu_custom_call.1} parent=99 // pred_region
          %s4762 = sand.u32 %s308, 1
          %s4763 = scalar_lea.sflag [#allocation17], %s4762
          %s4764 = sand.u32 %s308, 1
          %s4765 = smul.addr %s4764, 128
          %s4766 = scalar_lea.vmem [#allocation16], %s4765
          %4767 = dma.done %s4763, 2048
        $region108: #{tpu_custom_call.1} parent=99 // pred_fallthru
          _
      $region100: #{tpu_custom_call.1} parent=5 // pred_fallthru
        _
    $region6: #{tpu_custom_call.1} parent=1 // loop_footer
      %s36 = sadd.s32 1, %s32
    $region7: #{tpu_custom_call.1} parent=1 // loop_footer_branch
      %31 = sbr.rel target = $region3
    $region8: #{tpu_custom_call.1} parent=1 // loop_exit
      _
    %4768 = vsyncpa [#allocation5], 1
    %s4769 = scalar_lea.sflag [#allocation5], 1
    %4770 = vsyncpa %s4769, 1
    %4771 = vsyncpa [#allocation8], 1
    %s4772 = scalar_lea.sflag [#allocation8], 1
    %4773 = vsyncpa %s4772, 1
    %4774 = vsyncpa [#allocation11], 1
    %4775 = vsyncpa [#allocation14], 1
    %4776 = vsyncpa [#allocation6], 1
    %s4777 = scalar_lea.sflag [#allocation6], 1
    %4778 = vsyncpa %s4777, 1
    %4779 = vsyncpa [#allocation17], 1
    %s4780 = scalar_lea.sflag [#allocation17], 1
    %4781 = vsyncpa %s4780, 1

</llo_original>
